<compile_context>
chip_gen: v7x
topology: tpu7x:2x2x1
jax: 0.10.0
libtpu: 0.0.40
codegen_flags: <defaults>
</compile_context>

<pallas_src>
import functools

import jax
import jax.numpy as jnp
from jax import lax
from jax.experimental import pallas as pl
from jax.experimental.pallas import tpu as pltpu
from jax.scipy.special import erf as _erf_exact

_LN_EPS = 1e-6
_GRN_EPS = 1e-6
_INV_SQRT2 = 0.7071067811865476


def _erf_approx(z):
    """Abramowitz & Stegun 7.1.26 erf, |err| <= 1.5e-7.  A few FMAs + one exp (EUP)."""
    a1, a2, a3, a4, a5 = (0.254829592, -0.284496736, 1.421413741,
                          -1.453152027, 1.061405429)
    p = 0.3275911
    az = jnp.abs(z)
    t = 1.0 / (1.0 + p * az)
    poly = ((((a5 * t + a4) * t + a3) * t + a2) * t + a1) * t
    e = 1.0 - poly * jnp.exp(-az * az)
    return jnp.where(z < 0.0, -e, e)


def _gelu(x):
    # nn.GELU() default is the exact-erf GELU; the A&S erf keeps the error < 1e-6.
    return 0.5 * x * (1.0 + _erf_approx(x * _INV_SQRT2))


def _block_kernel(x_ref, wdw_ref, bdw_ref, lnw_ref, lnb_ref, w1_ref, b1_ref,
                  gamma_ref, beta_ref, w2_ref, b2_ref, o_ref,
                  xpad_s, t_s, h_s, *, H, W, K, pad, TH, C4_true):
    Cp = x_ref.shape[-1]
    C4p = w1_ref.shape[-1]
    NT = H // TH
    TM = TH * W

    # ---- zero-padded copy of the input tile (halo for the depthwise conv) ----
    xpad_s[...] = jnp.zeros_like(xpad_s)
    xpad_s[pad:pad + H, pad:pad + W, :] = x_ref[0]

    # ---- depthwise KxK conv (stride 1, groups=C), f32 on the VPU ----
    wdw = wdw_ref[...]                                    # (K*K, Cp)
    acc = jnp.zeros((H, W, Cp), jnp.float32)
    for kw in range(K):                                   # one W (sublane) shift per kw
        xk = xpad_s[:, kw:kw + W, :]                      # (Hp, W, Cp)
        for kh in range(K):                               # leading-axis slices are cheap
            acc = acc + xk[kh:kh + H] * wdw[kh * K + kw].reshape(1, 1, Cp)
    acc = acc + bdw_ref[...].reshape(1, 1, Cp)

    # ---- LayerNorm exactly as in the torch module: stats over dim=1 of NHWC
    #      (the H axis), scale/shift along channels ----
    u = jnp.mean(acc, axis=0, keepdims=True)
    s = jnp.mean((acc - u) ** 2, axis=0, keepdims=True)
    t = (acc - u) * lax.rsqrt(s + _LN_EPS)
    t_s[...] = lnw_ref[...].reshape(1, 1, Cp) * t + lnb_ref[...].reshape(1, 1, Cp)

    w1 = w1_ref[...]                                      # (Cp, C4p) bf16
    b1 = b1_ref[...]                                      # (1, C4p)  f32

    # ---- pass 1: row-tiled Linear(C->4C) + GELU; bf16 h scratch, f32 sum(h^2) ----
    def pass1(i, ssq):
        r0 = i * TH
        tt = t_s[pl.ds(r0, TH), :, :].reshape(TM, Cp).astype(jnp.bfloat16)
        h = jnp.dot(tt, w1, preferred_element_type=jnp.float32) + b1
        h = _gelu(h)                                      # (TM, C4p) f32
        ssq = ssq + jnp.sum(h * h, axis=0, keepdims=True)   # GRN stats stay f32
        h_s[pl.ds(r0, TH), :, :] = h.reshape(TH, W, C4p).astype(jnp.bfloat16)
        return ssq

    ssq = lax.fori_loop(0, NT, pass1, jnp.zeros((1, C4p), jnp.float32), unroll=True)

    # ---- GRN statistics: L2 over (H, W) per channel; mean over the *true* 4C ----
    gx = jnp.sqrt(ssq)                                    # (1, C4p); padded channels are 0
    gx_mean = jnp.sum(gx, axis=-1, keepdims=True) * (1.0 / C4_true)
    nx = gx / (gx_mean + _GRN_EPS)
    coef = gamma_ref[...] * nx + 1.0                      # gamma*(h*nx)+beta+h == h*coef+beta
    beta = beta_ref[...]

    w2 = w2_ref[...]                                      # (C4p, Cp) bf16
    b2 = b2_ref[...]                                      # (1, Cp)   f32

    # ---- pass 2: GRN apply + Linear(4C->C) + residual, row-tiled ----
    def pass2(i, carry):
        r0 = i * TH
        h = h_s[pl.ds(r0, TH), :, :].astype(jnp.float32).reshape(TM, C4p)
        g = h * coef + beta
        y = jnp.dot(g.astype(jnp.bfloat16), w2, preferred_element_type=jnp.float32) + b2
        y = y.reshape(TH, W, Cp) + x_ref[0, pl.ds(r0, TH), :, :]
        o_ref[0, pl.ds(r0, TH), :, :] = y.astype(o_ref.dtype)
        return carry

    lax.fori_loop(0, NT, pass2, 0, unroll=True)


def _round_up(x, m):
    return (x + m - 1) // m * m


def _pick_row_tile(H, W):
    """Largest divisor of H giving roughly <= 512 flattened rows per MLP tile."""
    target = max(1, 512 // max(W, 1))
    th = 1
    for d in range(1, H + 1):
        if H % d == 0 and d <= target:
            th = d
    return th


def _pad_last(a, n):
    extra = n - a.shape[-1]
    if extra == 0:
        return a
    return jnp.pad(a, [(0, 0)] * (a.ndim - 1) + [(0, extra)])


def convnext_v2_like_block_2d_nhwc(x_nhwc, params, *, kernel_size=5, row_tile=None,
                                   interpret=False):
    """Fused block, channels-last entry point.  x_nhwc: (B, H, W, C)."""
    wdw, bdw, lnw, lnb, w1t, b1, gamma, beta, w2t, b2 = params
    B, H, W, C = x_nhwc.shape
    K = kernel_size
    pad = (K - 1) // 2
    C4 = w1t.shape[1]
    Hp, Wp = H + 2 * pad, W + 2 * pad

    # Lane padding (channels -> multiple of 128). Zero-padded weights keep padded
    # channels exactly zero through the whole block.
    Cp = _round_up(C, 128)
    C4p = _round_up(C4, 128)

    TH = row_tile if row_tile is not None else _pick_row_tile(H, W)
    assert H % TH == 0, "row_tile must divide H"

    xk = _pad_last(x_nhwc.astype(jnp.float32), Cp)
    wdw_p = _pad_last(wdw.astype(jnp.float32), Cp)
    bdw_p = _pad_last(bdw.reshape(1, C).astype(jnp.float32), Cp)
    lnw_p = _pad_last(lnw.reshape(1, C).astype(jnp.float32), Cp)
    lnb_p = _pad_last(lnb.reshape(1, C).astype(jnp.float32), Cp)
    b1_p = _pad_last(b1.reshape(1, C4).astype(jnp.float32), C4p)
    gamma_p = _pad_last(gamma.reshape(1, C4).astype(jnp.float32), C4p)
    beta_p = _pad_last(beta.reshape(1, C4).astype(jnp.float32), C4p)
    b2_p = _pad_last(b2.reshape(1, C).astype(jnp.float32), Cp)
    # MXU operands in bf16 (f32 accumulation happens inside the kernel).
    w1_p = jnp.pad(w1t.astype(jnp.float32),
                   ((0, Cp - C), (0, C4p - C4))).astype(jnp.bfloat16)
    w2_p = jnp.pad(w2t.astype(jnp.float32),
                   ((0, C4p - C4), (0, Cp - C))).astype(jnp.bfloat16)

    # Per-step VMEM budget. IO blocks & weights are double-buffered by the pipeline;
    # scratches are single copies. Cap at 64 MiB (v7x per-TC VMEM).
    f32b, bf16b = 4, 2
    io_bytes = H * W * Cp * f32b
    weight_bytes = ((K * K + 4) * Cp + 3 * C4p) * f32b + 2 * Cp * C4p * bf16b
    scratch_bytes = (Hp * Wp + H * W) * Cp * f32b + H * W * C4p * bf16b
    vmem_needed = 2 * 2 * io_bytes + 2 * weight_bytes + scratch_bytes
    vmem_limit = int(min(64 * 2 ** 20,
                         max(32 * 2 ** 20, int(1.3 * vmem_needed) + (8 << 20))))

    cost = pl.CostEstimate(
        flops=int(B * H * W * (4 * C * C4 + 2 * C * K * K)),
        transcendentals=int(B * H * W * C4),
        bytes_accessed=int(2 * B * H * W * C * 4 + (2 * C * C4 + K * K * C) * 4),
    )

    kernel = functools.partial(_block_kernel, H=H, W=W, K=K, pad=pad, TH=TH, C4_true=C4)
    const = lambda b: (0, 0)

    out = pl.pallas_call(
        kernel,
        out_shape=jax.ShapeDtypeStruct((B, H, W, Cp), x_nhwc.dtype),
        grid_spec=pltpu.PrefetchScalarGridSpec(
            num_scalar_prefetch=0,
            grid=(B,),
            in_specs=[
                pl.BlockSpec((1, H, W, Cp), lambda b: (b, 0, 0, 0)),   # activation
                pl.BlockSpec((K * K, Cp), const),                      # dw conv weight
                pl.BlockSpec((1, Cp), const),                          # dw conv bias
                pl.BlockSpec((1, Cp), const),                          # LN weight
                pl.BlockSpec((1, Cp), const),                          # LN bias
                pl.BlockSpec((Cp, C4p), const),                        # W1^T (bf16)
                pl.BlockSpec((1, C4p), const),                         # b1
                pl.BlockSpec((1, C4p), const),                         # GRN gamma
                pl.BlockSpec((1, C4p), const),                         # GRN beta
                pl.BlockSpec((C4p, Cp), const),                        # W2^T (bf16)
                pl.BlockSpec((1, Cp), const),                          # b2
            ],
            out_specs=pl.BlockSpec((1, H, W, Cp), lambda b: (b, 0, 0, 0)),
            scratch_shapes=[
                pltpu.VMEM((Hp, Wp, Cp), jnp.float32),    # zero-padded input (halo)
                pltpu.VMEM((H, W, Cp), jnp.float32),      # LayerNorm output
                pltpu.VMEM((H, W, C4p), jnp.bfloat16),    # bottleneck activation (pass1->2)
            ],
        ),
        compiler_params=pltpu.CompilerParams(
            # On v7x (2 TCs) the batch grid needs B >= 2 to feed both cores.
            dimension_semantics=("parallel",),
            vmem_limit_bytes=vmem_limit,
        ),
        cost_estimate=cost,
        interpret=interpret,
    )(xk, wdw_p, bdw_p, lnw_p, lnb_p, w1_p, b1_p, gamma_p, beta_p, w2_p, b2_p)

    return out[..., :C]


def convnext_v2_like_block_2d(x_nchw, params, *, kernel_size=5, row_tile=None):
    """PyTorch-layout entry point: x_nchw (B, C, H, W).  Prefer the NHWC entry point
    upstream to avoid the two layout transposes."""
    x_nhwc = jnp.transpose(x_nchw, (0, 2, 3, 1))
    out = convnext_v2_like_block_2d_nhwc(x_nhwc, params, kernel_size=kernel_size,
                                         row_tile=row_tile)
    return jnp.transpose(out, (0, 3, 1, 2))


def make_params(key, dim, kernel_size=5, bottleneck_dilation=4):
    """Deterministic parameters mirroring the PyTorch module's shapes.  LN/GRN params
    are randomized (instead of torch's 1/0 init) so the self-test exercises them.
    Depthwise weight layout: (K*K, C) == torch weight.reshape(C, K*K).T."""
    K, C = kernel_size, dim
    C4 = dim * bottleneck_dilation
    ks = jax.random.split(key, 10)
    b_conv = 1.0 / (K * K) ** 0.5
    wdw = jax.random.uniform(ks[0], (K * K, C), jnp.float32, -b_conv, b_conv)
    bdw = jax.random.uniform(ks[1], (C,), jnp.float32, -b_conv, b_conv)
    lnw = 1.0 + 0.1 * jax.random.normal(ks[2], (C,), jnp.float32)
    lnb = 0.1 * jax.random.normal(ks[3], (C,), jnp.float32)
    b1_lim = 1.0 / C ** 0.5
    w1t = jax.random.uniform(ks[4], (C, C4), jnp.float32, -b1_lim, b1_lim)   # torch W1.T
    b1 = jax.random.uniform(ks[5], (C4,), jnp.float32, -b1_lim, b1_lim)
    gamma = 0.1 * jax.random.normal(ks[6], (C4,), jnp.float32)
    beta = 0.1 * jax.random.normal(ks[7], (C4,), jnp.float32)
    b2_lim = 1.0 / C4 ** 0.5
    w2t = jax.random.uniform(ks[8], (C4, C), jnp.float32, -b2_lim, b2_lim)   # torch W2.T
    b2 = jax.random.uniform(ks[9], (C,), jnp.float32, -b2_lim, b2_lim)
    return (wdw, bdw, lnw, lnb, w1t, b1, gamma, beta, w2t, b2)


def reference_forward(x_nchw, params, *, kernel_size=5):
    """Pure-JAX, f32, exact-erf replica of the PyTorch forward."""
    wdw, bdw, lnw, lnb, w1t, b1, gamma, beta, w2t, b2 = params
    B, C, H, W = x_nchw.shape
    K = kernel_size
    p = (K - 1) // 2
    xh = jnp.transpose(x_nchw, (0, 2, 3, 1)).astype(jnp.float32)
    xp = jnp.pad(xh, ((0, 0), (p, p), (p, p), (0, 0)))
    acc = jnp.zeros((B, H, W, C), jnp.float32)
    for kh in range(K):
        for kw in range(K):
            acc = acc + xp[:, kh:kh + H, kw:kw + W, :] * wdw[kh * K + kw]
    acc = acc + bdw
    u = acc.mean(axis=1, keepdims=True)                        # torch: mean over dim=1 (H)
    s = ((acc - u) ** 2).mean(axis=1, keepdims=True)
    t = (acc - u) / jnp.sqrt(s + _LN_EPS)
    t = lnw * t + lnb
    h = t @ w1t + b1
    h = 0.5 * h * (1.0 + _erf_exact(h * _INV_SQRT2))           # exact GELU
    gx = jnp.sqrt(jnp.sum(h * h, axis=(1, 2), keepdims=True))
    nx = gx / (jnp.mean(gx, axis=-1, keepdims=True) + _GRN_EPS)
    h = gamma * (h * nx) + beta + h
    y = h @ w2t + b2
    return x_nchw + jnp.transpose(y, (0, 3, 1, 2))


if __name__ == "__main__":
    B, C, H, W = 2, 8, 16, 16
    key = jax.random.PRNGKey(0)
    kx, kp = jax.random.split(key)
    x = jax.random.normal(kx, (B, C, H, W), jnp.float32)
    params = make_params(kp, C)

    # row_tile=4 -> 4 MLP row tiles per image, exercising the two-pass (tiled) GRN path.
    out = convnext_v2_like_block_2d(x, params, row_tile=4)
    jax.block_until_ready(out)

    ref = reference_forward(x, params)
    err = float(jnp.max(jnp.abs(out - ref)))
    # Tolerance covers bf16 MXU operands vs the exact f32 reference.
    if not (err < 5e-2):
        raise SystemExit(f"mismatch vs reference: max abs err = {err}")
    print("KERNEL_OK")
</pallas_src>

<mosaic_0001>
module attributes {stable_mosaic.version = 11 : i64} {
  func.func @_block_kernel(%arg0: i32, %arg1: memref<1x16x16x128xf32, #tpu.memory_space<vmem>>, %arg2: memref<25x128xf32, #tpu.memory_space<vmem>>, %arg3: memref<1x128xf32, #tpu.memory_space<vmem>>, %arg4: memref<1x128xf32, #tpu.memory_space<vmem>>, %arg5: memref<1x128xf32, #tpu.memory_space<vmem>>, %arg6: memref<128x128xbf16, #tpu.memory_space<vmem>>, %arg7: memref<1x128xf32, #tpu.memory_space<vmem>>, %arg8: memref<1x128xf32, #tpu.memory_space<vmem>>, %arg9: memref<1x128xf32, #tpu.memory_space<vmem>>, %arg10: memref<128x128xbf16, #tpu.memory_space<vmem>>, %arg11: memref<1x128xf32, #tpu.memory_space<vmem>>, %arg12: memref<1x16x16x128xf32, #tpu.memory_space<vmem>>, %arg13: memref<20x20x128xf32, #tpu.memory_space<vmem>>, %arg14: memref<16x16x128xf32, #tpu.memory_space<vmem>>, %arg15: memref<16x16x128xbf16, #tpu.memory_space<vmem>>) attributes {dimension_semantics = [#tpu.dimension_semantics<parallel>], iteration_bounds = array<i64: 2>, scalar_prefetch = 0 : i64, scratch_operands = 3 : i64, tpu.core_type = #tpu.core_type<tc>, window_params = [{transform_indices = @transform_0, window_bounds = array<i64: 1, 16, 16, 128>}, {pipeline_mode = #tpu.pipeline_mode<synchronous>, transform_indices = @transform_1, window_bounds = array<i64: 25, 128>}, {pipeline_mode = #tpu.pipeline_mode<synchronous>, transform_indices = @transform_2, window_bounds = array<i64: 1, 128>}, {pipeline_mode = #tpu.pipeline_mode<synchronous>, transform_indices = @transform_3, window_bounds = array<i64: 1, 128>}, {pipeline_mode = #tpu.pipeline_mode<synchronous>, transform_indices = @transform_4, window_bounds = array<i64: 1, 128>}, {pipeline_mode = #tpu.pipeline_mode<synchronous>, transform_indices = @transform_5, window_bounds = array<i64: 128, 128>}, {pipeline_mode = #tpu.pipeline_mode<synchronous>, transform_indices = @transform_6, window_bounds = array<i64: 1, 128>}, {pipeline_mode = #tpu.pipeline_mode<synchronous>, transform_indices = @transform_7, window_bounds = array<i64: 1, 128>}, {pipeline_mode = #tpu.pipeline_mode<synchronous>, transform_indices = @transform_8, window_bounds = array<i64: 1, 128>}, {pipeline_mode = #tpu.pipeline_mode<synchronous>, transform_indices = @transform_9, window_bounds = array<i64: 128, 128>}, {pipeline_mode = #tpu.pipeline_mode<synchronous>, transform_indices = @transform_10, window_bounds = array<i64: 1, 128>}, {transform_indices = @transform_11, window_bounds = array<i64: 1, 16, 16, 128>}]} {
    %cst = arith.constant 0.000000e+00 : f32
    %0 = vector.broadcast %cst : f32 to vector<20x20x128xf32>
    %c0 = arith.constant 0 : index
    %c0_0 = arith.constant 0 : index
    %c0_1 = arith.constant 0 : index
    %1 = vector.load %arg13[%c0, %c0_0, %c0_1] : memref<20x20x128xf32, #tpu.memory_space<vmem>>, vector<20x20x128xf32>
    tpu.vector_store %arg13[%c0, %c0_0, %c0_1], %0 {strides = array<i32>} : memref<20x20x128xf32, #tpu.memory_space<vmem>>, vector<20x20x128xf32>,
    %c0_2 = arith.constant 0 : index
    %c0_3 = arith.constant 0 : index
    %c0_4 = arith.constant 0 : index
    %c0_5 = arith.constant 0 : index
    %2 = vector.load %arg1[%c0_2, %c0_3, %c0_4, %c0_5] : memref<1x16x16x128xf32, #tpu.memory_space<vmem>>, vector<1x16x16x128xf32>
    %3 = vector.shape_cast %2 : vector<1x16x16x128xf32> to vector<16x16x128xf32>
    %c2 = arith.constant 2 : index
    %c2_6 = arith.constant 2 : index
    %c0_7 = arith.constant 0 : index
    %4 = vector.load %arg13[%c2, %c2_6, %c0_7] : memref<20x20x128xf32, #tpu.memory_space<vmem>>, vector<16x16x128xf32>
    tpu.vector_store %arg13[%c2, %c2_6, %c0_7], %3 {strides = array<i32>} : memref<20x20x128xf32, #tpu.memory_space<vmem>>, vector<16x16x128xf32>,
    %c0_8 = arith.constant 0 : index
    %c0_9 = arith.constant 0 : index
    %5 = vector.load %arg2[%c0_8, %c0_9] : memref<25x128xf32, #tpu.memory_space<vmem>>, vector<25x128xf32>
    %cst_10 = arith.constant 0.000000e+00 : f32
    %6 = vector.broadcast %cst_10 : f32 to vector<16x16x128xf32>
    %c0_11 = arith.constant 0 : index
    %c0_12 = arith.constant 0 : index
    %c0_13 = arith.constant 0 : index
    %7 = vector.load %arg13[%c0_11, %c0_12, %c0_13] : memref<20x20x128xf32, #tpu.memory_space<vmem>>, vector<20x16x128xf32>
    %8 = vector.extract_strided_slice %7 {offsets = [0, 0, 0], sizes = [16, 16, 128], strides = [1, 1, 1]} : vector<20x16x128xf32> to vector<16x16x128xf32>
    %9 = vector.extract_strided_slice %5 {offsets = [0, 0], sizes = [1, 128], strides = [1, 1]} : vector<25x128xf32> to vector<1x128xf32>
    %10 = vector.shape_cast %9 : vector<1x128xf32> to vector<128xf32>
    %11 = vector.shape_cast %10 : vector<128xf32> to vector<1x1x128xf32>
    %12 = vector.broadcast %11 : vector<1x1x128xf32> to vector<16x16x128xf32>
    %13 = arith.mulf %8, %12 : vector<16x16x128xf32>
    %14 = arith.addf %6, %13 : vector<16x16x128xf32>
    %15 = vector.extract_strided_slice %7 {offsets = [1, 0, 0], sizes = [16, 16, 128], strides = [1, 1, 1]} : vector<20x16x128xf32> to vector<16x16x128xf32>
    %16 = vector.extract_strided_slice %5 {offsets = [5, 0], sizes = [1, 128], strides = [1, 1]} : vector<25x128xf32> to vector<1x128xf32>
    %17 = vector.shape_cast %16 : vector<1x128xf32> to vector<128xf32>
    %18 = vector.shape_cast %17 : vector<128xf32> to vector<1x1x128xf32>
    %19 = vector.broadcast %18 : vector<1x1x128xf32> to vector<16x16x128xf32>
    %20 = arith.mulf %15, %19 : vector<16x16x128xf32>
    %21 = arith.addf %14, %20 : vector<16x16x128xf32>
    %22 = vector.extract_strided_slice %7 {offsets = [2, 0, 0], sizes = [16, 16, 128], strides = [1, 1, 1]} : vector<20x16x128xf32> to vector<16x16x128xf32>
    %23 = vector.extract_strided_slice %5 {offsets = [10, 0], sizes = [1, 128], strides = [1, 1]} : vector<25x128xf32> to vector<1x128xf32>
    %24 = vector.shape_cast %23 : vector<1x128xf32> to vector<128xf32>
    %25 = vector.shape_cast %24 : vector<128xf32> to vector<1x1x128xf32>
    %26 = vector.broadcast %25 : vector<1x1x128xf32> to vector<16x16x128xf32>
    %27 = arith.mulf %22, %26 : vector<16x16x128xf32>
    %28 = arith.addf %21, %27 : vector<16x16x128xf32>
    %29 = vector.extract_strided_slice %7 {offsets = [3, 0, 0], sizes = [16, 16, 128], strides = [1, 1, 1]} : vector<20x16x128xf32> to vector<16x16x128xf32>
    %30 = vector.extract_strided_slice %5 {offsets = [15, 0], sizes = [1, 128], strides = [1, 1]} : vector<25x128xf32> to vector<1x128xf32>
    %31 = vector.shape_cast %30 : vector<1x128xf32> to vector<128xf32>
    %32 = vector.shape_cast %31 : vector<128xf32> to vector<1x1x128xf32>
    %33 = vector.broadcast %32 : vector<1x1x128xf32> to vector<16x16x128xf32>
    %34 = arith.mulf %29, %33 : vector<16x16x128xf32>
    %35 = arith.addf %28, %34 : vector<16x16x128xf32>
    %36 = vector.extract_strided_slice %7 {offsets = [4, 0, 0], sizes = [16, 16, 128], strides = [1, 1, 1]} : vector<20x16x128xf32> to vector<16x16x128xf32>
    %37 = vector.extract_strided_slice %5 {offsets = [20, 0], sizes = [1, 128], strides = [1, 1]} : vector<25x128xf32> to vector<1x128xf32>
    %38 = vector.shape_cast %37 : vector<1x128xf32> to vector<128xf32>
    %39 = vector.shape_cast %38 : vector<128xf32> to vector<1x1x128xf32>
    %40 = vector.broadcast %39 : vector<1x1x128xf32> to vector<16x16x128xf32>
    %41 = arith.mulf %36, %40 : vector<16x16x128xf32>
    %42 = arith.addf %35, %41 : vector<16x16x128xf32>
    %c0_14 = arith.constant 0 : index
    %c1 = arith.constant 1 : index
    %c0_15 = arith.constant 0 : index
    %43 = vector.load %arg13[%c0_14, %c1, %c0_15] : memref<20x20x128xf32, #tpu.memory_space<vmem>>, vector<20x16x128xf32>
    %44 = vector.extract_strided_slice %43 {offsets = [0, 0, 0], sizes = [16, 16, 128], strides = [1, 1, 1]} : vector<20x16x128xf32> to vector<16x16x128xf32>
    %45 = vector.extract_strided_slice %5 {offsets = [1, 0], sizes = [1, 128], strides = [1, 1]} : vector<25x128xf32> to vector<1x128xf32>
    %46 = vector.shape_cast %45 : vector<1x128xf32> to vector<128xf32>
    %47 = vector.shape_cast %46 : vector<128xf32> to vector<1x1x128xf32>
    %48 = vector.broadcast %47 : vector<1x1x128xf32> to vector<16x16x128xf32>
    %49 = arith.mulf %44, %48 : vector<16x16x128xf32>
    %50 = arith.addf %42, %49 : vector<16x16x128xf32>
    %51 = vector.extract_strided_slice %43 {offsets = [1, 0, 0], sizes = [16, 16, 128], strides = [1, 1, 1]} : vector<20x16x128xf32> to vector<16x16x128xf32>
    %52 = vector.extract_strided_slice %5 {offsets = [6, 0], sizes = [1, 128], strides = [1, 1]} : vector<25x128xf32> to vector<1x128xf32>
    %53 = vector.shape_cast %52 : vector<1x128xf32> to vector<128xf32>
    %54 = vector.shape_cast %53 : vector<128xf32> to vector<1x1x128xf32>
    %55 = vector.broadcast %54 : vector<1x1x128xf32> to vector<16x16x128xf32>
    %56 = arith.mulf %51, %55 : vector<16x16x128xf32>
    %57 = arith.addf %50, %56 : vector<16x16x128xf32>
    %58 = vector.extract_strided_slice %43 {offsets = [2, 0, 0], sizes = [16, 16, 128], strides = [1, 1, 1]} : vector<20x16x128xf32> to vector<16x16x128xf32>
    %59 = vector.extract_strided_slice %5 {offsets = [11, 0], sizes = [1, 128], strides = [1, 1]} : vector<25x128xf32> to vector<1x128xf32>
    %60 = vector.shape_cast %59 : vector<1x128xf32> to vector<128xf32>
    %61 = vector.shape_cast %60 : vector<128xf32> to vector<1x1x128xf32>
    %62 = vector.broadcast %61 : vector<1x1x128xf32> to vector<16x16x128xf32>
    %63 = arith.mulf %58, %62 : vector<16x16x128xf32>
    %64 = arith.addf %57, %63 : vector<16x16x128xf32>
    %65 = vector.extract_strided_slice %43 {offsets = [3, 0, 0], sizes = [16, 16, 128], strides = [1, 1, 1]} : vector<20x16x128xf32> to vector<16x16x128xf32>
    %66 = vector.extract_strided_slice %5 {offsets = [16, 0], sizes = [1, 128], strides = [1, 1]} : vector<25x128xf32> to vector<1x128xf32>
    %67 = vector.shape_cast %66 : vector<1x128xf32> to vector<128xf32>
    %68 = vector.shape_cast %67 : vector<128xf32> to vector<1x1x128xf32>
    %69 = vector.broadcast %68 : vector<1x1x128xf32> to vector<16x16x128xf32>
    %70 = arith.mulf %65, %69 : vector<16x16x128xf32>
    %71 = arith.addf %64, %70 : vector<16x16x128xf32>
    %72 = vector.extract_strided_slice %43 {offsets = [4, 0, 0], sizes = [16, 16, 128], strides = [1, 1, 1]} : vector<20x16x128xf32> to vector<16x16x128xf32>
    %73 = vector.extract_strided_slice %5 {offsets = [21, 0], sizes = [1, 128], strides = [1, 1]} : vector<25x128xf32> to vector<1x128xf32>
    %74 = vector.shape_cast %73 : vector<1x128xf32> to vector<128xf32>
    %75 = vector.shape_cast %74 : vector<128xf32> to vector<1x1x128xf32>
    %76 = vector.broadcast %75 : vector<1x1x128xf32> to vector<16x16x128xf32>
    %77 = arith.mulf %72, %76 : vector<16x16x128xf32>
    %78 = arith.addf %71, %77 : vector<16x16x128xf32>
    %c0_16 = arith.constant 0 : index
    %c2_17 = arith.constant 2 : index
    %c0_18 = arith.constant 0 : index
    %79 = vector.load %arg13[%c0_16, %c2_17, %c0_18] : memref<20x20x128xf32, #tpu.memory_space<vmem>>, vector<20x16x128xf32>
    %80 = vector.extract_strided_slice %79 {offsets = [0, 0, 0], sizes = [16, 16, 128], strides = [1, 1, 1]} : vector<20x16x128xf32> to vector<16x16x128xf32>
    %81 = vector.extract_strided_slice %5 {offsets = [2, 0], sizes = [1, 128], strides = [1, 1]} : vector<25x128xf32> to vector<1x128xf32>
    %82 = vector.shape_cast %81 : vector<1x128xf32> to vector<128xf32>
    %83 = vector.shape_cast %82 : vector<128xf32> to vector<1x1x128xf32>
    %84 = vector.broadcast %83 : vector<1x1x128xf32> to vector<16x16x128xf32>
    %85 = arith.mulf %80, %84 : vector<16x16x128xf32>
    %86 = arith.addf %78, %85 : vector<16x16x128xf32>
    %87 = vector.extract_strided_slice %79 {offsets = [1, 0, 0], sizes = [16, 16, 128], strides = [1, 1, 1]} : vector<20x16x128xf32> to vector<16x16x128xf32>
    %88 = vector.extract_strided_slice %5 {offsets = [7, 0], sizes = [1, 128], strides = [1, 1]} : vector<25x128xf32> to vector<1x128xf32>
    %89 = vector.shape_cast %88 : vector<1x128xf32> to vector<128xf32>
    %90 = vector.shape_cast %89 : vector<128xf32> to vector<1x1x128xf32>
    %91 = vector.broadcast %90 : vector<1x1x128xf32> to vector<16x16x128xf32>
    %92 = arith.mulf %87, %91 : vector<16x16x128xf32>
    %93 = arith.addf %86, %92 : vector<16x16x128xf32>
    %94 = vector.extract_strided_slice %79 {offsets = [2, 0, 0], sizes = [16, 16, 128], strides = [1, 1, 1]} : vector<20x16x128xf32> to vector<16x16x128xf32>
    %95 = vector.extract_strided_slice %5 {offsets = [12, 0], sizes = [1, 128], strides = [1, 1]} : vector<25x128xf32> to vector<1x128xf32>
    %96 = vector.shape_cast %95 : vector<1x128xf32> to vector<128xf32>
    %97 = vector.shape_cast %96 : vector<128xf32> to vector<1x1x128xf32>
    %98 = vector.broadcast %97 : vector<1x1x128xf32> to vector<16x16x128xf32>
    %99 = arith.mulf %94, %98 : vector<16x16x128xf32>
    %100 = arith.addf %93, %99 : vector<16x16x128xf32>
    %101 = vector.extract_strided_slice %79 {offsets = [3, 0, 0], sizes = [16, 16, 128], strides = [1, 1, 1]} : vector<20x16x128xf32> to vector<16x16x128xf32>
    %102 = vector.extract_strided_slice %5 {offsets = [17, 0], sizes = [1, 128], strides = [1, 1]} : vector<25x128xf32> to vector<1x128xf32>
    %103 = vector.shape_cast %102 : vector<1x128xf32> to vector<128xf32>
    %104 = vector.shape_cast %103 : vector<128xf32> to vector<1x1x128xf32>
    %105 = vector.broadcast %104 : vector<1x1x128xf32> to vector<16x16x128xf32>
    %106 = arith.mulf %101, %105 : vector<16x16x128xf32>
    %107 = arith.addf %100, %106 : vector<16x16x128xf32>
    %108 = vector.extract_strided_slice %79 {offsets = [4, 0, 0], sizes = [16, 16, 128], strides = [1, 1, 1]} : vector<20x16x128xf32> to vector<16x16x128xf32>
    %109 = vector.extract_strided_slice %5 {offsets = [22, 0], sizes = [1, 128], strides = [1, 1]} : vector<25x128xf32> to vector<1x128xf32>
    %110 = vector.shape_cast %109 : vector<1x128xf32> to vector<128xf32>
    %111 = vector.shape_cast %110 : vector<128xf32> to vector<1x1x128xf32>
    %112 = vector.broadcast %111 : vector<1x1x128xf32> to vector<16x16x128xf32>
    %113 = arith.mulf %108, %112 : vector<16x16x128xf32>
    %114 = arith.addf %107, %113 : vector<16x16x128xf32>
    %c0_19 = arith.constant 0 : index
    %c3 = arith.constant 3 : index
    %c0_20 = arith.constant 0 : index
    %115 = vector.load %arg13[%c0_19, %c3, %c0_20] : memref<20x20x128xf32, #tpu.memory_space<vmem>>, vector<20x16x128xf32>
    %116 = vector.extract_strided_slice %115 {offsets = [0, 0, 0], sizes = [16, 16, 128], strides = [1, 1, 1]} : vector<20x16x128xf32> to vector<16x16x128xf32>
    %117 = vector.extract_strided_slice %5 {offsets = [3, 0], sizes = [1, 128], strides = [1, 1]} : vector<25x128xf32> to vector<1x128xf32>
    %118 = vector.shape_cast %117 : vector<1x128xf32> to vector<128xf32>
    %119 = vector.shape_cast %118 : vector<128xf32> to vector<1x1x128xf32>
    %120 = vector.broadcast %119 : vector<1x1x128xf32> to vector<16x16x128xf32>
    %121 = arith.mulf %116, %120 : vector<16x16x128xf32>
    %122 = arith.addf %114, %121 : vector<16x16x128xf32>
    %123 = vector.extract_strided_slice %115 {offsets = [1, 0, 0], sizes = [16, 16, 128], strides = [1, 1, 1]} : vector<20x16x128xf32> to vector<16x16x128xf32>
    %124 = vector.extract_strided_slice %5 {offsets = [8, 0], sizes = [1, 128], strides = [1, 1]} : vector<25x128xf32> to vector<1x128xf32>
    %125 = vector.shape_cast %124 : vector<1x128xf32> to vector<128xf32>
    %126 = vector.shape_cast %125 : vector<128xf32> to vector<1x1x128xf32>
    %127 = vector.broadcast %126 : vector<1x1x128xf32> to vector<16x16x128xf32>
    %128 = arith.mulf %123, %127 : vector<16x16x128xf32>
    %129 = arith.addf %122, %128 : vector<16x16x128xf32>
    %130 = vector.extract_strided_slice %115 {offsets = [2, 0, 0], sizes = [16, 16, 128], strides = [1, 1, 1]} : vector<20x16x128xf32> to vector<16x16x128xf32>
    %131 = vector.extract_strided_slice %5 {offsets = [13, 0], sizes = [1, 128], strides = [1, 1]} : vector<25x128xf32> to vector<1x128xf32>
    %132 = vector.shape_cast %131 : vector<1x128xf32> to vector<128xf32>
    %133 = vector.shape_cast %132 : vector<128xf32> to vector<1x1x128xf32>
    %134 = vector.broadcast %133 : vector<1x1x128xf32> to vector<16x16x128xf32>
    %135 = arith.mulf %130, %134 : vector<16x16x128xf32>
    %136 = arith.addf %129, %135 : vector<16x16x128xf32>
    %137 = vector.extract_strided_slice %115 {offsets = [3, 0, 0], sizes = [16, 16, 128], strides = [1, 1, 1]} : vector<20x16x128xf32> to vector<16x16x128xf32>
    %138 = vector.extract_strided_slice %5 {offsets = [18, 0], sizes = [1, 128], strides = [1, 1]} : vector<25x128xf32> to vector<1x128xf32>
    %139 = vector.shape_cast %138 : vector<1x128xf32> to vector<128xf32>
    %140 = vector.shape_cast %139 : vector<128xf32> to vector<1x1x128xf32>
    %141 = vector.broadcast %140 : vector<1x1x128xf32> to vector<16x16x128xf32>
    %142 = arith.mulf %137, %141 : vector<16x16x128xf32>
    %143 = arith.addf %136, %142 : vector<16x16x128xf32>
    %144 = vector.extract_strided_slice %115 {offsets = [4, 0, 0], sizes = [16, 16, 128], strides = [1, 1, 1]} : vector<20x16x128xf32> to vector<16x16x128xf32>
    %145 = vector.extract_strided_slice %5 {offsets = [23, 0], sizes = [1, 128], strides = [1, 1]} : vector<25x128xf32> to vector<1x128xf32>
    %146 = vector.shape_cast %145 : vector<1x128xf32> to vector<128xf32>
    %147 = vector.shape_cast %146 : vector<128xf32> to vector<1x1x128xf32>
    %148 = vector.broadcast %147 : vector<1x1x128xf32> to vector<16x16x128xf32>
    %149 = arith.mulf %144, %148 : vector<16x16x128xf32>
    %150 = arith.addf %143, %149 : vector<16x16x128xf32>
    %c0_21 = arith.constant 0 : index
    %c4 = arith.constant 4 : index
    %c0_22 = arith.constant 0 : index
    %151 = vector.load %arg13[%c0_21, %c4, %c0_22] : memref<20x20x128xf32, #tpu.memory_space<vmem>>, vector<20x16x128xf32>
    %152 = vector.extract_strided_slice %151 {offsets = [0, 0, 0], sizes = [16, 16, 128], strides = [1, 1, 1]} : vector<20x16x128xf32> to vector<16x16x128xf32>
    %153 = vector.extract_strided_slice %5 {offsets = [4, 0], sizes = [1, 128], strides = [1, 1]} : vector<25x128xf32> to vector<1x128xf32>
    %154 = vector.shape_cast %153 : vector<1x128xf32> to vector<128xf32>
    %155 = vector.shape_cast %154 : vector<128xf32> to vector<1x1x128xf32>
    %156 = vector.broadcast %155 : vector<1x1x128xf32> to vector<16x16x128xf32>
    %157 = arith.mulf %152, %156 : vector<16x16x128xf32>
    %158 = arith.addf %150, %157 : vector<16x16x128xf32>
    %159 = vector.extract_strided_slice %151 {offsets = [1, 0, 0], sizes = [16, 16, 128], strides = [1, 1, 1]} : vector<20x16x128xf32> to vector<16x16x128xf32>
    %160 = vector.extract_strided_slice %5 {offsets = [9, 0], sizes = [1, 128], strides = [1, 1]} : vector<25x128xf32> to vector<1x128xf32>
    %161 = vector.shape_cast %160 : vector<1x128xf32> to vector<128xf32>
    %162 = vector.shape_cast %161 : vector<128xf32> to vector<1x1x128xf32>
    %163 = vector.broadcast %162 : vector<1x1x128xf32> to vector<16x16x128xf32>
    %164 = arith.mulf %159, %163 : vector<16x16x128xf32>
    %165 = arith.addf %158, %164 : vector<16x16x128xf32>
    %166 = vector.extract_strided_slice %151 {offsets = [2, 0, 0], sizes = [16, 16, 128], strides = [1, 1, 1]} : vector<20x16x128xf32> to vector<16x16x128xf32>
    %167 = vector.extract_strided_slice %5 {offsets = [14, 0], sizes = [1, 128], strides = [1, 1]} : vector<25x128xf32> to vector<1x128xf32>
    %168 = vector.shape_cast %167 : vector<1x128xf32> to vector<128xf32>
    %169 = vector.shape_cast %168 : vector<128xf32> to vector<1x1x128xf32>
    %170 = vector.broadcast %169 : vector<1x1x128xf32> to vector<16x16x128xf32>
    %171 = arith.mulf %166, %170 : vector<16x16x128xf32>
    %172 = arith.addf %165, %171 : vector<16x16x128xf32>
    %173 = vector.extract_strided_slice %151 {offsets = [3, 0, 0], sizes = [16, 16, 128], strides = [1, 1, 1]} : vector<20x16x128xf32> to vector<16x16x128xf32>
    %174 = vector.extract_strided_slice %5 {offsets = [19, 0], sizes = [1, 128], strides = [1, 1]} : vector<25x128xf32> to vector<1x128xf32>
    %175 = vector.shape_cast %174 : vector<1x128xf32> to vector<128xf32>
    %176 = vector.shape_cast %175 : vector<128xf32> to vector<1x1x128xf32>
    %177 = vector.broadcast %176 : vector<1x1x128xf32> to vector<16x16x128xf32>
    %178 = arith.mulf %173, %177 : vector<16x16x128xf32>
    %179 = arith.addf %172, %178 : vector<16x16x128xf32>
    %180 = vector.extract_strided_slice %151 {offsets = [4, 0, 0], sizes = [16, 16, 128], strides = [1, 1, 1]} : vector<20x16x128xf32> to vector<16x16x128xf32>
    %181 = vector.extract_strided_slice %5 {offsets = [24, 0], sizes = [1, 128], strides = [1, 1]} : vector<25x128xf32> to vector<1x128xf32>
    %182 = vector.shape_cast %181 : vector<1x128xf32> to vector<128xf32>
    %183 = vector.shape_cast %182 : vector<128xf32> to vector<1x1x128xf32>
    %184 = vector.broadcast %183 : vector<1x1x128xf32> to vector<16x16x128xf32>
    %185 = arith.mulf %180, %184 : vector<16x16x128xf32>
    %186 = arith.addf %179, %185 : vector<16x16x128xf32>
    %c0_23 = arith.constant 0 : index
    %c0_24 = arith.constant 0 : index
    %187 = vector.load %arg3[%c0_23, %c0_24] : memref<1x128xf32, #tpu.memory_space<vmem>>, vector<1x128xf32>
    %188 = vector.shape_cast %187 : vector<1x128xf32> to vector<1x1x128xf32>
    %189 = vector.broadcast %188 : vector<1x1x128xf32> to vector<16x16x128xf32>
    %190 = arith.addf %186, %189 : vector<16x16x128xf32>
    %cst_25 = arith.constant dense<0.000000e+00> : vector<16x128xf32>
    %191 = vector.multi_reduction <add>, %190, %cst_25 [0] : vector<16x16x128xf32> to vector<16x128xf32>
    %192 = vector.shape_cast %191 : vector<16x128xf32> to vector<1x16x128xf32>
    %cst_26 = arith.constant 1.600000e+01 : f32
    %193 = vector.broadcast %cst_26 : f32 to vector<1x16x128xf32>
    %194 = arith.divf %192, %193 : vector<1x16x128xf32>
    %195 = vector.broadcast %194 : vector<1x16x128xf32> to vector<16x16x128xf32>
    %196 = arith.subf %190, %195 : vector<16x16x128xf32>
    %197 = arith.mulf %196, %196 : vector<16x16x128xf32>
    %cst_27 = arith.constant dense<0.000000e+00> : vector<16x128xf32>
    %198 = vector.multi_reduction <add>, %197, %cst_27 [0] : vector<16x16x128xf32> to vector<16x128xf32>
    %199 = vector.shape_cast %198 : vector<16x128xf32> to vector<1x16x128xf32>
    %cst_28 = arith.constant 1.600000e+01 : f32
    %200 = vector.broadcast %cst_28 : f32 to vector<1x16x128xf32>
    %201 = arith.divf %199, %200 : vector<1x16x128xf32>
    %202 = vector.broadcast %194 : vector<1x16x128xf32> to vector<16x16x128xf32>
    %203 = arith.subf %190, %202 : vector<16x16x128xf32>
    %cst_29 = arith.constant 9.99999997E-7 : f32
    %204 = vector.broadcast %cst_29 : f32 to vector<1x16x128xf32>
    %205 = arith.addf %201, %204 : vector<1x16x128xf32>
    %206 = math.rsqrt %205 : vector<1x16x128xf32>
    %207 = vector.broadcast %206 : vector<1x16x128xf32> to vector<16x16x128xf32>
    %208 = arith.mulf %203, %207 : vector<16x16x128xf32>
    %c0_30 = arith.constant 0 : index
    %c0_31 = arith.constant 0 : index
    %209 = vector.load %arg4[%c0_30, %c0_31] : memref<1x128xf32, #tpu.memory_space<vmem>>, vector<1x128xf32>
    %210 = vector.shape_cast %209 : vector<1x128xf32> to vector<1x1x128xf32>
    %211 = vector.broadcast %210 : vector<1x1x128xf32> to vector<16x16x128xf32>
    %212 = arith.mulf %211, %208 : vector<16x16x128xf32>
    %c0_32 = arith.constant 0 : index
    %c0_33 = arith.constant 0 : index
    %213 = vector.load %arg5[%c0_32, %c0_33] : memref<1x128xf32, #tpu.memory_space<vmem>>, vector<1x128xf32>
    %214 = vector.shape_cast %213 : vector<1x128xf32> to vector<1x1x128xf32>
    %215 = vector.broadcast %214 : vector<1x1x128xf32> to vector<16x16x128xf32>
    %216 = arith.addf %212, %215 : vector<16x16x128xf32>
    %c0_34 = arith.constant 0 : index
    %c0_35 = arith.constant 0 : index
    %c0_36 = arith.constant 0 : index
    %217 = vector.load %arg14[%c0_34, %c0_35, %c0_36] : memref<16x16x128xf32, #tpu.memory_space<vmem>>, vector<16x16x128xf32>
    tpu.vector_store %arg14[%c0_34, %c0_35, %c0_36], %216 {strides = array<i32>} : memref<16x16x128xf32, #tpu.memory_space<vmem>>, vector<16x16x128xf32>,
    %c0_37 = arith.constant 0 : index
    %c0_38 = arith.constant 0 : index
    %218 = vector.load %arg6[%c0_37, %c0_38] : memref<128x128xbf16, #tpu.memory_space<vmem>>, vector<128x128xbf16>
    %c0_39 = arith.constant 0 : index
    %c0_40 = arith.constant 0 : index
    %219 = vector.load %arg7[%c0_39, %c0_40] : memref<1x128xf32, #tpu.memory_space<vmem>>, vector<1x128xf32>
    %cst_41 = arith.constant 0.000000e+00 : f32
    %220 = vector.broadcast %cst_41 : f32 to vector<1x128xf32>
    %c0_i32 = arith.constant 0 : i32
    %c4_i32 = arith.constant 4 : i32
    %221 = arith.muli %c0_i32, %c4_i32 : i32
    %222 = arith.index_cast %221 : i32 to index
    %c0_42 = arith.constant 0 : index
    %c0_43 = arith.constant 0 : index
    %223 = vector.load %arg14[%222, %c0_42, %c0_43] : memref<16x16x128xf32, #tpu.memory_space<vmem>>, vector<4x16x128xf32>
    %224 = vector.shape_cast %223 : vector<4x16x128xf32> to vector<64x128xf32>
    %225 = arith.truncf %224 : vector<64x128xf32> to vector<64x128xbf16>
    %cst_44 = arith.constant dense<0.000000e+00> : vector<64x128xf32>
    %226 = tpu.matmul %225, %218, %cst_44 {dimension_numbers = #tpu.dot_dimension_numbers<[1], [0], [0], [1], [0, 0, 1, 1], [], []>} : vector<64x128xbf16>, vector<128x128xbf16>, vector<64x128xf32> -> vector<64x128xf32>
    %227 = vector.broadcast %219 : vector<1x128xf32> to vector<64x128xf32>
    %228 = arith.addf %226, %227 : vector<64x128xf32>
    %cst_45 = arith.constant 5.000000e-01 : f32
    %229 = vector.broadcast %cst_45 : f32 to vector<64x128xf32>
    %230 = arith.mulf %229, %228 : vector<64x128xf32>
    %cst_46 = arith.constant 0.707106769 : f32
    %231 = vector.broadcast %cst_46 : f32 to vector<64x128xf32>
    %232 = arith.mulf %228, %231 : vector<64x128xf32>
    %233 = math.absf %232 : vector<64x128xf32>
    %cst_47 = arith.constant 0.327591091 : f32
    %234 = vector.broadcast %cst_47 : f32 to vector<64x128xf32>
    %235 = arith.mulf %234, %233 : vector<64x128xf32>
    %cst_48 = arith.constant 1.000000e+00 : f32
    %236 = vector.broadcast %cst_48 : f32 to vector<64x128xf32>
    %237 = arith.addf %236, %235 : vector<64x128xf32>
    %cst_49 = arith.constant 1.000000e+00 : f32
    %238 = vector.broadcast %cst_49 : f32 to vector<64x128xf32>
    %239 = arith.divf %238, %237 : vector<64x128xf32>
    %cst_50 = arith.constant 1.06140542 : f32
    %240 = vector.broadcast %cst_50 : f32 to vector<64x128xf32>
    %241 = arith.mulf %240, %239 : vector<64x128xf32>
    %cst_51 = arith.constant -1.45315206 : f32
    %242 = vector.broadcast %cst_51 : f32 to vector<64x128xf32>
    %243 = arith.addf %241, %242 : vector<64x128xf32>
    %244 = arith.mulf %243, %239 : vector<64x128xf32>
    %cst_52 = arith.constant 1.42141378 : f32
    %245 = vector.broadcast %cst_52 : f32 to vector<64x128xf32>
    %246 = arith.addf %244, %245 : vector<64x128xf32>
    %247 = arith.mulf %246, %239 : vector<64x128xf32>
    %cst_53 = arith.constant -0.284496725 : f32
    %248 = vector.broadcast %cst_53 : f32 to vector<64x128xf32>
    %249 = arith.addf %247, %248 : vector<64x128xf32>
    %250 = arith.mulf %249, %239 : vector<64x128xf32>
    %cst_54 = arith.constant 0.254829586 : f32
    %251 = vector.broadcast %cst_54 : f32 to vector<64x128xf32>
    %252 = arith.addf %250, %251 : vector<64x128xf32>
    %253 = arith.mulf %252, %239 : vector<64x128xf32>
    %cst_55 = arith.constant 0.000000e+00 : f32
    %254 = vector.broadcast %cst_55 : f32 to vector<64x128xf32>
    %255 = arith.subf %254, %233 : vector<64x128xf32>
    %256 = arith.mulf %255, %233 : vector<64x128xf32>
    %257 = math.exp %256 : vector<64x128xf32>
    %258 = arith.mulf %253, %257 : vector<64x128xf32>
    %cst_56 = arith.constant 1.000000e+00 : f32
    %259 = vector.broadcast %cst_56 : f32 to vector<64x128xf32>
    %260 = arith.subf %259, %258 : vector<64x128xf32>
    %cst_57 = arith.constant 0.000000e+00 : f32
    %261 = vector.broadcast %cst_57 : f32 to vector<64x128xf32>
    %262 = arith.cmpf olt, %232, %261 : vector<64x128xf32>
    %cst_58 = arith.constant 0.000000e+00 : f32
    %263 = vector.broadcast %cst_58 : f32 to vector<64x128xf32>
    %264 = arith.subf %263, %260 : vector<64x128xf32>
    %265 = arith.select %262, %264, %260 : vector<64x128xi1>, vector<64x128xf32>
    %cst_59 = arith.constant 1.000000e+00 : f32
    %266 = vector.broadcast %cst_59 : f32 to vector<64x128xf32>
    %267 = arith.addf %266, %265 : vector<64x128xf32>
    %268 = arith.mulf %230, %267 : vector<64x128xf32>
    %269 = arith.mulf %268, %268 : vector<64x128xf32>
    %cst_60 = arith.constant dense<0.000000e+00> : vector<128xf32>
    %270 = vector.multi_reduction <add>, %269, %cst_60 [0] : vector<64x128xf32> to vector<128xf32>
    %271 = vector.shape_cast %270 : vector<128xf32> to vector<1x128xf32>
    %272 = arith.addf %220, %271 : vector<1x128xf32>
    %273 = vector.shape_cast %268 : vector<64x128xf32> to vector<4x16x128xf32>
    %274 = arith.truncf %273 : vector<4x16x128xf32> to vector<4x16x128xbf16>
    %275 = arith.index_cast %221 : i32 to index
    %c0_61 = arith.constant 0 : index
    %c0_62 = arith.constant 0 : index
    %276 = vector.load %arg15[%275, %c0_61, %c0_62] : memref<16x16x128xbf16, #tpu.memory_space<vmem>>, vector<4x16x128xbf16>
    tpu.vector_store %arg15[%275, %c0_61, %c0_62], %274 {strides = array<i32>} : memref<16x16x128xbf16, #tpu.memory_space<vmem>>, vector<4x16x128xbf16>,
    %c1_i32 = arith.constant 1 : i32
    %c4_i32_63 = arith.constant 4 : i32
    %277 = arith.muli %c1_i32, %c4_i32_63 : i32
    %278 = arith.index_cast %277 : i32 to index
    %c0_64 = arith.constant 0 : index
    %c0_65 = arith.constant 0 : index
    %279 = vector.load %arg14[%278, %c0_64, %c0_65] : memref<16x16x128xf32, #tpu.memory_space<vmem>>, vector<4x16x128xf32>
    %280 = vector.shape_cast %279 : vector<4x16x128xf32> to vector<64x128xf32>
    %281 = arith.truncf %280 : vector<64x128xf32> to vector<64x128xbf16>
    %cst_66 = arith.constant dense<0.000000e+00> : vector<64x128xf32>
    %282 = tpu.matmul %281, %218, %cst_66 {dimension_numbers = #tpu.dot_dimension_numbers<[1], [0], [0], [1], [0, 0, 1, 1], [], []>} : vector<64x128xbf16>, vector<128x128xbf16>, vector<64x128xf32> -> vector<64x128xf32>
    %283 = vector.broadcast %219 : vector<1x128xf32> to vector<64x128xf32>
    %284 = arith.addf %282, %283 : vector<64x128xf32>
    %cst_67 = arith.constant 5.000000e-01 : f32
    %285 = vector.broadcast %cst_67 : f32 to vector<64x128xf32>
    %286 = arith.mulf %285, %284 : vector<64x128xf32>
    %cst_68 = arith.constant 0.707106769 : f32
    %287 = vector.broadcast %cst_68 : f32 to vector<64x128xf32>
    %288 = arith.mulf %284, %287 : vector<64x128xf32>
    %289 = math.absf %288 : vector<64x128xf32>
    %cst_69 = arith.constant 0.327591091 : f32
    %290 = vector.broadcast %cst_69 : f32 to vector<64x128xf32>
    %291 = arith.mulf %290, %289 : vector<64x128xf32>
    %cst_70 = arith.constant 1.000000e+00 : f32
    %292 = vector.broadcast %cst_70 : f32 to vector<64x128xf32>
    %293 = arith.addf %292, %291 : vector<64x128xf32>
    %cst_71 = arith.constant 1.000000e+00 : f32
    %294 = vector.broadcast %cst_71 : f32 to vector<64x128xf32>
    %295 = arith.divf %294, %293 : vector<64x128xf32>
    %cst_72 = arith.constant 1.06140542 : f32
    %296 = vector.broadcast %cst_72 : f32 to vector<64x128xf32>
    %297 = arith.mulf %296, %295 : vector<64x128xf32>
    %cst_73 = arith.constant -1.45315206 : f32
    %298 = vector.broadcast %cst_73 : f32 to vector<64x128xf32>
    %299 = arith.addf %297, %298 : vector<64x128xf32>
    %300 = arith.mulf %299, %295 : vector<64x128xf32>
    %cst_74 = arith.constant 1.42141378 : f32
    %301 = vector.broadcast %cst_74 : f32 to vector<64x128xf32>
    %302 = arith.addf %300, %301 : vector<64x128xf32>
    %303 = arith.mulf %302, %295 : vector<64x128xf32>
    %cst_75 = arith.constant -0.284496725 : f32
    %304 = vector.broadcast %cst_75 : f32 to vector<64x128xf32>
    %305 = arith.addf %303, %304 : vector<64x128xf32>
    %306 = arith.mulf %305, %295 : vector<64x128xf32>
    %cst_76 = arith.constant 0.254829586 : f32
    %307 = vector.broadcast %cst_76 : f32 to vector<64x128xf32>
    %308 = arith.addf %306, %307 : vector<64x128xf32>
    %309 = arith.mulf %308, %295 : vector<64x128xf32>
    %cst_77 = arith.constant 0.000000e+00 : f32
    %310 = vector.broadcast %cst_77 : f32 to vector<64x128xf32>
    %311 = arith.subf %310, %289 : vector<64x128xf32>
    %312 = arith.mulf %311, %289 : vector<64x128xf32>
    %313 = math.exp %312 : vector<64x128xf32>
    %314 = arith.mulf %309, %313 : vector<64x128xf32>
    %cst_78 = arith.constant 1.000000e+00 : f32
    %315 = vector.broadcast %cst_78 : f32 to vector<64x128xf32>
    %316 = arith.subf %315, %314 : vector<64x128xf32>
    %cst_79 = arith.constant 0.000000e+00 : f32
    %317 = vector.broadcast %cst_79 : f32 to vector<64x128xf32>
    %318 = arith.cmpf olt, %288, %317 : vector<64x128xf32>
    %cst_80 = arith.constant 0.000000e+00 : f32
    %319 = vector.broadcast %cst_80 : f32 to vector<64x128xf32>
    %320 = arith.subf %319, %316 : vector<64x128xf32>
    %321 = arith.select %318, %320, %316 : vector<64x128xi1>, vector<64x128xf32>
    %cst_81 = arith.constant 1.000000e+00 : f32
    %322 = vector.broadcast %cst_81 : f32 to vector<64x128xf32>
    %323 = arith.addf %322, %321 : vector<64x128xf32>
    %324 = arith.mulf %286, %323 : vector<64x128xf32>
    %325 = arith.mulf %324, %324 : vector<64x128xf32>
    %cst_82 = arith.constant dense<0.000000e+00> : vector<128xf32>
    %326 = vector.multi_reduction <add>, %325, %cst_82 [0] : vector<64x128xf32> to vector<128xf32>
    %327 = vector.shape_cast %326 : vector<128xf32> to vector<1x128xf32>
    %328 = arith.addf %272, %327 : vector<1x128xf32>
    %329 = vector.shape_cast %324 : vector<64x128xf32> to vector<4x16x128xf32>
    %330 = arith.truncf %329 : vector<4x16x128xf32> to vector<4x16x128xbf16>
    %331 = arith.index_cast %277 : i32 to index
    %c0_83 = arith.constant 0 : index
    %c0_84 = arith.constant 0 : index
    %332 = vector.load %arg15[%331, %c0_83, %c0_84] : memref<16x16x128xbf16, #tpu.memory_space<vmem>>, vector<4x16x128xbf16>
    tpu.vector_store %arg15[%331, %c0_83, %c0_84], %330 {strides = array<i32>} : memref<16x16x128xbf16, #tpu.memory_space<vmem>>, vector<4x16x128xbf16>,
    %c2_i32 = arith.constant 2 : i32
    %c4_i32_85 = arith.constant 4 : i32
    %333 = arith.muli %c2_i32, %c4_i32_85 : i32
    %334 = arith.index_cast %333 : i32 to index
    %c0_86 = arith.constant 0 : index
    %c0_87 = arith.constant 0 : index
    %335 = vector.load %arg14[%334, %c0_86, %c0_87] : memref<16x16x128xf32, #tpu.memory_space<vmem>>, vector<4x16x128xf32>
    %336 = vector.shape_cast %335 : vector<4x16x128xf32> to vector<64x128xf32>
    %337 = arith.truncf %336 : vector<64x128xf32> to vector<64x128xbf16>
    %cst_88 = arith.constant dense<0.000000e+00> : vector<64x128xf32>
    %338 = tpu.matmul %337, %218, %cst_88 {dimension_numbers = #tpu.dot_dimension_numbers<[1], [0], [0], [1], [0, 0, 1, 1], [], []>} : vector<64x128xbf16>, vector<128x128xbf16>, vector<64x128xf32> -> vector<64x128xf32>
    %339 = vector.broadcast %219 : vector<1x128xf32> to vector<64x128xf32>
    %340 = arith.addf %338, %339 : vector<64x128xf32>
    %cst_89 = arith.constant 5.000000e-01 : f32
    %341 = vector.broadcast %cst_89 : f32 to vector<64x128xf32>
    %342 = arith.mulf %341, %340 : vector<64x128xf32>
    %cst_90 = arith.constant 0.707106769 : f32
    %343 = vector.broadcast %cst_90 : f32 to vector<64x128xf32>
    %344 = arith.mulf %340, %343 : vector<64x128xf32>
    %345 = math.absf %344 : vector<64x128xf32>
    %cst_91 = arith.constant 0.327591091 : f32
    %346 = vector.broadcast %cst_91 : f32 to vector<64x128xf32>
    %347 = arith.mulf %346, %345 : vector<64x128xf32>
    %cst_92 = arith.constant 1.000000e+00 : f32
    %348 = vector.broadcast %cst_92 : f32 to vector<64x128xf32>
    %349 = arith.addf %348, %347 : vector<64x128xf32>
    %cst_93 = arith.constant 1.000000e+00 : f32
    %350 = vector.broadcast %cst_93 : f32 to vector<64x128xf32>
    %351 = arith.divf %350, %349 : vector<64x128xf32>
    %cst_94 = arith.constant 1.06140542 : f32
    %352 = vector.broadcast %cst_94 : f32 to vector<64x128xf32>
    %353 = arith.mulf %352, %351 : vector<64x128xf32>
    %cst_95 = arith.constant -1.45315206 : f32
    %354 = vector.broadcast %cst_95 : f32 to vector<64x128xf32>
    %355 = arith.addf %353, %354 : vector<64x128xf32>
    %356 = arith.mulf %355, %351 : vector<64x128xf32>
    %cst_96 = arith.constant 1.42141378 : f32
    %357 = vector.broadcast %cst_96 : f32 to vector<64x128xf32>
    %358 = arith.addf %356, %357 : vector<64x128xf32>
    %359 = arith.mulf %358, %351 : vector<64x128xf32>
    %cst_97 = arith.constant -0.284496725 : f32
    %360 = vector.broadcast %cst_97 : f32 to vector<64x128xf32>
    %361 = arith.addf %359, %360 : vector<64x128xf32>
    %362 = arith.mulf %361, %351 : vector<64x128xf32>
    %cst_98 = arith.constant 0.254829586 : f32
    %363 = vector.broadcast %cst_98 : f32 to vector<64x128xf32>
    %364 = arith.addf %362, %363 : vector<64x128xf32>
    %365 = arith.mulf %364, %351 : vector<64x128xf32>
    %cst_99 = arith.constant 0.000000e+00 : f32
    %366 = vector.broadcast %cst_99 : f32 to vector<64x128xf32>
    %367 = arith.subf %366, %345 : vector<64x128xf32>
    %368 = arith.mulf %367, %345 : vector<64x128xf32>
    %369 = math.exp %368 : vector<64x128xf32>
    %370 = arith.mulf %365, %369 : vector<64x128xf32>
    %cst_100 = arith.constant 1.000000e+00 : f32
    %371 = vector.broadcast %cst_100 : f32 to vector<64x128xf32>
    %372 = arith.subf %371, %370 : vector<64x128xf32>
    %cst_101 = arith.constant 0.000000e+00 : f32
    %373 = vector.broadcast %cst_101 : f32 to vector<64x128xf32>
    %374 = arith.cmpf olt, %344, %373 : vector<64x128xf32>
    %cst_102 = arith.constant 0.000000e+00 : f32
    %375 = vector.broadcast %cst_102 : f32 to vector<64x128xf32>
    %376 = arith.subf %375, %372 : vector<64x128xf32>
    %377 = arith.select %374, %376, %372 : vector<64x128xi1>, vector<64x128xf32>
    %cst_103 = arith.constant 1.000000e+00 : f32
    %378 = vector.broadcast %cst_103 : f32 to vector<64x128xf32>
    %379 = arith.addf %378, %377 : vector<64x128xf32>
    %380 = arith.mulf %342, %379 : vector<64x128xf32>
    %381 = arith.mulf %380, %380 : vector<64x128xf32>
    %cst_104 = arith.constant dense<0.000000e+00> : vector<128xf32>
    %382 = vector.multi_reduction <add>, %381, %cst_104 [0] : vector<64x128xf32> to vector<128xf32>
    %383 = vector.shape_cast %382 : vector<128xf32> to vector<1x128xf32>
    %384 = arith.addf %328, %383 : vector<1x128xf32>
    %385 = vector.shape_cast %380 : vector<64x128xf32> to vector<4x16x128xf32>
    %386 = arith.truncf %385 : vector<4x16x128xf32> to vector<4x16x128xbf16>
    %387 = arith.index_cast %333 : i32 to index
    %c0_105 = arith.constant 0 : index
    %c0_106 = arith.constant 0 : index
    %388 = vector.load %arg15[%387, %c0_105, %c0_106] : memref<16x16x128xbf16, #tpu.memory_space<vmem>>, vector<4x16x128xbf16>
    tpu.vector_store %arg15[%387, %c0_105, %c0_106], %386 {strides = array<i32>} : memref<16x16x128xbf16, #tpu.memory_space<vmem>>, vector<4x16x128xbf16>,
    %c3_i32 = arith.constant 3 : i32
    %c4_i32_107 = arith.constant 4 : i32
    %389 = arith.muli %c3_i32, %c4_i32_107 : i32
    %390 = arith.index_cast %389 : i32 to index
    %c0_108 = arith.constant 0 : index
    %c0_109 = arith.constant 0 : index
    %391 = vector.load %arg14[%390, %c0_108, %c0_109] : memref<16x16x128xf32, #tpu.memory_space<vmem>>, vector<4x16x128xf32>
    %392 = vector.shape_cast %391 : vector<4x16x128xf32> to vector<64x128xf32>
    %393 = arith.truncf %392 : vector<64x128xf32> to vector<64x128xbf16>
    %cst_110 = arith.constant dense<0.000000e+00> : vector<64x128xf32>
    %394 = tpu.matmul %393, %218, %cst_110 {dimension_numbers = #tpu.dot_dimension_numbers<[1], [0], [0], [1], [0, 0, 1, 1], [], []>} : vector<64x128xbf16>, vector<128x128xbf16>, vector<64x128xf32> -> vector<64x128xf32>
    %395 = vector.broadcast %219 : vector<1x128xf32> to vector<64x128xf32>
    %396 = arith.addf %394, %395 : vector<64x128xf32>
    %cst_111 = arith.constant 5.000000e-01 : f32
    %397 = vector.broadcast %cst_111 : f32 to vector<64x128xf32>
    %398 = arith.mulf %397, %396 : vector<64x128xf32>
    %cst_112 = arith.constant 0.707106769 : f32
    %399 = vector.broadcast %cst_112 : f32 to vector<64x128xf32>
    %400 = arith.mulf %396, %399 : vector<64x128xf32>
    %401 = math.absf %400 : vector<64x128xf32>
    %cst_113 = arith.constant 0.327591091 : f32
    %402 = vector.broadcast %cst_113 : f32 to vector<64x128xf32>
    %403 = arith.mulf %402, %401 : vector<64x128xf32>
    %cst_114 = arith.constant 1.000000e+00 : f32
    %404 = vector.broadcast %cst_114 : f32 to vector<64x128xf32>
    %405 = arith.addf %404, %403 : vector<64x128xf32>
    %cst_115 = arith.constant 1.000000e+00 : f32
    %406 = vector.broadcast %cst_115 : f32 to vector<64x128xf32>
    %407 = arith.divf %406, %405 : vector<64x128xf32>
    %cst_116 = arith.constant 1.06140542 : f32
    %408 = vector.broadcast %cst_116 : f32 to vector<64x128xf32>
    %409 = arith.mulf %408, %407 : vector<64x128xf32>
    %cst_117 = arith.constant -1.45315206 : f32
    %410 = vector.broadcast %cst_117 : f32 to vector<64x128xf32>
    %411 = arith.addf %409, %410 : vector<64x128xf32>
    %412 = arith.mulf %411, %407 : vector<64x128xf32>
    %cst_118 = arith.constant 1.42141378 : f32
    %413 = vector.broadcast %cst_118 : f32 to vector<64x128xf32>
    %414 = arith.addf %412, %413 : vector<64x128xf32>
    %415 = arith.mulf %414, %407 : vector<64x128xf32>
    %cst_119 = arith.constant -0.284496725 : f32
    %416 = vector.broadcast %cst_119 : f32 to vector<64x128xf32>
    %417 = arith.addf %415, %416 : vector<64x128xf32>
    %418 = arith.mulf %417, %407 : vector<64x128xf32>
    %cst_120 = arith.constant 0.254829586 : f32
    %419 = vector.broadcast %cst_120 : f32 to vector<64x128xf32>
    %420 = arith.addf %418, %419 : vector<64x128xf32>
    %421 = arith.mulf %420, %407 : vector<64x128xf32>
    %cst_121 = arith.constant 0.000000e+00 : f32
    %422 = vector.broadcast %cst_121 : f32 to vector<64x128xf32>
    %423 = arith.subf %422, %401 : vector<64x128xf32>
    %424 = arith.mulf %423, %401 : vector<64x128xf32>
    %425 = math.exp %424 : vector<64x128xf32>
    %426 = arith.mulf %421, %425 : vector<64x128xf32>
    %cst_122 = arith.constant 1.000000e+00 : f32
    %427 = vector.broadcast %cst_122 : f32 to vector<64x128xf32>
    %428 = arith.subf %427, %426 : vector<64x128xf32>
    %cst_123 = arith.constant 0.000000e+00 : f32
    %429 = vector.broadcast %cst_123 : f32 to vector<64x128xf32>
    %430 = arith.cmpf olt, %400, %429 : vector<64x128xf32>
    %cst_124 = arith.constant 0.000000e+00 : f32
    %431 = vector.broadcast %cst_124 : f32 to vector<64x128xf32>
    %432 = arith.subf %431, %428 : vector<64x128xf32>
    %433 = arith.select %430, %432, %428 : vector<64x128xi1>, vector<64x128xf32>
    %cst_125 = arith.constant 1.000000e+00 : f32
    %434 = vector.broadcast %cst_125 : f32 to vector<64x128xf32>
    %435 = arith.addf %434, %433 : vector<64x128xf32>
    %436 = arith.mulf %398, %435 : vector<64x128xf32>
    %437 = arith.mulf %436, %436 : vector<64x128xf32>
    %cst_126 = arith.constant dense<0.000000e+00> : vector<128xf32>
    %438 = vector.multi_reduction <add>, %437, %cst_126 [0] : vector<64x128xf32> to vector<128xf32>
    %439 = vector.shape_cast %438 : vector<128xf32> to vector<1x128xf32>
    %440 = arith.addf %384, %439 : vector<1x128xf32>
    %441 = vector.shape_cast %436 : vector<64x128xf32> to vector<4x16x128xf32>
    %442 = arith.truncf %441 : vector<4x16x128xf32> to vector<4x16x128xbf16>
    %443 = arith.index_cast %389 : i32 to index
    %c0_127 = arith.constant 0 : index
    %c0_128 = arith.constant 0 : index
    %444 = vector.load %arg15[%443, %c0_127, %c0_128] : memref<16x16x128xbf16, #tpu.memory_space<vmem>>, vector<4x16x128xbf16>
    tpu.vector_store %arg15[%443, %c0_127, %c0_128], %442 {strides = array<i32>} : memref<16x16x128xbf16, #tpu.memory_space<vmem>>, vector<4x16x128xbf16>,
    %c4_i32_129 = arith.constant 4 : i32
    %445 = math.sqrt %440 : vector<1x128xf32>
    %cst_130 = arith.constant dense<0.000000e+00> : vector<1xf32>
    %446 = vector.multi_reduction <add>, %445, %cst_130 [1] : vector<1x128xf32> to vector<1xf32>
    %447 = vector.shape_cast %446 : vector<1xf32> to vector<1x1xf32>
    %cst_131 = arith.constant 3.125000e-02 : f32
    %448 = vector.broadcast %cst_131 : f32 to vector<1x1xf32>
    %449 = arith.mulf %447, %448 : vector<1x1xf32>
    %cst_132 = arith.constant 9.99999997E-7 : f32
    %450 = vector.broadcast %cst_132 : f32 to vector<1x1xf32>
    %451 = arith.addf %449, %450 : vector<1x1xf32>
    %452 = vector.broadcast %451 : vector<1x1xf32> to vector<1x128xf32>
    %453 = arith.divf %445, %452 : vector<1x128xf32>
    %c0_133 = arith.constant 0 : index
    %c0_134 = arith.constant 0 : index
    %454 = vector.load %arg8[%c0_133, %c0_134] : memref<1x128xf32, #tpu.memory_space<vmem>>, vector<1x128xf32>
    %455 = arith.mulf %454, %453 : vector<1x128xf32>
    %cst_135 = arith.constant 1.000000e+00 : f32
    %456 = vector.broadcast %cst_135 : f32 to vector<1x128xf32>
    %457 = arith.addf %455, %456 : vector<1x128xf32>
    %c0_136 = arith.constant 0 : index
    %c0_137 = arith.constant 0 : index
    %458 = vector.load %arg9[%c0_136, %c0_137] : memref<1x128xf32, #tpu.memory_space<vmem>>, vector<1x128xf32>
    %c0_138 = arith.constant 0 : index
    %c0_139 = arith.constant 0 : index
    %459 = vector.load %arg10[%c0_138, %c0_139] : memref<128x128xbf16, #tpu.memory_space<vmem>>, vector<128x128xbf16>
    %c0_140 = arith.constant 0 : index
    %c0_141 = arith.constant 0 : index
    %460 = vector.load %arg11[%c0_140, %c0_141] : memref<1x128xf32, #tpu.memory_space<vmem>>, vector<1x128xf32>
    %c0_i32_142 = arith.constant 0 : i32
    %c4_i32_143 = arith.constant 4 : i32
    %461 = arith.muli %c0_i32_142, %c4_i32_143 : i32
    %462 = arith.index_cast %461 : i32 to index
    %c0_144 = arith.constant 0 : index
    %c0_145 = arith.constant 0 : index
    %463 = vector.load %arg15[%462, %c0_144, %c0_145] : memref<16x16x128xbf16, #tpu.memory_space<vmem>>, vector<4x16x128xbf16>
    %464 = arith.extf %463 : vector<4x16x128xbf16> to vector<4x16x128xf32>
    %465 = vector.shape_cast %464 : vector<4x16x128xf32> to vector<64x128xf32>
    %466 = vector.broadcast %457 : vector<1x128xf32> to vector<64x128xf32>
    %467 = arith.mulf %465, %466 : vector<64x128xf32>
    %468 = vector.broadcast %458 : vector<1x128xf32> to vector<64x128xf32>
    %469 = arith.addf %467, %468 : vector<64x128xf32>
    %470 = arith.truncf %469 : vector<64x128xf32> to vector<64x128xbf16>
    %cst_146 = arith.constant dense<0.000000e+00> : vector<64x128xf32>
    %471 = tpu.matmul %470, %459, %cst_146 {dimension_numbers = #tpu.dot_dimension_numbers<[1], [0], [0], [1], [0, 0, 1, 1], [], []>} : vector<64x128xbf16>, vector<128x128xbf16>, vector<64x128xf32> -> vector<64x128xf32>
    %472 = vector.broadcast %460 : vector<1x128xf32> to vector<64x128xf32>
    %473 = arith.addf %471, %472 : vector<64x128xf32>
    %474 = vector.shape_cast %473 : vector<64x128xf32> to vector<4x16x128xf32>
    %c0_147 = arith.constant 0 : index
    %475 = arith.index_cast %461 : i32 to index
    %c0_148 = arith.constant 0 : index
    %c0_149 = arith.constant 0 : index
    %476 = vector.load %arg1[%c0_147, %475, %c0_148, %c0_149] : memref<1x16x16x128xf32, #tpu.memory_space<vmem>>, vector<1x4x16x128xf32>
    %477 = vector.shape_cast %476 : vector<1x4x16x128xf32> to vector<4x16x128xf32>
    %478 = arith.addf %474, %477 : vector<4x16x128xf32>
    %c0_150 = arith.constant 0 : index
    %479 = arith.index_cast %461 : i32 to index
    %c0_151 = arith.constant 0 : index
    %c0_152 = arith.constant 0 : index
    %480 = vector.load %arg12[%c0_150, %479, %c0_151, %c0_152] : memref<1x16x16x128xf32, #tpu.memory_space<vmem>>, vector<1x4x16x128xf32>
    %481 = vector.shape_cast %480 : vector<1x4x16x128xf32> to vector<4x16x128xf32>
    %482 = vector.shape_cast %478 : vector<4x16x128xf32> to vector<1x4x16x128xf32>
    tpu.vector_store %arg12[%c0_150, %479, %c0_151, %c0_152], %482 {strides = array<i32>} : memref<1x16x16x128xf32, #tpu.memory_space<vmem>>, vector<1x4x16x128xf32>,
    %c1_i32_153 = arith.constant 1 : i32
    %c4_i32_154 = arith.constant 4 : i32
    %483 = arith.muli %c1_i32_153, %c4_i32_154 : i32
    %484 = arith.index_cast %483 : i32 to index
    %c0_155 = arith.constant 0 : index
    %c0_156 = arith.constant 0 : index
    %485 = vector.load %arg15[%484, %c0_155, %c0_156] : memref<16x16x128xbf16, #tpu.memory_space<vmem>>, vector<4x16x128xbf16>
    %486 = arith.extf %485 : vector<4x16x128xbf16> to vector<4x16x128xf32>
    %487 = vector.shape_cast %486 : vector<4x16x128xf32> to vector<64x128xf32>
    %488 = vector.broadcast %457 : vector<1x128xf32> to vector<64x128xf32>
    %489 = arith.mulf %487, %488 : vector<64x128xf32>
    %490 = vector.broadcast %458 : vector<1x128xf32> to vector<64x128xf32>
    %491 = arith.addf %489, %490 : vector<64x128xf32>
    %492 = arith.truncf %491 : vector<64x128xf32> to vector<64x128xbf16>
    %cst_157 = arith.constant dense<0.000000e+00> : vector<64x128xf32>
    %493 = tpu.matmul %492, %459, %cst_157 {dimension_numbers = #tpu.dot_dimension_numbers<[1], [0], [0], [1], [0, 0, 1, 1], [], []>} : vector<64x128xbf16>, vector<128x128xbf16>, vector<64x128xf32> -> vector<64x128xf32>
    %494 = vector.broadcast %460 : vector<1x128xf32> to vector<64x128xf32>
    %495 = arith.addf %493, %494 : vector<64x128xf32>
    %496 = vector.shape_cast %495 : vector<64x128xf32> to vector<4x16x128xf32>
    %c0_158 = arith.constant 0 : index
    %497 = arith.index_cast %483 : i32 to index
    %c0_159 = arith.constant 0 : index
    %c0_160 = arith.constant 0 : index
    %498 = vector.load %arg1[%c0_158, %497, %c0_159, %c0_160] : memref<1x16x16x128xf32, #tpu.memory_space<vmem>>, vector<1x4x16x128xf32>
    %499 = vector.shape_cast %498 : vector<1x4x16x128xf32> to vector<4x16x128xf32>
    %500 = arith.addf %496, %499 : vector<4x16x128xf32>
    %c0_161 = arith.constant 0 : index
    %501 = arith.index_cast %483 : i32 to index
    %c0_162 = arith.constant 0 : index
    %c0_163 = arith.constant 0 : index
    %502 = vector.load %arg12[%c0_161, %501, %c0_162, %c0_163] : memref<1x16x16x128xf32, #tpu.memory_space<vmem>>, vector<1x4x16x128xf32>
    %503 = vector.shape_cast %502 : vector<1x4x16x128xf32> to vector<4x16x128xf32>
    %504 = vector.shape_cast %500 : vector<4x16x128xf32> to vector<1x4x16x128xf32>
    tpu.vector_store %arg12[%c0_161, %501, %c0_162, %c0_163], %504 {strides = array<i32>} : memref<1x16x16x128xf32, #tpu.memory_space<vmem>>, vector<1x4x16x128xf32>,
    %c2_i32_164 = arith.constant 2 : i32
    %c4_i32_165 = arith.constant 4 : i32
    %505 = arith.muli %c2_i32_164, %c4_i32_165 : i32
    %506 = arith.index_cast %505 : i32 to index
    %c0_166 = arith.constant 0 : index
    %c0_167 = arith.constant 0 : index
    %507 = vector.load %arg15[%506, %c0_166, %c0_167] : memref<16x16x128xbf16, #tpu.memory_space<vmem>>, vector<4x16x128xbf16>
    %508 = arith.extf %507 : vector<4x16x128xbf16> to vector<4x16x128xf32>
    %509 = vector.shape_cast %508 : vector<4x16x128xf32> to vector<64x128xf32>
    %510 = vector.broadcast %457 : vector<1x128xf32> to vector<64x128xf32>
    %511 = arith.mulf %509, %510 : vector<64x128xf32>
    %512 = vector.broadcast %458 : vector<1x128xf32> to vector<64x128xf32>
    %513 = arith.addf %511, %512 : vector<64x128xf32>
    %514 = arith.truncf %513 : vector<64x128xf32> to vector<64x128xbf16>
    %cst_168 = arith.constant dense<0.000000e+00> : vector<64x128xf32>
    %515 = tpu.matmul %514, %459, %cst_168 {dimension_numbers = #tpu.dot_dimension_numbers<[1], [0], [0], [1], [0, 0, 1, 1], [], []>} : vector<64x128xbf16>, vector<128x128xbf16>, vector<64x128xf32> -> vector<64x128xf32>
    %516 = vector.broadcast %460 : vector<1x128xf32> to vector<64x128xf32>
    %517 = arith.addf %515, %516 : vector<64x128xf32>
    %518 = vector.shape_cast %517 : vector<64x128xf32> to vector<4x16x128xf32>
    %c0_169 = arith.constant 0 : index
    %519 = arith.index_cast %505 : i32 to index
    %c0_170 = arith.constant 0 : index
    %c0_171 = arith.constant 0 : index
    %520 = vector.load %arg1[%c0_169, %519, %c0_170, %c0_171] : memref<1x16x16x128xf32, #tpu.memory_space<vmem>>, vector<1x4x16x128xf32>
    %521 = vector.shape_cast %520 : vector<1x4x16x128xf32> to vector<4x16x128xf32>
    %522 = arith.addf %518, %521 : vector<4x16x128xf32>
    %c0_172 = arith.constant 0 : index
    %523 = arith.index_cast %505 : i32 to index
    %c0_173 = arith.constant 0 : index
    %c0_174 = arith.constant 0 : index
    %524 = vector.load %arg12[%c0_172, %523, %c0_173, %c0_174] : memref<1x16x16x128xf32, #tpu.memory_space<vmem>>, vector<1x4x16x128xf32>
    %525 = vector.shape_cast %524 : vector<1x4x16x128xf32> to vector<4x16x128xf32>
    %526 = vector.shape_cast %522 : vector<4x16x128xf32> to vector<1x4x16x128xf32>
    tpu.vector_store %arg12[%c0_172, %523, %c0_173, %c0_174], %526 {strides = array<i32>} : memref<1x16x16x128xf32, #tpu.memory_space<vmem>>, vector<1x4x16x128xf32>,
    %c3_i32_175 = arith.constant 3 : i32
    %c4_i32_176 = arith.constant 4 : i32
    %527 = arith.muli %c3_i32_175, %c4_i32_176 : i32
    %528 = arith.index_cast %527 : i32 to index
    %c0_177 = arith.constant 0 : index
    %c0_178 = arith.constant 0 : index
    %529 = vector.load %arg15[%528, %c0_177, %c0_178] : memref<16x16x128xbf16, #tpu.memory_space<vmem>>, vector<4x16x128xbf16>
    %530 = arith.extf %529 : vector<4x16x128xbf16> to vector<4x16x128xf32>
    %531 = vector.shape_cast %530 : vector<4x16x128xf32> to vector<64x128xf32>
    %532 = vector.broadcast %457 : vector<1x128xf32> to vector<64x128xf32>
    %533 = arith.mulf %531, %532 : vector<64x128xf32>
    %534 = vector.broadcast %458 : vector<1x128xf32> to vector<64x128xf32>
    %535 = arith.addf %533, %534 : vector<64x128xf32>
    %536 = arith.truncf %535 : vector<64x128xf32> to vector<64x128xbf16>
    %cst_179 = arith.constant dense<0.000000e+00> : vector<64x128xf32>
    %537 = tpu.matmul %536, %459, %cst_179 {dimension_numbers = #tpu.dot_dimension_numbers<[1], [0], [0], [1], [0, 0, 1, 1], [], []>} : vector<64x128xbf16>, vector<128x128xbf16>, vector<64x128xf32> -> vector<64x128xf32>
    %538 = vector.broadcast %460 : vector<1x128xf32> to vector<64x128xf32>
    %539 = arith.addf %537, %538 : vector<64x128xf32>
    %540 = vector.shape_cast %539 : vector<64x128xf32> to vector<4x16x128xf32>
    %c0_180 = arith.constant 0 : index
    %541 = arith.index_cast %527 : i32 to index
    %c0_181 = arith.constant 0 : index
    %c0_182 = arith.constant 0 : index
    %542 = vector.load %arg1[%c0_180, %541, %c0_181, %c0_182] : memref<1x16x16x128xf32, #tpu.memory_space<vmem>>, vector<1x4x16x128xf32>
    %543 = vector.shape_cast %542 : vector<1x4x16x128xf32> to vector<4x16x128xf32>
    %544 = arith.addf %540, %543 : vector<4x16x128xf32>
    %c0_183 = arith.constant 0 : index
    %545 = arith.index_cast %527 : i32 to index
    %c0_184 = arith.constant 0 : index
    %c0_185 = arith.constant 0 : index
    %546 = vector.load %arg12[%c0_183, %545, %c0_184, %c0_185] : memref<1x16x16x128xf32, #tpu.memory_space<vmem>>, vector<1x4x16x128xf32>
    %547 = vector.shape_cast %546 : vector<1x4x16x128xf32> to vector<4x16x128xf32>
    %548 = vector.shape_cast %544 : vector<4x16x128xf32> to vector<1x4x16x128xf32>
    tpu.vector_store %arg12[%c0_183, %545, %c0_184, %c0_185], %548 {strides = array<i32>} : memref<1x16x16x128xf32, #tpu.memory_space<vmem>>, vector<1x4x16x128xf32>,
    %c4_i32_186 = arith.constant 4 : i32
    return
  }
  func.func @transform_0(%arg0: i32) -> (i32, i32, i32, i32) {
    %c0_i32 = arith.constant 0 : i32
    %c0_i32_0 = arith.constant 0 : i32
    %c0_i32_1 = arith.constant 0 : i32
    %c0_i32_2 = arith.constant 0 : i32
    return %arg0, %c0_i32, %c0_i32_0, %c0_i32_1 : i32, i32, i32, i32
  }
  func.func @transform_1(%arg0: i32) -> (i32, i32) {
    %c0_i32 = arith.constant 0 : i32
    %c0_i32_0 = arith.constant 0 : i32
    %c0_i32_1 = arith.constant 0 : i32
    return %c0_i32, %c0_i32_0 : i32, i32
  }
  func.func @transform_2(%arg0: i32) -> (i32, i32) {
    %c0_i32 = arith.constant 0 : i32
    %c0_i32_0 = arith.constant 0 : i32
    %c0_i32_1 = arith.constant 0 : i32
    return %c0_i32, %c0_i32_0 : i32, i32
  }
  func.func @transform_3(%arg0: i32) -> (i32, i32) {
    %c0_i32 = arith.constant 0 : i32
    %c0_i32_0 = arith.constant 0 : i32
    %c0_i32_1 = arith.constant 0 : i32
    return %c0_i32, %c0_i32_0 : i32, i32
  }
  func.func @transform_4(%arg0: i32) -> (i32, i32) {
    %c0_i32 = arith.constant 0 : i32
    %c0_i32_0 = arith.constant 0 : i32
    %c0_i32_1 = arith.constant 0 : i32
    return %c0_i32, %c0_i32_0 : i32, i32
  }
  func.func @transform_5(%arg0: i32) -> (i32, i32) {
    %c0_i32 = arith.constant 0 : i32
    %c0_i32_0 = arith.constant 0 : i32
    %c0_i32_1 = arith.constant 0 : i32
    return %c0_i32, %c0_i32_0 : i32, i32
  }
  func.func @transform_6(%arg0: i32) -> (i32, i32) {
    %c0_i32 = arith.constant 0 : i32
    %c0_i32_0 = arith.constant 0 : i32
    %c0_i32_1 = arith.constant 0 : i32
    return %c0_i32, %c0_i32_0 : i32, i32
  }
  func.func @transform_7(%arg0: i32) -> (i32, i32) {
    %c0_i32 = arith.constant 0 : i32
    %c0_i32_0 = arith.constant 0 : i32
    %c0_i32_1 = arith.constant 0 : i32
    return %c0_i32, %c0_i32_0 : i32, i32
  }
  func.func @transform_8(%arg0: i32) -> (i32, i32) {
    %c0_i32 = arith.constant 0 : i32
    %c0_i32_0 = arith.constant 0 : i32
    %c0_i32_1 = arith.constant 0 : i32
    return %c0_i32, %c0_i32_0 : i32, i32
  }
  func.func @transform_9(%arg0: i32) -> (i32, i32) {
    %c0_i32 = arith.constant 0 : i32
    %c0_i32_0 = arith.constant 0 : i32
    %c0_i32_1 = arith.constant 0 : i32
    return %c0_i32, %c0_i32_0 : i32, i32
  }
  func.func @transform_10(%arg0: i32) -> (i32, i32) {
    %c0_i32 = arith.constant 0 : i32
    %c0_i32_0 = arith.constant 0 : i32
    %c0_i32_1 = arith.constant 0 : i32
    return %c0_i32, %c0_i32_0 : i32, i32
  }
  func.func @transform_11(%arg0: i32) -> (i32, i32, i32, i32) {
    %c0_i32 = arith.constant 0 : i32
    %c0_i32_0 = arith.constant 0 : i32
    %c0_i32_1 = arith.constant 0 : i32
    %c0_i32_2 = arith.constant 0 : i32
    return %arg0, %c0_i32, %c0_i32_0, %c0_i32_1 : i32, i32, i32, i32
  }
}

</mosaic_0001>

<llo_original>
// kernel: tpu_custom_call.1
$region0: #{tpu_custom_call.1}
  #allocation0 [shape = 'u32[]', space=smem, size = 0x4, offset = 0x4, fixed_abs, tag = 'smem constant byte address 0x4 - core index']
  #allocation1 [shape = 'u32[144,128]{1,0:T(1,128)}', space=vmem, size = 0x12000, scoped, tag = 'internal scratch']
  #allocation2 [shape = 'f32[20,20,128]{2,1,0:T(8,128)}', space=vmem, size = 0x3c000, scoped, tag = 'scratch operand']
  #allocation3 [shape = 'f32[16,16,128]{2,1,0:T(8,128)}', space=vmem, size = 0x20000, scoped, tag = 'scratch operand']
  #allocation4 [shape = 'bf16[16,16,128]{2,1,0:T(16,128)(2,1)}', space=vmem, size = 0x10000, scoped, tag = 'scratch operand']
  %s0 = inlined_call_operand.hbm [shape: f32[2,16,16,128], index: 0, kind: input, shape index: {}]
  %s1 = inlined_call_operand.hbm [shape: f32[25,128], index: 1, kind: input, shape index: {}]
  %s2 = inlined_call_operand.vmem [shape: f32[1,128], index: 2, kind: input, shape index: {}]
  %s3 = inlined_call_operand.vmem [shape: f32[1,128], index: 3, kind: input, shape index: {}]
  %s4 = inlined_call_operand.vmem [shape: f32[1,128], index: 4, kind: input, shape index: {}]
  %s5 = inlined_call_operand.hbm [shape: bf16[128,128], index: 5, kind: input, shape index: {}]
  %s6 = inlined_call_operand.vmem [shape: f32[1,128], index: 6, kind: input, shape index: {}]
  %s7 = inlined_call_operand.vmem [shape: f32[1,128], index: 7, kind: input, shape index: {}]
  %s8 = inlined_call_operand.vmem [shape: f32[1,128], index: 8, kind: input, shape index: {}]
  %s9 = inlined_call_operand.hbm [shape: bf16[128,128], index: 9, kind: input, shape index: {}]
  %s10 = inlined_call_operand.vmem [shape: f32[1,128], index: 10, kind: input, shape index: {}]
  %s11 = inlined_call_operand.hbm [shape: f32[2,16,16,128], index: 11, kind: output, shape index: {}]
  %s12 = sld [smem:[#allocation0]]
  $region93: #{tpu_custom_call.1} parent=0
    _
  %s14 = ssub.s32 1, %s12
  %s15 = scalar_select 0, %s14, %s12
  $region1: #{tpu_custom_call.1} parent=0
    #allocation5 [shape = 'u8[262144]{0}', space=vmem, size = 0x40000, scoped, tag = 'input window, operand 0']
    #allocation6 [shape = 's32[2]{0}', space=sflag, size = 0x8, scoped, tag = 'scoped memory for tpu_custom_call.1']
    #allocation7 [shape = 's32[2]{0}', space=sflag, size = 0x8, scoped, tag = 'scoped memory for tpu_custom_call.1']
    #allocation8 [shape = 'u8[16384]{0}', space=vmem, size = 0x4000, scoped, tag = 'input window, operand 1, single buffered']
    #allocation9 [shape = 's32[1]{0}', space=sflag, size = 0x4, scoped, tag = 'scoped memory for tpu_custom_call.1']
    #allocation10 [shape = 'u8[32768]{0}', space=vmem, size = 0x8000, scoped, tag = 'input window, operand 5, single buffered']
    #allocation11 [shape = 'u8[32768]{0}', space=vmem, size = 0x8000, scoped, tag = 'input window, operand 9, single buffered']
    #allocation12 [shape = 's32[1]{0}', space=sflag, size = 0x4, scoped, tag = 'scoped memory for tpu_custom_call.1']
    #allocation13 [shape = 'u8[262144]{0}', space=vmem, size = 0x40000, scoped, tag = 'output window, operand 0']
    %16 = vsyncpa [#allocation6], 0
    %s17 = scalar_lea.sflag [#allocation6], 1
    %18 = vsyncpa %s17, 0
    %19 = vsyncpa [#allocation9], 0
    %20 = vsyncpa [#allocation12], 0
    %21 = vsyncpa [#allocation7], 0
    %s22 = scalar_lea.sflag [#allocation7], 1
    %23 = vsyncpa %s22, 0
    loop: start=0, step=1, limit=4
    $region2: #{tpu_custom_call.1} parent=1 // loop_pre_header
      _
    $region3: #{tpu_custom_call.1} parent=1 // loop_header
      %s25 = sphi 0, %s29
      %p26 = scmp.ge.s32.totalorder %s25, 4
      %s35 = sphi 0, %s37
      %s38 = sphi 0, %s35
      %s39 = sphi 0, %s38
      %s55 = sphi 0, %s39
      %s59 = sphi 0, %s59
      %s61 = sphi 0, %s59
      %s62 = sphi 0, %s61
      %s76 = sphi 0, %s62
      %s80 = sphi 0, %s80
      %s82 = sphi 0, %s80
      %s83 = sphi 0, %s82
      %s97 = sphi 0, %s83
      %s101 = sphi 0, %s101
      %s103 = sphi 0, %s101
      %s104 = sphi 0, %s103
      %s118 = sphi 0, %s104
      %s122 = sphi 0, %s122
      %s124 = sphi 0, %s122
      %s125 = sphi 0, %s124
      %s139 = sphi 0, %s125
      %s143 = sphi 0, %s143
      %s145 = sphi 0, %s143
      %s146 = sphi 0, %s145
      %s160 = sphi 0, %s146
      %s164 = sphi 0, %s164
      %s166 = sphi 0, %s164
      %s167 = sphi 0, %s166
      %s181 = sphi 0, %s167
      %s185 = sphi 0, %s185
      %s187 = sphi 0, %s185
      %s188 = sphi 0, %s187
      %s202 = sphi 0, %s188
      %s206 = sphi 0, %s206
      %s208 = sphi 0, %s206
      %s209 = sphi 0, %s208
      %s223 = sphi 0, %s209
      %s227 = sphi 0, %s227
      %s229 = sphi 0, %s227
      %s230 = sphi 0, %s229
      %s244 = sphi 0, %s230
      %s248 = sphi 0, %s248
      %s250 = sphi 0, %s248
      %s251 = sphi 0, %s250
      %s265 = sphi 0, %s251
      %s271 = sphi 0, %s273
      %s274 = sphi 0, %s271
      %s275 = sphi 0, %s274
      %s291 = sphi 0, %s275
    $region4: #{tpu_custom_call.1} parent=1 // loop_header_branch
      %28 = sbr.rel (%p26) target = $region8
    $region5: #{tpu_custom_call.1} parent=1 // loop_body
      %s30 = ssub.s32 %s25, 1
      %s31 = ssub.s32 %s25, 2
      %s32 = sadd.s32 %s25, 1
      %s33 = ssub.s32 %s25, %s32
      %p34 = scmp.eq.s32.totalorder %s33, 0
      %s36 = sadd.s32 %s35, 1
      %s37 = scalar_select %p34, %s35, %s36
      %p40 = pneg %p34
      %p41 = scmp.eq.s32.totalorder %s25, 1
      %p42 = por %p40, %p41
      %p43 = scmp.ne.s32.totalorder %s35, %s38
      %p44 = scmp.eq.s32.totalorder %s25, 0
      %p45 = por %p43, %p44
      %p46 = scmp.ne.s32.totalorder %s35, %s38
      %p47 = scmp.eq.s32.totalorder %s30, 1
      %p48 = por %p46, %p47
      %p49 = scmp.ne.s32.totalorder %s38, %s39
      %p50 = scmp.eq.s32.totalorder %s30, 0
      %p51 = por %p49, %p50
      %p52 = scmp.ne.s32.totalorder %s38, %s39
      %p53 = scmp.eq.s32.totalorder %s31, 1
      %p54 = por %p52, %p53
      %p56 = scmp.ne.s32.totalorder %s39, %s55
      %p57 = scmp.eq.s32.totalorder %s31, 0
      %p58 = por %p56, %p57
      %s60 = sadd.s32 %s59, 1
      %p63 = scmp.eq.s32.totalorder %s25, 1
      %p64 = scmp.ne.s32.totalorder %s59, %s61
      %p65 = scmp.eq.s32.totalorder %s25, 0
      %p66 = por %p64, %p65
      %p67 = scmp.ne.s32.totalorder %s59, %s61
      %p68 = scmp.eq.s32.totalorder %s30, 1
      %p69 = por %p67, %p68
      %p70 = scmp.ne.s32.totalorder %s61, %s62
      %p71 = scmp.eq.s32.totalorder %s30, 0
      %p72 = por %p70, %p71
      %p73 = scmp.ne.s32.totalorder %s61, %s62
      %p74 = scmp.eq.s32.totalorder %s31, 1
      %p75 = por %p73, %p74
      %p77 = scmp.ne.s32.totalorder %s62, %s76
      %p78 = scmp.eq.s32.totalorder %s31, 0
      %p79 = por %p77, %p78
      %s81 = sadd.s32 %s80, 1
      %p84 = scmp.eq.s32.totalorder %s25, 1
      %p85 = scmp.ne.s32.totalorder %s80, %s82
      %p86 = scmp.eq.s32.totalorder %s25, 0
      %p87 = por %p85, %p86
      %p88 = scmp.ne.s32.totalorder %s80, %s82
      %p89 = scmp.eq.s32.totalorder %s30, 1
      %p90 = por %p88, %p89
      %p91 = scmp.ne.s32.totalorder %s82, %s83
      %p92 = scmp.eq.s32.totalorder %s30, 0
      %p93 = por %p91, %p92
      %p94 = scmp.ne.s32.totalorder %s82, %s83
      %p95 = scmp.eq.s32.totalorder %s31, 1
      %p96 = por %p94, %p95
      %p98 = scmp.ne.s32.totalorder %s83, %s97
      %p99 = scmp.eq.s32.totalorder %s31, 0
      %p100 = por %p98, %p99
      %s102 = sadd.s32 %s101, 1
      %p105 = scmp.eq.s32.totalorder %s25, 1
      %p106 = scmp.ne.s32.totalorder %s101, %s103
      %p107 = scmp.eq.s32.totalorder %s25, 0
      %p108 = por %p106, %p107
      %p109 = scmp.ne.s32.totalorder %s101, %s103
      %p110 = scmp.eq.s32.totalorder %s30, 1
      %p111 = por %p109, %p110
      %p112 = scmp.ne.s32.totalorder %s103, %s104
      %p113 = scmp.eq.s32.totalorder %s30, 0
      %p114 = por %p112, %p113
      %p115 = scmp.ne.s32.totalorder %s103, %s104
      %p116 = scmp.eq.s32.totalorder %s31, 1
      %p117 = por %p115, %p116
      %p119 = scmp.ne.s32.totalorder %s104, %s118
      %p120 = scmp.eq.s32.totalorder %s31, 0
      %p121 = por %p119, %p120
      %s123 = sadd.s32 %s122, 1
      %p126 = scmp.eq.s32.totalorder %s25, 1
      %p127 = scmp.ne.s32.totalorder %s122, %s124
      %p128 = scmp.eq.s32.totalorder %s25, 0
      %p129 = por %p127, %p128
      %p130 = scmp.ne.s32.totalorder %s122, %s124
      %p131 = scmp.eq.s32.totalorder %s30, 1
      %p132 = por %p130, %p131
      %p133 = scmp.ne.s32.totalorder %s124, %s125
      %p134 = scmp.eq.s32.totalorder %s30, 0
      %p135 = por %p133, %p134
      %p136 = scmp.ne.s32.totalorder %s124, %s125
      %p137 = scmp.eq.s32.totalorder %s31, 1
      %p138 = por %p136, %p137
      %p140 = scmp.ne.s32.totalorder %s125, %s139
      %p141 = scmp.eq.s32.totalorder %s31, 0
      %p142 = por %p140, %p141
      %s144 = sadd.s32 %s143, 1
      %p147 = scmp.eq.s32.totalorder %s25, 1
      %p148 = scmp.ne.s32.totalorder %s143, %s145
      %p149 = scmp.eq.s32.totalorder %s25, 0
      %p150 = por %p148, %p149
      %p151 = scmp.ne.s32.totalorder %s143, %s145
      %p152 = scmp.eq.s32.totalorder %s30, 1
      %p153 = por %p151, %p152
      %p154 = scmp.ne.s32.totalorder %s145, %s146
      %p155 = scmp.eq.s32.totalorder %s30, 0
      %p156 = por %p154, %p155
      %p157 = scmp.ne.s32.totalorder %s145, %s146
      %p158 = scmp.eq.s32.totalorder %s31, 1
      %p159 = por %p157, %p158
      %p161 = scmp.ne.s32.totalorder %s146, %s160
      %p162 = scmp.eq.s32.totalorder %s31, 0
      %p163 = por %p161, %p162
      %s165 = sadd.s32 %s164, 1
      %p168 = scmp.eq.s32.totalorder %s25, 1
      %p169 = scmp.ne.s32.totalorder %s164, %s166
      %p170 = scmp.eq.s32.totalorder %s25, 0
      %p171 = por %p169, %p170
      %p172 = scmp.ne.s32.totalorder %s164, %s166
      %p173 = scmp.eq.s32.totalorder %s30, 1
      %p174 = por %p172, %p173
      %p175 = scmp.ne.s32.totalorder %s166, %s167
      %p176 = scmp.eq.s32.totalorder %s30, 0
      %p177 = por %p175, %p176
      %p178 = scmp.ne.s32.totalorder %s166, %s167
      %p179 = scmp.eq.s32.totalorder %s31, 1
      %p180 = por %p178, %p179
      %p182 = scmp.ne.s32.totalorder %s167, %s181
      %p183 = scmp.eq.s32.totalorder %s31, 0
      %p184 = por %p182, %p183
      %s186 = sadd.s32 %s185, 1
      %p189 = scmp.eq.s32.totalorder %s25, 1
      %p190 = scmp.ne.s32.totalorder %s185, %s187
      %p191 = scmp.eq.s32.totalorder %s25, 0
      %p192 = por %p190, %p191
      %p193 = scmp.ne.s32.totalorder %s185, %s187
      %p194 = scmp.eq.s32.totalorder %s30, 1
      %p195 = por %p193, %p194
      %p196 = scmp.ne.s32.totalorder %s187, %s188
      %p197 = scmp.eq.s32.totalorder %s30, 0
      %p198 = por %p196, %p197
      %p199 = scmp.ne.s32.totalorder %s187, %s188
      %p200 = scmp.eq.s32.totalorder %s31, 1
      %p201 = por %p199, %p200
      %p203 = scmp.ne.s32.totalorder %s188, %s202
      %p204 = scmp.eq.s32.totalorder %s31, 0
      %p205 = por %p203, %p204
      %s207 = sadd.s32 %s206, 1
      %p210 = scmp.eq.s32.totalorder %s25, 1
      %p211 = scmp.ne.s32.totalorder %s206, %s208
      %p212 = scmp.eq.s32.totalorder %s25, 0
      %p213 = por %p211, %p212
      %p214 = scmp.ne.s32.totalorder %s206, %s208
      %p215 = scmp.eq.s32.totalorder %s30, 1
      %p216 = por %p214, %p215
      %p217 = scmp.ne.s32.totalorder %s208, %s209
      %p218 = scmp.eq.s32.totalorder %s30, 0
      %p219 = por %p217, %p218
      %p220 = scmp.ne.s32.totalorder %s208, %s209
      %p221 = scmp.eq.s32.totalorder %s31, 1
      %p222 = por %p220, %p221
      %p224 = scmp.ne.s32.totalorder %s209, %s223
      %p225 = scmp.eq.s32.totalorder %s31, 0
      %p226 = por %p224, %p225
      %s228 = sadd.s32 %s227, 1
      %p231 = scmp.eq.s32.totalorder %s25, 1
      %p232 = scmp.ne.s32.totalorder %s227, %s229
      %p233 = scmp.eq.s32.totalorder %s25, 0
      %p234 = por %p232, %p233
      %p235 = scmp.ne.s32.totalorder %s227, %s229
      %p236 = scmp.eq.s32.totalorder %s30, 1
      %p237 = por %p235, %p236
      %p238 = scmp.ne.s32.totalorder %s229, %s230
      %p239 = scmp.eq.s32.totalorder %s30, 0
      %p240 = por %p238, %p239
      %p241 = scmp.ne.s32.totalorder %s229, %s230
      %p242 = scmp.eq.s32.totalorder %s31, 1
      %p243 = por %p241, %p242
      %p245 = scmp.ne.s32.totalorder %s230, %s244
      %p246 = scmp.eq.s32.totalorder %s31, 0
      %p247 = por %p245, %p246
      %s249 = sadd.s32 %s248, 1
      %p252 = scmp.eq.s32.totalorder %s25, 1
      %p253 = scmp.ne.s32.totalorder %s248, %s250
      %p254 = scmp.eq.s32.totalorder %s25, 0
      %p255 = por %p253, %p254
      %p256 = scmp.ne.s32.totalorder %s248, %s250
      %p257 = scmp.eq.s32.totalorder %s30, 1
      %p258 = por %p256, %p257
      %p259 = scmp.ne.s32.totalorder %s250, %s251
      %p260 = scmp.eq.s32.totalorder %s30, 0
      %p261 = por %p259, %p260
      %p262 = scmp.ne.s32.totalorder %s250, %s251
      %p263 = scmp.eq.s32.totalorder %s31, 1
      %p264 = por %p262, %p263
      %p266 = scmp.ne.s32.totalorder %s251, %s265
      %p267 = scmp.eq.s32.totalorder %s31, 0
      %p268 = por %p266, %p267
      %s269 = ssub.s32 %s25, %s32
      %p270 = scmp.eq.s32.totalorder %s269, 0
      %s272 = sadd.s32 %s271, 1
      %s273 = scalar_select %p270, %s271, %s272
      %p276 = pneg %p270
      %p277 = scmp.eq.s32.totalorder %s25, 1
      %p278 = por %p276, %p277
      %p279 = scmp.ne.s32.totalorder %s271, %s274
      %p280 = scmp.eq.s32.totalorder %s25, 0
      %p281 = por %p279, %p280
      %p282 = scmp.ne.s32.totalorder %s271, %s274
      %p283 = scmp.eq.s32.totalorder %s30, 1
      %p284 = por %p282, %p283
      %p285 = scmp.ne.s32.totalorder %s274, %s275
      %p286 = scmp.eq.s32.totalorder %s30, 0
      %p287 = por %p285, %p286
      %p288 = scmp.ne.s32.totalorder %s274, %s275
      %p289 = scmp.eq.s32.totalorder %s31, 1
      %p290 = por %p288, %p289
      %p292 = scmp.ne.s32.totalorder %s275, %s291
      %p293 = scmp.eq.s32.totalorder %s31, 0
      %p294 = por %p292, %p293
      %p295 = scmp.le.s32.totalorder 1, %s25
      %p296 = scmp.lt.s32.totalorder %s25, 3
      %p297 = pnand %p295, %p296
      %p298 = pneg %p297
      // Predicated region
      $region9: #{tpu_custom_call.1} parent=5 // pred_check
        _
      $region10: #{tpu_custom_call.1} parent=5 // pred_check_branch
        %300 = sbr.rel (%p297) target = $region12
      $region11: #{tpu_custom_call.1} parent=5 // pred_region
        %s301 = ssub.s32 %s25, 1
        // Predicated region
        $region13: #{tpu_custom_call.1} parent=11 // pred_check
          %p302 = pneg %p72
        $region14: #{tpu_custom_call.1} parent=11 // pred_check_branch
          %304 = sbr.rel (%p302) target = $region16
        $region15: #{tpu_custom_call.1} parent=11 // pred_region
          %s306 = ssub.s32 512, 512
          %307 = vsyncadd [#allocation9], %s306
          %s308 = sshll.u32 [#allocation8], 4
          %s309 = int_to_ptr.vmem [resolvable:$true] %s308
          %314 = dma.hbm_to_vmem [thread:$0]  %s1, 512, %s309, [#allocation9], 128, 128, 8
        $region16: #{tpu_custom_call.1} parent=11 // pred_fallthru
          _
        // Predicated region
        $region17: #{tpu_custom_call.1} parent=11 // pred_check
          %p315 = pneg %p93
        $region18: #{tpu_custom_call.1} parent=11 // pred_check_branch
          %317 = sbr.rel (%p315) target = $region20
        $region19: #{tpu_custom_call.1} parent=11 // pred_region
          _
        $region20: #{tpu_custom_call.1} parent=11 // pred_fallthru
          _
        // Predicated region
        $region21: #{tpu_custom_call.1} parent=11 // pred_check
          %p318 = pneg %p114
        $region22: #{tpu_custom_call.1} parent=11 // pred_check_branch
          %320 = sbr.rel (%p318) target = $region24
        $region23: #{tpu_custom_call.1} parent=11 // pred_region
          _
        $region24: #{tpu_custom_call.1} parent=11 // pred_fallthru
          _
        // Predicated region
        $region25: #{tpu_custom_call.1} parent=11 // pred_check
          %p321 = pneg %p135
        $region26: #{tpu_custom_call.1} parent=11 // pred_check_branch
          %323 = sbr.rel (%p321) target = $region28
        $region27: #{tpu_custom_call.1} parent=11 // pred_region
          _
        $region28: #{tpu_custom_call.1} parent=11 // pred_fallthru
          _
        // Predicated region
        $region29: #{tpu_custom_call.1} parent=11 // pred_check
          %p324 = pneg %p156
        $region30: #{tpu_custom_call.1} parent=11 // pred_check_branch
          %326 = sbr.rel (%p324) target = $region32
        $region31: #{tpu_custom_call.1} parent=11 // pred_region
          %s328 = ssub.s32 1024, 1024
          %329 = vsyncadd [#allocation9], %s328
          %s330 = sshll.u32 [#allocation10], 4
          %s331 = int_to_ptr.vmem [resolvable:$true] %s330
          %336 = dma.hbm_to_vmem [thread:$0]  %s5, 1024, %s331, [#allocation9], 64, 64, 4
        $region32: #{tpu_custom_call.1} parent=11 // pred_fallthru
          _
        // Predicated region
        $region33: #{tpu_custom_call.1} parent=11 // pred_check
          %p337 = pneg %p177
        $region34: #{tpu_custom_call.1} parent=11 // pred_check_branch
          %339 = sbr.rel (%p337) target = $region36
        $region35: #{tpu_custom_call.1} parent=11 // pred_region
          _
        $region36: #{tpu_custom_call.1} parent=11 // pred_fallthru
          _
        // Predicated region
        $region37: #{tpu_custom_call.1} parent=11 // pred_check
          %p340 = pneg %p198
        $region38: #{tpu_custom_call.1} parent=11 // pred_check_branch
          %342 = sbr.rel (%p340) target = $region40
        $region39: #{tpu_custom_call.1} parent=11 // pred_region
          _
        $region40: #{tpu_custom_call.1} parent=11 // pred_fallthru
          _
        // Predicated region
        $region41: #{tpu_custom_call.1} parent=11 // pred_check
          %p343 = pneg %p219
        $region42: #{tpu_custom_call.1} parent=11 // pred_check_branch
          %345 = sbr.rel (%p343) target = $region44
        $region43: #{tpu_custom_call.1} parent=11 // pred_region
          _
        $region44: #{tpu_custom_call.1} parent=11 // pred_fallthru
          _
        // Predicated region
        $region45: #{tpu_custom_call.1} parent=11 // pred_check
          %p346 = pneg %p240
        $region46: #{tpu_custom_call.1} parent=11 // pred_check_branch
          %348 = sbr.rel (%p346) target = $region48
        $region47: #{tpu_custom_call.1} parent=11 // pred_region
          %s350 = ssub.s32 1024, 1024
          %351 = vsyncadd [#allocation12], %s350
          %s352 = sshll.u32 [#allocation11], 4
          %s353 = int_to_ptr.vmem [resolvable:$true] %s352
          %358 = dma.hbm_to_vmem [thread:$0]  %s9, 1024, %s353, [#allocation12], 64, 64, 4
        $region48: #{tpu_custom_call.1} parent=11 // pred_fallthru
          _
        // Predicated region
        $region49: #{tpu_custom_call.1} parent=11 // pred_check
          %p359 = pneg %p261
        $region50: #{tpu_custom_call.1} parent=11 // pred_check_branch
          %361 = sbr.rel (%p359) target = $region52
        $region51: #{tpu_custom_call.1} parent=11 // pred_region
          _
        $region52: #{tpu_custom_call.1} parent=11 // pred_fallthru
          _
      $region12: #{tpu_custom_call.1} parent=5 // pred_fallthru
        _
      %p362 = scmp.lt.s32.totalorder %s25, 2
      // Predicated region
      $region53: #{tpu_custom_call.1} parent=5 // pred_check
        %p363 = pneg %p362
      $region54: #{tpu_custom_call.1} parent=5 // pred_check_branch
        %365 = sbr.rel (%p363) target = $region56
      $region55: #{tpu_custom_call.1} parent=5 // pred_region
        // Predicated region
        $region57: #{tpu_custom_call.1} parent=55 // pred_check
          %p366 = pneg %p45
        $region58: #{tpu_custom_call.1} parent=55 // pred_check_branch
          %368 = sbr.rel (%p366) target = $region60
        $region59: #{tpu_custom_call.1} parent=55 // pred_region
          %s369 = sand.u32 %s35, 1
          %s370 = scalar_lea.sflag [#allocation6], %s369
          %s371 = sand.u32 %s35, 1
          %s372 = smul.addr %s371, 256
          %s373 = scalar_lea.vmem [#allocation5], %s372
          %s375 = ssub.s32 4096, 4096
          %376 = vsyncadd %s370, %s375
          %s377 = smul.addr %s25, 32
          %s378 = smul.addr %s377, 128
          %s379 = scalar_lea.hbm %s0, %s378
          %s380 = sshll.u32 %s373, 4
          %s381 = int_to_ptr.vmem [resolvable:$true] %s380
          %386 = dma.hbm_to_vmem [thread:$0]  %s379, 4096, %s381, %s370, 128, 128, 8
        $region60: #{tpu_custom_call.1} parent=55 // pred_fallthru
          _
      $region56: #{tpu_custom_call.1} parent=5 // pred_fallthru
        _
      %p387 = scmp.le.s32.totalorder 1, %s25
      %p388 = scmp.lt.s32.totalorder %s25, 3
      %p389 = pnand %p387, %p388
      %p390 = pneg %p389
      // Predicated region
      $region61: #{tpu_custom_call.1} parent=5 // pred_check
        _
      $region62: #{tpu_custom_call.1} parent=5 // pred_check_branch
        %392 = sbr.rel (%p389) target = $region64
      $region63: #{tpu_custom_call.1} parent=5 // pred_region
        %s393 = ssub.s32 %s25, 1
        %s394 = sand.u32 %s38, 1
        %s395 = scalar_lea.sflag [#allocation6], %s394
        %s396 = sand.u32 %s38, 1
        %s397 = smul.addr %s396, 256
        %s398 = scalar_lea.vmem [#allocation5], %s397
        // Predicated region
        $region65: #{tpu_custom_call.1} parent=63 // pred_check
          %p399 = pneg %p51
        $region66: #{tpu_custom_call.1} parent=63 // pred_check_branch
          %401 = sbr.rel (%p399) target = $region68
        $region67: #{tpu_custom_call.1} parent=63 // pred_region
          %402 = dma.done %s395, 4096
        $region68: #{tpu_custom_call.1} parent=63 // pred_fallthru
          _
        // Predicated region
        $region69: #{tpu_custom_call.1} parent=63 // pred_check
          %p403 = pneg %p72
        $region70: #{tpu_custom_call.1} parent=63 // pred_check_branch
          %405 = sbr.rel (%p403) target = $region72
        $region71: #{tpu_custom_call.1} parent=63 // pred_region
          %406 = dma.done [#allocation9], 512
        $region72: #{tpu_custom_call.1} parent=63 // pred_fallthru
          _
        // Predicated region
        $region73: #{tpu_custom_call.1} parent=63 // pred_check
          %p407 = pneg %p156
        $region74: #{tpu_custom_call.1} parent=63 // pred_check_branch
          %409 = sbr.rel (%p407) target = $region76
        $region75: #{tpu_custom_call.1} parent=63 // pred_region
          %410 = dma.done [#allocation9], 1024
        $region76: #{tpu_custom_call.1} parent=63 // pred_fallthru
          _
        // Predicated region
        $region77: #{tpu_custom_call.1} parent=63 // pred_check
          %p411 = pneg %p240
        $region78: #{tpu_custom_call.1} parent=63 // pred_check_branch
          %413 = sbr.rel (%p411) target = $region80
        $region79: #{tpu_custom_call.1} parent=63 // pred_region
          %414 = dma.done [#allocation12], 1024
        $region80: #{tpu_custom_call.1} parent=63 // pred_fallthru
          _
        %s415 = sand.u32 %s38, 1
        %s416 = scalar_lea.sflag [#allocation6], %s415
        %s417 = sand.u32 %s38, 1
        %s418 = smul.addr %s417, 256
        %s419 = scalar_lea.vmem [#allocation5], %s418
        %p420 = pneg %p51
        %p421 = pneg %p48
        %p422 = pneg %p72
        %p423 = pneg %p69
        %p424 = pneg %p93
        %p425 = pneg %p90
        %p426 = pneg %p114
        %p427 = pneg %p111
        %p428 = pneg %p135
        %p429 = pneg %p132
        %p430 = pneg %p156
        %p431 = pneg %p153
        %p432 = pneg %p177
        %p433 = pneg %p174
        %p434 = pneg %p198
        %p435 = pneg %p195
        %p436 = pneg %p219
        %p437 = pneg %p216
        %p438 = pneg %p240
        %p439 = pneg %p237
        %p440 = pneg %p261
        %p441 = pneg %p258
        %p442 = pneg %p287
        %p443 = pneg %p284
        %s444 = sand.u32 %s274, 1
        %s445 = scalar_lea.sflag [#allocation7], %s444
        %s446 = sand.u32 %s274, 1
        %s447 = smul.addr %s446, 256
        %s448 = scalar_lea.vmem [#allocation13], %s447
        %450 = vst [vmem:[#allocation2] sm:$0xff] 0.0
        %451 = vst [vmem:[#allocation2 + $0x8] sm:$0xff] 0.0
        %452 = vst [vmem:[#allocation2 + $0x10] sm:$0xf] 0.0
        %453 = vst [vmem:[#allocation2 + $0x18] sm:$0xff] 0.0
        %454 = vst [vmem:[#allocation2 + $0x20] sm:$0xff] 0.0
        %455 = vst [vmem:[#allocation2 + $0x28] sm:$0xf] 0.0
        %456 = vst [vmem:[#allocation2 + $0x30] sm:$0xff] 0.0
        %457 = vst [vmem:[#allocation2 + $0x38] sm:$0xff] 0.0
        %458 = vst [vmem:[#allocation2 + $0x40] sm:$0xf] 0.0
        %459 = vst [vmem:[#allocation2 + $0x48] sm:$0xff] 0.0
        %460 = vst [vmem:[#allocation2 + $0x50] sm:$0xff] 0.0
        %461 = vst [vmem:[#allocation2 + $0x58] sm:$0xf] 0.0
        %462 = vst [vmem:[#allocation2 + $0x60] sm:$0xff] 0.0
        %463 = vst [vmem:[#allocation2 + $0x68] sm:$0xff] 0.0
        %464 = vst [vmem:[#allocation2 + $0x70] sm:$0xf] 0.0
        %465 = vst [vmem:[#allocation2 + $0x78] sm:$0xff] 0.0
        %466 = vst [vmem:[#allocation2 + $0x80] sm:$0xff] 0.0
        %467 = vst [vmem:[#allocation2 + $0x88] sm:$0xf] 0.0
        %468 = vst [vmem:[#allocation2 + $0x90] sm:$0xff] 0.0
        %469 = vst [vmem:[#allocation2 + $0x98] sm:$0xff] 0.0
        %470 = vst [vmem:[#allocation2 + $0xa0] sm:$0xf] 0.0
        %471 = vst [vmem:[#allocation2 + $0xa8] sm:$0xff] 0.0
        %472 = vst [vmem:[#allocation2 + $0xb0] sm:$0xff] 0.0
        %473 = vst [vmem:[#allocation2 + $0xb8] sm:$0xf] 0.0
        %474 = vst [vmem:[#allocation2 + $0xc0] sm:$0xff] 0.0
        %475 = vst [vmem:[#allocation2 + $0xc8] sm:$0xff] 0.0
        %476 = vst [vmem:[#allocation2 + $0xd0] sm:$0xf] 0.0
        %477 = vst [vmem:[#allocation2 + $0xd8] sm:$0xff] 0.0
        %478 = vst [vmem:[#allocation2 + $0xe0] sm:$0xff] 0.0
        %479 = vst [vmem:[#allocation2 + $0xe8] sm:$0xf] 0.0
        %480 = vst [vmem:[#allocation2 + $0xf0] sm:$0xff] 0.0
        %481 = vst [vmem:[#allocation2 + $0xf8] sm:$0xff] 0.0
        %482 = vst [vmem:[#allocation2 + $0x100] sm:$0xf] 0.0
        %483 = vst [vmem:[#allocation2 + $0x108] sm:$0xff] 0.0
        %484 = vst [vmem:[#allocation2 + $0x110] sm:$0xff] 0.0
        %485 = vst [vmem:[#allocation2 + $0x118] sm:$0xf] 0.0
        %486 = vst [vmem:[#allocation2 + $0x120] sm:$0xff] 0.0
        %487 = vst [vmem:[#allocation2 + $0x128] sm:$0xff] 0.0
        %488 = vst [vmem:[#allocation2 + $0x130] sm:$0xf] 0.0
        %489 = vst [vmem:[#allocation2 + $0x138] sm:$0xff] 0.0
        %490 = vst [vmem:[#allocation2 + $0x140] sm:$0xff] 0.0
        %491 = vst [vmem:[#allocation2 + $0x148] sm:$0xf] 0.0
        %492 = vst [vmem:[#allocation2 + $0x150] sm:$0xff] 0.0
        %493 = vst [vmem:[#allocation2 + $0x158] sm:$0xff] 0.0
        %494 = vst [vmem:[#allocation2 + $0x160] sm:$0xf] 0.0
        %495 = vst [vmem:[#allocation2 + $0x168] sm:$0xff] 0.0
        %496 = vst [vmem:[#allocation2 + $0x170] sm:$0xff] 0.0
        %497 = vst [vmem:[#allocation2 + $0x178] sm:$0xf] 0.0
        %498 = vst [vmem:[#allocation2 + $0x180] sm:$0xff] 0.0
        %499 = vst [vmem:[#allocation2 + $0x188] sm:$0xff] 0.0
        %500 = vst [vmem:[#allocation2 + $0x190] sm:$0xf] 0.0
        %501 = vst [vmem:[#allocation2 + $0x198] sm:$0xff] 0.0
        %502 = vst [vmem:[#allocation2 + $0x1a0] sm:$0xff] 0.0
        %503 = vst [vmem:[#allocation2 + $0x1a8] sm:$0xf] 0.0
        %504 = vst [vmem:[#allocation2 + $0x1b0] sm:$0xff] 0.0
        %505 = vst [vmem:[#allocation2 + $0x1b8] sm:$0xff] 0.0
        %506 = vst [vmem:[#allocation2 + $0x1c0] sm:$0xf] 0.0
        %507 = vst [vmem:[#allocation2 + $0x1c8] sm:$0xff] 0.0
        %508 = vst [vmem:[#allocation2 + $0x1d0] sm:$0xff] 0.0
        %509 = vst [vmem:[#allocation2 + $0x1d8] sm:$0xf] 0.0
        %v510 = vld [vmem:[%s398] sm:$0xff]
        %v511 = vld [vmem:[%s398 + $0x8] sm:$0xff]
        %v512 = vld [vmem:[%s398 + $0x10] sm:$0xff]
        %v513 = vld [vmem:[%s398 + $0x18] sm:$0xff]
        %v514 = vld [vmem:[%s398 + $0x20] sm:$0xff]
        %v515 = vld [vmem:[%s398 + $0x28] sm:$0xff]
        %v516 = vld [vmem:[%s398 + $0x30] sm:$0xff]
        %v517 = vld [vmem:[%s398 + $0x38] sm:$0xff]
        %v518 = vld [vmem:[%s398 + $0x40] sm:$0xff]
        %v519 = vld [vmem:[%s398 + $0x48] sm:$0xff]
        %v520 = vld [vmem:[%s398 + $0x50] sm:$0xff]
        %v521 = vld [vmem:[%s398 + $0x58] sm:$0xff]
        %v522 = vld [vmem:[%s398 + $0x60] sm:$0xff]
        %v523 = vld [vmem:[%s398 + $0x68] sm:$0xff]
        %v524 = vld [vmem:[%s398 + $0x70] sm:$0xff]
        %v525 = vld [vmem:[%s398 + $0x78] sm:$0xff]
        %v526 = vld [vmem:[%s398 + $0x80] sm:$0xff]
        %v527 = vld [vmem:[%s398 + $0x88] sm:$0xff]
        %v528 = vld [vmem:[%s398 + $0x90] sm:$0xff]
        %v529 = vld [vmem:[%s398 + $0x98] sm:$0xff]
        %v530 = vld [vmem:[%s398 + $0xa0] sm:$0xff]
        %v531 = vld [vmem:[%s398 + $0xa8] sm:$0xff]
        %v532 = vld [vmem:[%s398 + $0xb0] sm:$0xff]
        %v533 = vld [vmem:[%s398 + $0xb8] sm:$0xff]
        %v534 = vld [vmem:[%s398 + $0xc0] sm:$0xff]
        %v535 = vld [vmem:[%s398 + $0xc8] sm:$0xff]
        %v536 = vld [vmem:[%s398 + $0xd0] sm:$0xff]
        %v537 = vld [vmem:[%s398 + $0xd8] sm:$0xff]
        %v538 = vld [vmem:[%s398 + $0xe0] sm:$0xff]
        %v539 = vld [vmem:[%s398 + $0xe8] sm:$0xff]
        %v540 = vld [vmem:[%s398 + $0xf0] sm:$0xff]
        %v541 = vld [vmem:[%s398 + $0xf8] sm:$0xff]
        %s542 = scalar_lea.vmem [#allocation2], 48
        %543 = vst [vmem:[%s542 + $0x2] sm:$0xff] %v510
        %544 = vst [vmem:[%s542 + $0xa] sm:$0xff] %v511
        %545 = vst [vmem:[%s542 + $0x1a] sm:$0xff] %v512
        %546 = vst [vmem:[%s542 + $0x22] sm:$0xff] %v513
        %547 = vst [vmem:[%s542 + $0x32] sm:$0xff] %v514
        %548 = vst [vmem:[%s542 + $0x3a] sm:$0xff] %v515
        %549 = vst [vmem:[%s542 + $0x4a] sm:$0xff] %v516
        %550 = vst [vmem:[%s542 + $0x52] sm:$0xff] %v517
        %551 = vst [vmem:[%s542 + $0x62] sm:$0xff] %v518
        %552 = vst [vmem:[%s542 + $0x6a] sm:$0xff] %v519
        %553 = vst [vmem:[%s542 + $0x7a] sm:$0xff] %v520
        %554 = vst [vmem:[%s542 + $0x82] sm:$0xff] %v521
        %555 = vst [vmem:[%s542 + $0x92] sm:$0xff] %v522
        %556 = vst [vmem:[%s542 + $0x9a] sm:$0xff] %v523
        %557 = vst [vmem:[%s542 + $0xaa] sm:$0xff] %v524
        %558 = vst [vmem:[%s542 + $0xb2] sm:$0xff] %v525
        %559 = vst [vmem:[%s542 + $0xc2] sm:$0xff] %v526
        %560 = vst [vmem:[%s542 + $0xca] sm:$0xff] %v527
        %561 = vst [vmem:[%s542 + $0xda] sm:$0xff] %v528
        %562 = vst [vmem:[%s542 + $0xe2] sm:$0xff] %v529
        %563 = vst [vmem:[%s542 + $0xf2] sm:$0xff] %v530
        %564 = vst [vmem:[%s542 + $0xfa] sm:$0xff] %v531
        %565 = vst [vmem:[%s542 + $0x10a] sm:$0xff] %v532
        %566 = vst [vmem:[%s542 + $0x112] sm:$0xff] %v533
        %567 = vst [vmem:[%s542 + $0x122] sm:$0xff] %v534
        %568 = vst [vmem:[%s542 + $0x12a] sm:$0xff] %v535
        %569 = vst [vmem:[%s542 + $0x13a] sm:$0xff] %v536
        %570 = vst [vmem:[%s542 + $0x142] sm:$0xff] %v537
        %571 = vst [vmem:[%s542 + $0x152] sm:$0xff] %v538
        %572 = vst [vmem:[%s542 + $0x15a] sm:$0xff] %v539
        %573 = vst [vmem:[%s542 + $0x16a] sm:$0xff] %v540
        %574 = vst [vmem:[%s542 + $0x172] sm:$0xff] %v541
        %v575 = vld [vmem:[#allocation8] sm:$0xff]
        %v576 = vld [vmem:[#allocation8 + $0x8] sm:$0xff]
        %v577 = vld [vmem:[#allocation8 + $0x10] sm:$0xff]
        %v578 = vld [vmem:[#allocation8 + $0x18] sm:$0x1]
        %v579 = vld [vmem:[#allocation2] sm:$0xff]
        %v580 = vld [vmem:[#allocation2 + $0x8] sm:$0xff]
        %v581 = vld [vmem:[#allocation2 + $0x18] sm:$0xff]
        %v582 = vld [vmem:[#allocation2 + $0x20] sm:$0xff]
        %v583 = vld [vmem:[#allocation2 + $0x30] sm:$0xff]
        %v584 = vld [vmem:[#allocation2 + $0x38] sm:$0xff]
        %v585 = vld [vmem:[#allocation2 + $0x48] sm:$0xff]
        %v586 = vld [vmem:[#allocation2 + $0x50] sm:$0xff]
        %v587 = vld [vmem:[#allocation2 + $0x60] sm:$0xff]
        %v588 = vld [vmem:[#allocation2 + $0x68] sm:$0xff]
        %v589 = vld [vmem:[#allocation2 + $0x78] sm:$0xff]
        %v590 = vld [vmem:[#allocation2 + $0x80] sm:$0xff]
        %v591 = vld [vmem:[#allocation2 + $0x90] sm:$0xff]
        %v592 = vld [vmem:[#allocation2 + $0x98] sm:$0xff]
        %v593 = vld [vmem:[#allocation2 + $0xa8] sm:$0xff]
        %v594 = vld [vmem:[#allocation2 + $0xb0] sm:$0xff]
        %v595 = vld [vmem:[#allocation2 + $0xc0] sm:$0xff]
        %v596 = vld [vmem:[#allocation2 + $0xc8] sm:$0xff]
        %v597 = vld [vmem:[#allocation2 + $0xd8] sm:$0xff]
        %v598 = vld [vmem:[#allocation2 + $0xe0] sm:$0xff]
        %v599 = vld [vmem:[#allocation2 + $0xf0] sm:$0xff]
        %v600 = vld [vmem:[#allocation2 + $0xf8] sm:$0xff]
        %v601 = vld [vmem:[#allocation2 + $0x108] sm:$0xff]
        %v602 = vld [vmem:[#allocation2 + $0x110] sm:$0xff]
        %v603 = vld [vmem:[#allocation2 + $0x120] sm:$0xff]
        %v604 = vld [vmem:[#allocation2 + $0x128] sm:$0xff]
        %v605 = vld [vmem:[#allocation2 + $0x138] sm:$0xff]
        %v606 = vld [vmem:[#allocation2 + $0x140] sm:$0xff]
        %v607 = vld [vmem:[#allocation2 + $0x150] sm:$0xff]
        %v608 = vld [vmem:[#allocation2 + $0x158] sm:$0xff]
        %v609 = vld [vmem:[#allocation2 + $0x168] sm:$0xff]
        %v610 = vld [vmem:[#allocation2 + $0x170] sm:$0xff]
        %v611 = vld [vmem:[#allocation2 + $0x180] sm:$0xff]
        %v612 = vld [vmem:[#allocation2 + $0x188] sm:$0xff]
        %v613 = vld [vmem:[#allocation2 + $0x198] sm:$0xff]
        %v614 = vld [vmem:[#allocation2 + $0x1a0] sm:$0xff]
        %v615 = vld [vmem:[#allocation2 + $0x1b0] sm:$0xff]
        %v616 = vld [vmem:[#allocation2 + $0x1b8] sm:$0xff]
        %v617 = vld [vmem:[#allocation2 + $0x1c8] sm:$0xff]
        %v618 = vld [vmem:[#allocation2 + $0x1d0] sm:$0xff]
        %v619 = vlaneseq
        %v620 = vshrl.u32 %v619, 7
        %v621 = vsub.s32 0, %v620
        %v622 = vrot.slane %v575, %v621
        %v623 = vmul.f32 %v579, %v622
        %v624 = vmul.f32 %v580, %v622
        %v625 = vmul.f32 %v581, %v622
        %v626 = vmul.f32 %v582, %v622
        %v627 = vmul.f32 %v583, %v622
        %v628 = vmul.f32 %v584, %v622
        %v629 = vmul.f32 %v585, %v622
        %v630 = vmul.f32 %v586, %v622
        %v631 = vmul.f32 %v587, %v622
        %v632 = vmul.f32 %v588, %v622
        %v633 = vmul.f32 %v589, %v622
        %v634 = vmul.f32 %v590, %v622
        %v635 = vmul.f32 %v591, %v622
        %v636 = vmul.f32 %v592, %v622
        %v637 = vmul.f32 %v593, %v622
        %v638 = vmul.f32 %v594, %v622
        %v639 = vmul.f32 %v595, %v622
        %v640 = vmul.f32 %v596, %v622
        %v641 = vmul.f32 %v597, %v622
        %v642 = vmul.f32 %v598, %v622
        %v643 = vmul.f32 %v599, %v622
        %v644 = vmul.f32 %v600, %v622
        %v645 = vmul.f32 %v601, %v622
        %v646 = vmul.f32 %v602, %v622
        %v647 = vmul.f32 %v603, %v622
        %v648 = vmul.f32 %v604, %v622
        %v649 = vmul.f32 %v605, %v622
        %v650 = vmul.f32 %v606, %v622
        %v651 = vmul.f32 %v607, %v622
        %v652 = vmul.f32 %v608, %v622
        %v653 = vmul.f32 %v609, %v622
        %v654 = vmul.f32 %v610, %v622
        %v655 = vadd.f32 %v623, 0.0
        %v656 = vadd.f32 %v624, 0.0
        %v657 = vadd.f32 %v625, 0.0
        %v658 = vadd.f32 %v626, 0.0
        %v659 = vadd.f32 %v627, 0.0
        %v660 = vadd.f32 %v628, 0.0
        %v661 = vadd.f32 %v629, 0.0
        %v662 = vadd.f32 %v630, 0.0
        %v663 = vadd.f32 %v631, 0.0
        %v664 = vadd.f32 %v632, 0.0
        %v665 = vadd.f32 %v633, 0.0
        %v666 = vadd.f32 %v634, 0.0
        %v667 = vadd.f32 %v635, 0.0
        %v668 = vadd.f32 %v636, 0.0
        %v669 = vadd.f32 %v637, 0.0
        %v670 = vadd.f32 %v638, 0.0
        %v671 = vadd.f32 %v639, 0.0
        %v672 = vadd.f32 %v640, 0.0
        %v673 = vadd.f32 %v641, 0.0
        %v674 = vadd.f32 %v642, 0.0
        %v675 = vadd.f32 %v643, 0.0
        %v676 = vadd.f32 %v644, 0.0
        %v677 = vadd.f32 %v645, 0.0
        %v678 = vadd.f32 %v646, 0.0
        %v679 = vadd.f32 %v647, 0.0
        %v680 = vadd.f32 %v648, 0.0
        %v681 = vadd.f32 %v649, 0.0
        %v682 = vadd.f32 %v650, 0.0
        %v683 = vadd.f32 %v651, 0.0
        %v684 = vadd.f32 %v652, 0.0
        %v685 = vadd.f32 %v653, 0.0
        %v686 = vadd.f32 %v654, 0.0
        %v687 = vlaneseq
        %v688 = vshrl.u32 %v687, 7
        %v689 = vsub.s32 5, %v688
        %v690 = vrot.slane %v575, %v689
        %v691 = vmul.f32 %v581, %v690
        %v692 = vmul.f32 %v582, %v690
        %v693 = vmul.f32 %v583, %v690
        %v694 = vmul.f32 %v584, %v690
        %v695 = vmul.f32 %v585, %v690
        %v696 = vmul.f32 %v586, %v690
        %v697 = vmul.f32 %v587, %v690
        %v698 = vmul.f32 %v588, %v690
        %v699 = vmul.f32 %v589, %v690
        %v700 = vmul.f32 %v590, %v690
        %v701 = vmul.f32 %v591, %v690
        %v702 = vmul.f32 %v592, %v690
        %v703 = vmul.f32 %v593, %v690
        %v704 = vmul.f32 %v594, %v690
        %v705 = vmul.f32 %v595, %v690
        %v706 = vmul.f32 %v596, %v690
        %v707 = vmul.f32 %v597, %v690
        %v708 = vmul.f32 %v598, %v690
        %v709 = vmul.f32 %v599, %v690
        %v710 = vmul.f32 %v600, %v690
        %v711 = vmul.f32 %v601, %v690
        %v712 = vmul.f32 %v602, %v690
        %v713 = vmul.f32 %v603, %v690
        %v714 = vmul.f32 %v604, %v690
        %v715 = vmul.f32 %v605, %v690
        %v716 = vmul.f32 %v606, %v690
        %v717 = vmul.f32 %v607, %v690
        %v718 = vmul.f32 %v608, %v690
        %v719 = vmul.f32 %v609, %v690
        %v720 = vmul.f32 %v610, %v690
        %v721 = vmul.f32 %v611, %v690
        %v722 = vmul.f32 %v612, %v690
        %v723 = vadd.f32 %v655, %v691
        %v724 = vadd.f32 %v656, %v692
        %v725 = vadd.f32 %v657, %v693
        %v726 = vadd.f32 %v658, %v694
        %v727 = vadd.f32 %v659, %v695
        %v728 = vadd.f32 %v660, %v696
        %v729 = vadd.f32 %v661, %v697
        %v730 = vadd.f32 %v662, %v698
        %v731 = vadd.f32 %v663, %v699
        %v732 = vadd.f32 %v664, %v700
        %v733 = vadd.f32 %v665, %v701
        %v734 = vadd.f32 %v666, %v702
        %v735 = vadd.f32 %v667, %v703
        %v736 = vadd.f32 %v668, %v704
        %v737 = vadd.f32 %v669, %v705
        %v738 = vadd.f32 %v670, %v706
        %v739 = vadd.f32 %v671, %v707
        %v740 = vadd.f32 %v672, %v708
        %v741 = vadd.f32 %v673, %v709
        %v742 = vadd.f32 %v674, %v710
        %v743 = vadd.f32 %v675, %v711
        %v744 = vadd.f32 %v676, %v712
        %v745 = vadd.f32 %v677, %v713
        %v746 = vadd.f32 %v678, %v714
        %v747 = vadd.f32 %v679, %v715
        %v748 = vadd.f32 %v680, %v716
        %v749 = vadd.f32 %v681, %v717
        %v750 = vadd.f32 %v682, %v718
        %v751 = vadd.f32 %v683, %v719
        %v752 = vadd.f32 %v684, %v720
        %v753 = vadd.f32 %v685, %v721
        %v754 = vadd.f32 %v686, %v722
        %v755 = vlaneseq
        %v756 = vshrl.u32 %v755, 7
        %v757 = vsub.s32 2, %v756
        %v758 = vrot.slane %v576, %v757
        %v759 = vmul.f32 %v583, %v758
        %v760 = vmul.f32 %v584, %v758
        %v761 = vmul.f32 %v585, %v758
        %v762 = vmul.f32 %v586, %v758
        %v763 = vmul.f32 %v587, %v758
        %v764 = vmul.f32 %v588, %v758
        %v765 = vmul.f32 %v589, %v758
        %v766 = vmul.f32 %v590, %v758
        %v767 = vmul.f32 %v591, %v758
        %v768 = vmul.f32 %v592, %v758
        %v769 = vmul.f32 %v593, %v758
        %v770 = vmul.f32 %v594, %v758
        %v771 = vmul.f32 %v595, %v758
        %v772 = vmul.f32 %v596, %v758
        %v773 = vmul.f32 %v597, %v758
        %v774 = vmul.f32 %v598, %v758
        %v775 = vmul.f32 %v599, %v758
        %v776 = vmul.f32 %v600, %v758
        %v777 = vmul.f32 %v601, %v758
        %v778 = vmul.f32 %v602, %v758
        %v779 = vmul.f32 %v603, %v758
        %v780 = vmul.f32 %v604, %v758
        %v781 = vmul.f32 %v605, %v758
        %v782 = vmul.f32 %v606, %v758
        %v783 = vmul.f32 %v607, %v758
        %v784 = vmul.f32 %v608, %v758
        %v785 = vmul.f32 %v609, %v758
        %v786 = vmul.f32 %v610, %v758
        %v787 = vmul.f32 %v611, %v758
        %v788 = vmul.f32 %v612, %v758
        %v789 = vmul.f32 %v613, %v758
        %v790 = vmul.f32 %v614, %v758
        %v791 = vadd.f32 %v723, %v759
        %v792 = vadd.f32 %v724, %v760
        %v793 = vadd.f32 %v725, %v761
        %v794 = vadd.f32 %v726, %v762
        %v795 = vadd.f32 %v727, %v763
        %v796 = vadd.f32 %v728, %v764
        %v797 = vadd.f32 %v729, %v765
        %v798 = vadd.f32 %v730, %v766
        %v799 = vadd.f32 %v731, %v767
        %v800 = vadd.f32 %v732, %v768
        %v801 = vadd.f32 %v733, %v769
        %v802 = vadd.f32 %v734, %v770
        %v803 = vadd.f32 %v735, %v771
        %v804 = vadd.f32 %v736, %v772
        %v805 = vadd.f32 %v737, %v773
        %v806 = vadd.f32 %v738, %v774
        %v807 = vadd.f32 %v739, %v775
        %v808 = vadd.f32 %v740, %v776
        %v809 = vadd.f32 %v741, %v777
        %v810 = vadd.f32 %v742, %v778
        %v811 = vadd.f32 %v743, %v779
        %v812 = vadd.f32 %v744, %v780
        %v813 = vadd.f32 %v745, %v781
        %v814 = vadd.f32 %v746, %v782
        %v815 = vadd.f32 %v747, %v783
        %v816 = vadd.f32 %v748, %v784
        %v817 = vadd.f32 %v749, %v785
        %v818 = vadd.f32 %v750, %v786
        %v819 = vadd.f32 %v751, %v787
        %v820 = vadd.f32 %v752, %v788
        %v821 = vadd.f32 %v753, %v789
        %v822 = vadd.f32 %v754, %v790
        %v823 = vlaneseq
        %v824 = vshrl.u32 %v823, 7
        %v825 = vsub.s32 7, %v824
        %v826 = vrot.slane %v576, %v825
        %v827 = vmul.f32 %v585, %v826
        %v828 = vmul.f32 %v586, %v826
        %v829 = vmul.f32 %v587, %v826
        %v830 = vmul.f32 %v588, %v826
        %v831 = vmul.f32 %v589, %v826
        %v832 = vmul.f32 %v590, %v826
        %v833 = vmul.f32 %v591, %v826
        %v834 = vmul.f32 %v592, %v826
        %v835 = vmul.f32 %v593, %v826
        %v836 = vmul.f32 %v594, %v826
        %v837 = vmul.f32 %v595, %v826
        %v838 = vmul.f32 %v596, %v826
        %v839 = vmul.f32 %v597, %v826
        %v840 = vmul.f32 %v598, %v826
        %v841 = vmul.f32 %v599, %v826
        %v842 = vmul.f32 %v600, %v826
        %v843 = vmul.f32 %v601, %v826
        %v844 = vmul.f32 %v602, %v826
        %v845 = vmul.f32 %v603, %v826
        %v846 = vmul.f32 %v604, %v826
        %v847 = vmul.f32 %v605, %v826
        %v848 = vmul.f32 %v606, %v826
        %v849 = vmul.f32 %v607, %v826
        %v850 = vmul.f32 %v608, %v826
        %v851 = vmul.f32 %v609, %v826
        %v852 = vmul.f32 %v610, %v826
        %v853 = vmul.f32 %v611, %v826
        %v854 = vmul.f32 %v612, %v826
        %v855 = vmul.f32 %v613, %v826
        %v856 = vmul.f32 %v614, %v826
        %v857 = vmul.f32 %v615, %v826
        %v858 = vmul.f32 %v616, %v826
        %v859 = vadd.f32 %v791, %v827
        %v860 = vadd.f32 %v792, %v828
        %v861 = vadd.f32 %v793, %v829
        %v862 = vadd.f32 %v794, %v830
        %v863 = vadd.f32 %v795, %v831
        %v864 = vadd.f32 %v796, %v832
        %v865 = vadd.f32 %v797, %v833
        %v866 = vadd.f32 %v798, %v834
        %v867 = vadd.f32 %v799, %v835
        %v868 = vadd.f32 %v800, %v836
        %v869 = vadd.f32 %v801, %v837
        %v870 = vadd.f32 %v802, %v838
        %v871 = vadd.f32 %v803, %v839
        %v872 = vadd.f32 %v804, %v840
        %v873 = vadd.f32 %v805, %v841
        %v874 = vadd.f32 %v806, %v842
        %v875 = vadd.f32 %v807, %v843
        %v876 = vadd.f32 %v808, %v844
        %v877 = vadd.f32 %v809, %v845
        %v878 = vadd.f32 %v810, %v846
        %v879 = vadd.f32 %v811, %v847
        %v880 = vadd.f32 %v812, %v848
        %v881 = vadd.f32 %v813, %v849
        %v882 = vadd.f32 %v814, %v850
        %v883 = vadd.f32 %v815, %v851
        %v884 = vadd.f32 %v816, %v852
        %v885 = vadd.f32 %v817, %v853
        %v886 = vadd.f32 %v818, %v854
        %v887 = vadd.f32 %v819, %v855
        %v888 = vadd.f32 %v820, %v856
        %v889 = vadd.f32 %v821, %v857
        %v890 = vadd.f32 %v822, %v858
        %v891 = vlaneseq
        %v892 = vshrl.u32 %v891, 7
        %v893 = vsub.s32 4, %v892
        %v894 = vrot.slane %v577, %v893
        %v895 = vmul.f32 %v587, %v894
        %v896 = vmul.f32 %v588, %v894
        %v897 = vmul.f32 %v589, %v894
        %v898 = vmul.f32 %v590, %v894
        %v899 = vmul.f32 %v591, %v894
        %v900 = vmul.f32 %v592, %v894
        %v901 = vmul.f32 %v593, %v894
        %v902 = vmul.f32 %v594, %v894
        %v903 = vmul.f32 %v595, %v894
        %v904 = vmul.f32 %v596, %v894
        %v905 = vmul.f32 %v597, %v894
        %v906 = vmul.f32 %v598, %v894
        %v907 = vmul.f32 %v599, %v894
        %v908 = vmul.f32 %v600, %v894
        %v909 = vmul.f32 %v601, %v894
        %v910 = vmul.f32 %v602, %v894
        %v911 = vmul.f32 %v603, %v894
        %v912 = vmul.f32 %v604, %v894
        %v913 = vmul.f32 %v605, %v894
        %v914 = vmul.f32 %v606, %v894
        %v915 = vmul.f32 %v607, %v894
        %v916 = vmul.f32 %v608, %v894
        %v917 = vmul.f32 %v609, %v894
        %v918 = vmul.f32 %v610, %v894
        %v919 = vmul.f32 %v611, %v894
        %v920 = vmul.f32 %v612, %v894
        %v921 = vmul.f32 %v613, %v894
        %v922 = vmul.f32 %v614, %v894
        %v923 = vmul.f32 %v615, %v894
        %v924 = vmul.f32 %v616, %v894
        %v925 = vmul.f32 %v617, %v894
        %v926 = vmul.f32 %v618, %v894
        %v927 = vadd.f32 %v859, %v895
        %v928 = vadd.f32 %v860, %v896
        %v929 = vadd.f32 %v861, %v897
        %v930 = vadd.f32 %v862, %v898
        %v931 = vadd.f32 %v863, %v899
        %v932 = vadd.f32 %v864, %v900
        %v933 = vadd.f32 %v865, %v901
        %v934 = vadd.f32 %v866, %v902
        %v935 = vadd.f32 %v867, %v903
        %v936 = vadd.f32 %v868, %v904
        %v937 = vadd.f32 %v869, %v905
        %v938 = vadd.f32 %v870, %v906
        %v939 = vadd.f32 %v871, %v907
        %v940 = vadd.f32 %v872, %v908
        %v941 = vadd.f32 %v873, %v909
        %v942 = vadd.f32 %v874, %v910
        %v943 = vadd.f32 %v875, %v911
        %v944 = vadd.f32 %v876, %v912
        %v945 = vadd.f32 %v877, %v913
        %v946 = vadd.f32 %v878, %v914
        %v947 = vadd.f32 %v879, %v915
        %v948 = vadd.f32 %v880, %v916
        %v949 = vadd.f32 %v881, %v917
        %v950 = vadd.f32 %v882, %v918
        %v951 = vadd.f32 %v883, %v919
        %v952 = vadd.f32 %v884, %v920
        %v953 = vadd.f32 %v885, %v921
        %v954 = vadd.f32 %v886, %v922
        %v955 = vadd.f32 %v887, %v923
        %v956 = vadd.f32 %v888, %v924
        %v957 = vadd.f32 %v889, %v925
        %v958 = vadd.f32 %v890, %v926
        %v959 = vld [vmem:[#allocation2 + $0x1] sm:$0xff]
        %v960 = vld [vmem:[#allocation2 + $0x9] sm:$0xff]
        %v961 = vld [vmem:[#allocation2 + $0x19] sm:$0xff]
        %v962 = vld [vmem:[#allocation2 + $0x21] sm:$0xff]
        %v963 = vld [vmem:[#allocation2 + $0x31] sm:$0xff]
        %v964 = vld [vmem:[#allocation2 + $0x39] sm:$0xff]
        %v965 = vld [vmem:[#allocation2 + $0x49] sm:$0xff]
        %v966 = vld [vmem:[#allocation2 + $0x51] sm:$0xff]
        %v967 = vld [vmem:[#allocation2 + $0x61] sm:$0xff]
        %v968 = vld [vmem:[#allocation2 + $0x69] sm:$0xff]
        %v969 = vld [vmem:[#allocation2 + $0x79] sm:$0xff]
        %v970 = vld [vmem:[#allocation2 + $0x81] sm:$0xff]
        %v971 = vld [vmem:[#allocation2 + $0x91] sm:$0xff]
        %v972 = vld [vmem:[#allocation2 + $0x99] sm:$0xff]
        %v973 = vld [vmem:[#allocation2 + $0xa9] sm:$0xff]
        %v974 = vld [vmem:[#allocation2 + $0xb1] sm:$0xff]
        %v975 = vld [vmem:[#allocation2 + $0xc1] sm:$0xff]
        %v976 = vld [vmem:[#allocation2 + $0xc9] sm:$0xff]
        %v977 = vld [vmem:[#allocation2 + $0xd9] sm:$0xff]
        %v978 = vld [vmem:[#allocation2 + $0xe1] sm:$0xff]
        %v979 = vld [vmem:[#allocation2 + $0xf1] sm:$0xff]
        %v980 = vld [vmem:[#allocation2 + $0xf9] sm:$0xff]
        %v981 = vld [vmem:[#allocation2 + $0x109] sm:$0xff]
        %v982 = vld [vmem:[#allocation2 + $0x111] sm:$0xff]
        %v983 = vld [vmem:[#allocation2 + $0x121] sm:$0xff]
        %v984 = vld [vmem:[#allocation2 + $0x129] sm:$0xff]
        %v985 = vld [vmem:[#allocation2 + $0x139] sm:$0xff]
        %v986 = vld [vmem:[#allocation2 + $0x141] sm:$0xff]
        %v987 = vld [vmem:[#allocation2 + $0x151] sm:$0xff]
        %v988 = vld [vmem:[#allocation2 + $0x159] sm:$0xff]
        %v989 = vld [vmem:[#allocation2 + $0x169] sm:$0xff]
        %v990 = vld [vmem:[#allocation2 + $0x171] sm:$0xff]
        %v991 = vld [vmem:[#allocation2 + $0x181] sm:$0xff]
        %v992 = vld [vmem:[#allocation2 + $0x189] sm:$0xff]
        %v993 = vld [vmem:[#allocation2 + $0x199] sm:$0xff]
        %v994 = vld [vmem:[#allocation2 + $0x1a1] sm:$0xff]
        %v995 = vld [vmem:[#allocation2 + $0x1b1] sm:$0xff]
        %v996 = vld [vmem:[#allocation2 + $0x1b9] sm:$0xff]
        %v997 = vld [vmem:[#allocation2 + $0x1c9] sm:$0xff]
        %v998 = vld [vmem:[#allocation2 + $0x1d1] sm:$0xff]
        %v999 = vlaneseq
        %v1000 = vshrl.u32 %v999, 7
        %v1001 = vsub.s32 1, %v1000
        %v1002 = vrot.slane %v575, %v1001
        %v1003 = vmul.f32 %v959, %v1002
        %v1004 = vmul.f32 %v960, %v1002
        %v1005 = vmul.f32 %v961, %v1002
        %v1006 = vmul.f32 %v962, %v1002
        %v1007 = vmul.f32 %v963, %v1002
        %v1008 = vmul.f32 %v964, %v1002
        %v1009 = vmul.f32 %v965, %v1002
        %v1010 = vmul.f32 %v966, %v1002
        %v1011 = vmul.f32 %v967, %v1002
        %v1012 = vmul.f32 %v968, %v1002
        %v1013 = vmul.f32 %v969, %v1002
        %v1014 = vmul.f32 %v970, %v1002
        %v1015 = vmul.f32 %v971, %v1002
        %v1016 = vmul.f32 %v972, %v1002
        %v1017 = vmul.f32 %v973, %v1002
        %v1018 = vmul.f32 %v974, %v1002
        %v1019 = vmul.f32 %v975, %v1002
        %v1020 = vmul.f32 %v976, %v1002
        %v1021 = vmul.f32 %v977, %v1002
        %v1022 = vmul.f32 %v978, %v1002
        %v1023 = vmul.f32 %v979, %v1002
        %v1024 = vmul.f32 %v980, %v1002
        %v1025 = vmul.f32 %v981, %v1002
        %v1026 = vmul.f32 %v982, %v1002
        %v1027 = vmul.f32 %v983, %v1002
        %v1028 = vmul.f32 %v984, %v1002
        %v1029 = vmul.f32 %v985, %v1002
        %v1030 = vmul.f32 %v986, %v1002
        %v1031 = vmul.f32 %v987, %v1002
        %v1032 = vmul.f32 %v988, %v1002
        %v1033 = vmul.f32 %v989, %v1002
        %v1034 = vmul.f32 %v990, %v1002
        %v1035 = vadd.f32 %v927, %v1003
        %v1036 = vadd.f32 %v928, %v1004
        %v1037 = vadd.f32 %v929, %v1005
        %v1038 = vadd.f32 %v930, %v1006
        %v1039 = vadd.f32 %v931, %v1007
        %v1040 = vadd.f32 %v932, %v1008
        %v1041 = vadd.f32 %v933, %v1009
        %v1042 = vadd.f32 %v934, %v1010
        %v1043 = vadd.f32 %v935, %v1011
        %v1044 = vadd.f32 %v936, %v1012
        %v1045 = vadd.f32 %v937, %v1013
        %v1046 = vadd.f32 %v938, %v1014
        %v1047 = vadd.f32 %v939, %v1015
        %v1048 = vadd.f32 %v940, %v1016
        %v1049 = vadd.f32 %v941, %v1017
        %v1050 = vadd.f32 %v942, %v1018
        %v1051 = vadd.f32 %v943, %v1019
        %v1052 = vadd.f32 %v944, %v1020
        %v1053 = vadd.f32 %v945, %v1021
        %v1054 = vadd.f32 %v946, %v1022
        %v1055 = vadd.f32 %v947, %v1023
        %v1056 = vadd.f32 %v948, %v1024
        %v1057 = vadd.f32 %v949, %v1025
        %v1058 = vadd.f32 %v950, %v1026
        %v1059 = vadd.f32 %v951, %v1027
        %v1060 = vadd.f32 %v952, %v1028
        %v1061 = vadd.f32 %v953, %v1029
        %v1062 = vadd.f32 %v954, %v1030
        %v1063 = vadd.f32 %v955, %v1031
        %v1064 = vadd.f32 %v956, %v1032
        %v1065 = vadd.f32 %v957, %v1033
        %v1066 = vadd.f32 %v958, %v1034
        %v1067 = vlaneseq
        %v1068 = vshrl.u32 %v1067, 7
        %v1069 = vsub.s32 6, %v1068
        %v1070 = vrot.slane %v575, %v1069
        %v1071 = vmul.f32 %v961, %v1070
        %v1072 = vmul.f32 %v962, %v1070
        %v1073 = vmul.f32 %v963, %v1070
        %v1074 = vmul.f32 %v964, %v1070
        %v1075 = vmul.f32 %v965, %v1070
        %v1076 = vmul.f32 %v966, %v1070
        %v1077 = vmul.f32 %v967, %v1070
        %v1078 = vmul.f32 %v968, %v1070
        %v1079 = vmul.f32 %v969, %v1070
        %v1080 = vmul.f32 %v970, %v1070
        %v1081 = vmul.f32 %v971, %v1070
        %v1082 = vmul.f32 %v972, %v1070
        %v1083 = vmul.f32 %v973, %v1070
        %v1084 = vmul.f32 %v974, %v1070
        %v1085 = vmul.f32 %v975, %v1070
        %v1086 = vmul.f32 %v976, %v1070
        %v1087 = vmul.f32 %v977, %v1070
        %v1088 = vmul.f32 %v978, %v1070
        %v1089 = vmul.f32 %v979, %v1070
        %v1090 = vmul.f32 %v980, %v1070
        %v1091 = vmul.f32 %v981, %v1070
        %v1092 = vmul.f32 %v982, %v1070
        %v1093 = vmul.f32 %v983, %v1070
        %v1094 = vmul.f32 %v984, %v1070
        %v1095 = vmul.f32 %v985, %v1070
        %v1096 = vmul.f32 %v986, %v1070
        %v1097 = vmul.f32 %v987, %v1070
        %v1098 = vmul.f32 %v988, %v1070
        %v1099 = vmul.f32 %v989, %v1070
        %v1100 = vmul.f32 %v990, %v1070
        %v1101 = vmul.f32 %v991, %v1070
        %v1102 = vmul.f32 %v992, %v1070
        %v1103 = vadd.f32 %v1035, %v1071
        %v1104 = vadd.f32 %v1036, %v1072
        %v1105 = vadd.f32 %v1037, %v1073
        %v1106 = vadd.f32 %v1038, %v1074
        %v1107 = vadd.f32 %v1039, %v1075
        %v1108 = vadd.f32 %v1040, %v1076
        %v1109 = vadd.f32 %v1041, %v1077
        %v1110 = vadd.f32 %v1042, %v1078
        %v1111 = vadd.f32 %v1043, %v1079
        %v1112 = vadd.f32 %v1044, %v1080
        %v1113 = vadd.f32 %v1045, %v1081
        %v1114 = vadd.f32 %v1046, %v1082
        %v1115 = vadd.f32 %v1047, %v1083
        %v1116 = vadd.f32 %v1048, %v1084
        %v1117 = vadd.f32 %v1049, %v1085
        %v1118 = vadd.f32 %v1050, %v1086
        %v1119 = vadd.f32 %v1051, %v1087
        %v1120 = vadd.f32 %v1052, %v1088
        %v1121 = vadd.f32 %v1053, %v1089
        %v1122 = vadd.f32 %v1054, %v1090
        %v1123 = vadd.f32 %v1055, %v1091
        %v1124 = vadd.f32 %v1056, %v1092
        %v1125 = vadd.f32 %v1057, %v1093
        %v1126 = vadd.f32 %v1058, %v1094
        %v1127 = vadd.f32 %v1059, %v1095
        %v1128 = vadd.f32 %v1060, %v1096
        %v1129 = vadd.f32 %v1061, %v1097
        %v1130 = vadd.f32 %v1062, %v1098
        %v1131 = vadd.f32 %v1063, %v1099
        %v1132 = vadd.f32 %v1064, %v1100
        %v1133 = vadd.f32 %v1065, %v1101
        %v1134 = vadd.f32 %v1066, %v1102
        %v1135 = vlaneseq
        %v1136 = vshrl.u32 %v1135, 7
        %v1137 = vsub.s32 3, %v1136
        %v1138 = vrot.slane %v576, %v1137
        %v1139 = vmul.f32 %v963, %v1138
        %v1140 = vmul.f32 %v964, %v1138
        %v1141 = vmul.f32 %v965, %v1138
        %v1142 = vmul.f32 %v966, %v1138
        %v1143 = vmul.f32 %v967, %v1138
        %v1144 = vmul.f32 %v968, %v1138
        %v1145 = vmul.f32 %v969, %v1138
        %v1146 = vmul.f32 %v970, %v1138
        %v1147 = vmul.f32 %v971, %v1138
        %v1148 = vmul.f32 %v972, %v1138
        %v1149 = vmul.f32 %v973, %v1138
        %v1150 = vmul.f32 %v974, %v1138
        %v1151 = vmul.f32 %v975, %v1138
        %v1152 = vmul.f32 %v976, %v1138
        %v1153 = vmul.f32 %v977, %v1138
        %v1154 = vmul.f32 %v978, %v1138
        %v1155 = vmul.f32 %v979, %v1138
        %v1156 = vmul.f32 %v980, %v1138
        %v1157 = vmul.f32 %v981, %v1138
        %v1158 = vmul.f32 %v982, %v1138
        %v1159 = vmul.f32 %v983, %v1138
        %v1160 = vmul.f32 %v984, %v1138
        %v1161 = vmul.f32 %v985, %v1138
        %v1162 = vmul.f32 %v986, %v1138
        %v1163 = vmul.f32 %v987, %v1138
        %v1164 = vmul.f32 %v988, %v1138
        %v1165 = vmul.f32 %v989, %v1138
        %v1166 = vmul.f32 %v990, %v1138
        %v1167 = vmul.f32 %v991, %v1138
        %v1168 = vmul.f32 %v992, %v1138
        %v1169 = vmul.f32 %v993, %v1138
        %v1170 = vmul.f32 %v994, %v1138
        %v1171 = vadd.f32 %v1103, %v1139
        %v1172 = vadd.f32 %v1104, %v1140
        %v1173 = vadd.f32 %v1105, %v1141
        %v1174 = vadd.f32 %v1106, %v1142
        %v1175 = vadd.f32 %v1107, %v1143
        %v1176 = vadd.f32 %v1108, %v1144
        %v1177 = vadd.f32 %v1109, %v1145
        %v1178 = vadd.f32 %v1110, %v1146
        %v1179 = vadd.f32 %v1111, %v1147
        %v1180 = vadd.f32 %v1112, %v1148
        %v1181 = vadd.f32 %v1113, %v1149
        %v1182 = vadd.f32 %v1114, %v1150
        %v1183 = vadd.f32 %v1115, %v1151
        %v1184 = vadd.f32 %v1116, %v1152
        %v1185 = vadd.f32 %v1117, %v1153
        %v1186 = vadd.f32 %v1118, %v1154
        %v1187 = vadd.f32 %v1119, %v1155
        %v1188 = vadd.f32 %v1120, %v1156
        %v1189 = vadd.f32 %v1121, %v1157
        %v1190 = vadd.f32 %v1122, %v1158
        %v1191 = vadd.f32 %v1123, %v1159
        %v1192 = vadd.f32 %v1124, %v1160
        %v1193 = vadd.f32 %v1125, %v1161
        %v1194 = vadd.f32 %v1126, %v1162
        %v1195 = vadd.f32 %v1127, %v1163
        %v1196 = vadd.f32 %v1128, %v1164
        %v1197 = vadd.f32 %v1129, %v1165
        %v1198 = vadd.f32 %v1130, %v1166
        %v1199 = vadd.f32 %v1131, %v1167
        %v1200 = vadd.f32 %v1132, %v1168
        %v1201 = vadd.f32 %v1133, %v1169
        %v1202 = vadd.f32 %v1134, %v1170
        %v1203 = vlaneseq
        %v1204 = vshrl.u32 %v1203, 7
        %v1205 = vsub.s32 0, %v1204
        %v1206 = vrot.slane %v577, %v1205
        %v1207 = vmul.f32 %v965, %v1206
        %v1208 = vmul.f32 %v966, %v1206
        %v1209 = vmul.f32 %v967, %v1206
        %v1210 = vmul.f32 %v968, %v1206
        %v1211 = vmul.f32 %v969, %v1206
        %v1212 = vmul.f32 %v970, %v1206
        %v1213 = vmul.f32 %v971, %v1206
        %v1214 = vmul.f32 %v972, %v1206
        %v1215 = vmul.f32 %v973, %v1206
        %v1216 = vmul.f32 %v974, %v1206
        %v1217 = vmul.f32 %v975, %v1206
        %v1218 = vmul.f32 %v976, %v1206
        %v1219 = vmul.f32 %v977, %v1206
        %v1220 = vmul.f32 %v978, %v1206
        %v1221 = vmul.f32 %v979, %v1206
        %v1222 = vmul.f32 %v980, %v1206
        %v1223 = vmul.f32 %v981, %v1206
        %v1224 = vmul.f32 %v982, %v1206
        %v1225 = vmul.f32 %v983, %v1206
        %v1226 = vmul.f32 %v984, %v1206
        %v1227 = vmul.f32 %v985, %v1206
        %v1228 = vmul.f32 %v986, %v1206
        %v1229 = vmul.f32 %v987, %v1206
        %v1230 = vmul.f32 %v988, %v1206
        %v1231 = vmul.f32 %v989, %v1206
        %v1232 = vmul.f32 %v990, %v1206
        %v1233 = vmul.f32 %v991, %v1206
        %v1234 = vmul.f32 %v992, %v1206
        %v1235 = vmul.f32 %v993, %v1206
        %v1236 = vmul.f32 %v994, %v1206
        %v1237 = vmul.f32 %v995, %v1206
        %v1238 = vmul.f32 %v996, %v1206
        %v1239 = vadd.f32 %v1171, %v1207
        %v1240 = vadd.f32 %v1172, %v1208
        %v1241 = vadd.f32 %v1173, %v1209
        %v1242 = vadd.f32 %v1174, %v1210
        %v1243 = vadd.f32 %v1175, %v1211
        %v1244 = vadd.f32 %v1176, %v1212
        %v1245 = vadd.f32 %v1177, %v1213
        %v1246 = vadd.f32 %v1178, %v1214
        %v1247 = vadd.f32 %v1179, %v1215
        %v1248 = vadd.f32 %v1180, %v1216
        %v1249 = vadd.f32 %v1181, %v1217
        %v1250 = vadd.f32 %v1182, %v1218
        %v1251 = vadd.f32 %v1183, %v1219
        %v1252 = vadd.f32 %v1184, %v1220
        %v1253 = vadd.f32 %v1185, %v1221
        %v1254 = vadd.f32 %v1186, %v1222
        %v1255 = vadd.f32 %v1187, %v1223
        %v1256 = vadd.f32 %v1188, %v1224
        %v1257 = vadd.f32 %v1189, %v1225
        %v1258 = vadd.f32 %v1190, %v1226
        %v1259 = vadd.f32 %v1191, %v1227
        %v1260 = vadd.f32 %v1192, %v1228
        %v1261 = vadd.f32 %v1193, %v1229
        %v1262 = vadd.f32 %v1194, %v1230
        %v1263 = vadd.f32 %v1195, %v1231
        %v1264 = vadd.f32 %v1196, %v1232
        %v1265 = vadd.f32 %v1197, %v1233
        %v1266 = vadd.f32 %v1198, %v1234
        %v1267 = vadd.f32 %v1199, %v1235
        %v1268 = vadd.f32 %v1200, %v1236
        %v1269 = vadd.f32 %v1201, %v1237
        %v1270 = vadd.f32 %v1202, %v1238
        %v1271 = vlaneseq
        %v1272 = vshrl.u32 %v1271, 7
        %v1273 = vsub.s32 5, %v1272
        %v1274 = vrot.slane %v577, %v1273
        %v1275 = vmul.f32 %v967, %v1274
        %v1276 = vmul.f32 %v968, %v1274
        %v1277 = vmul.f32 %v969, %v1274
        %v1278 = vmul.f32 %v970, %v1274
        %v1279 = vmul.f32 %v971, %v1274
        %v1280 = vmul.f32 %v972, %v1274
        %v1281 = vmul.f32 %v973, %v1274
        %v1282 = vmul.f32 %v974, %v1274
        %v1283 = vmul.f32 %v975, %v1274
        %v1284 = vmul.f32 %v976, %v1274
        %v1285 = vmul.f32 %v977, %v1274
        %v1286 = vmul.f32 %v978, %v1274
        %v1287 = vmul.f32 %v979, %v1274
        %v1288 = vmul.f32 %v980, %v1274
        %v1289 = vmul.f32 %v981, %v1274
        %v1290 = vmul.f32 %v982, %v1274
        %v1291 = vmul.f32 %v983, %v1274
        %v1292 = vmul.f32 %v984, %v1274
        %v1293 = vmul.f32 %v985, %v1274
        %v1294 = vmul.f32 %v986, %v1274
        %v1295 = vmul.f32 %v987, %v1274
        %v1296 = vmul.f32 %v988, %v1274
        %v1297 = vmul.f32 %v989, %v1274
        %v1298 = vmul.f32 %v990, %v1274
        %v1299 = vmul.f32 %v991, %v1274
        %v1300 = vmul.f32 %v992, %v1274
        %v1301 = vmul.f32 %v993, %v1274
        %v1302 = vmul.f32 %v994, %v1274
        %v1303 = vmul.f32 %v995, %v1274
        %v1304 = vmul.f32 %v996, %v1274
        %v1305 = vmul.f32 %v997, %v1274
        %v1306 = vmul.f32 %v998, %v1274
        %v1307 = vadd.f32 %v1239, %v1275
        %v1308 = vadd.f32 %v1240, %v1276
        %v1309 = vadd.f32 %v1241, %v1277
        %v1310 = vadd.f32 %v1242, %v1278
        %v1311 = vadd.f32 %v1243, %v1279
        %v1312 = vadd.f32 %v1244, %v1280
        %v1313 = vadd.f32 %v1245, %v1281
        %v1314 = vadd.f32 %v1246, %v1282
        %v1315 = vadd.f32 %v1247, %v1283
        %v1316 = vadd.f32 %v1248, %v1284
        %v1317 = vadd.f32 %v1249, %v1285
        %v1318 = vadd.f32 %v1250, %v1286
        %v1319 = vadd.f32 %v1251, %v1287
        %v1320 = vadd.f32 %v1252, %v1288
        %v1321 = vadd.f32 %v1253, %v1289
        %v1322 = vadd.f32 %v1254, %v1290
        %v1323 = vadd.f32 %v1255, %v1291
        %v1324 = vadd.f32 %v1256, %v1292
        %v1325 = vadd.f32 %v1257, %v1293
        %v1326 = vadd.f32 %v1258, %v1294
        %v1327 = vadd.f32 %v1259, %v1295
        %v1328 = vadd.f32 %v1260, %v1296
        %v1329 = vadd.f32 %v1261, %v1297
        %v1330 = vadd.f32 %v1262, %v1298
        %v1331 = vadd.f32 %v1263, %v1299
        %v1332 = vadd.f32 %v1264, %v1300
        %v1333 = vadd.f32 %v1265, %v1301
        %v1334 = vadd.f32 %v1266, %v1302
        %v1335 = vadd.f32 %v1267, %v1303
        %v1336 = vadd.f32 %v1268, %v1304
        %v1337 = vadd.f32 %v1269, %v1305
        %v1338 = vadd.f32 %v1270, %v1306
        %v1339 = vld [vmem:[#allocation2 + $0x2] sm:$0xff]
        %v1340 = vld [vmem:[#allocation2 + $0xa] sm:$0xff]
        %v1341 = vld [vmem:[#allocation2 + $0x1a] sm:$0xff]
        %v1342 = vld [vmem:[#allocation2 + $0x22] sm:$0xff]
        %v1343 = vld [vmem:[#allocation2 + $0x32] sm:$0xff]
        %v1344 = vld [vmem:[#allocation2 + $0x3a] sm:$0xff]
        %v1345 = vld [vmem:[#allocation2 + $0x4a] sm:$0xff]
        %v1346 = vld [vmem:[#allocation2 + $0x52] sm:$0xff]
        %v1347 = vld [vmem:[#allocation2 + $0x62] sm:$0xff]
        %v1348 = vld [vmem:[#allocation2 + $0x6a] sm:$0xff]
        %v1349 = vld [vmem:[#allocation2 + $0x7a] sm:$0xff]
        %v1350 = vld [vmem:[#allocation2 + $0x82] sm:$0xff]
        %v1351 = vld [vmem:[#allocation2 + $0x92] sm:$0xff]
        %v1352 = vld [vmem:[#allocation2 + $0x9a] sm:$0xff]
        %v1353 = vld [vmem:[#allocation2 + $0xaa] sm:$0xff]
        %v1354 = vld [vmem:[#allocation2 + $0xb2] sm:$0xff]
        %v1355 = vld [vmem:[#allocation2 + $0xc2] sm:$0xff]
        %v1356 = vld [vmem:[#allocation2 + $0xca] sm:$0xff]
        %v1357 = vld [vmem:[#allocation2 + $0xda] sm:$0xff]
        %v1358 = vld [vmem:[#allocation2 + $0xe2] sm:$0xff]
        %v1359 = vld [vmem:[#allocation2 + $0xf2] sm:$0xff]
        %v1360 = vld [vmem:[#allocation2 + $0xfa] sm:$0xff]
        %v1361 = vld [vmem:[#allocation2 + $0x10a] sm:$0xff]
        %v1362 = vld [vmem:[#allocation2 + $0x112] sm:$0xff]
        %v1363 = vld [vmem:[#allocation2 + $0x122] sm:$0xff]
        %v1364 = vld [vmem:[#allocation2 + $0x12a] sm:$0xff]
        %v1365 = vld [vmem:[#allocation2 + $0x13a] sm:$0xff]
        %v1366 = vld [vmem:[#allocation2 + $0x142] sm:$0xff]
        %v1367 = vld [vmem:[#allocation2 + $0x152] sm:$0xff]
        %v1368 = vld [vmem:[#allocation2 + $0x15a] sm:$0xff]
        %v1369 = vld [vmem:[#allocation2 + $0x16a] sm:$0xff]
        %v1370 = vld [vmem:[#allocation2 + $0x172] sm:$0xff]
        %v1371 = vld [vmem:[#allocation2 + $0x182] sm:$0xff]
        %v1372 = vld [vmem:[#allocation2 + $0x18a] sm:$0xff]
        %v1373 = vld [vmem:[#allocation2 + $0x19a] sm:$0xff]
        %v1374 = vld [vmem:[#allocation2 + $0x1a2] sm:$0xff]
        %v1375 = vld [vmem:[#allocation2 + $0x1b2] sm:$0xff]
        %v1376 = vld [vmem:[#allocation2 + $0x1ba] sm:$0xff]
        %v1377 = vld [vmem:[#allocation2 + $0x1ca] sm:$0xff]
        %v1378 = vld [vmem:[#allocation2 + $0x1d2] sm:$0xff]
        %v1379 = vlaneseq
        %v1380 = vshrl.u32 %v1379, 7
        %v1381 = vsub.s32 2, %v1380
        %v1382 = vrot.slane %v575, %v1381
        %v1383 = vmul.f32 %v1339, %v1382
        %v1384 = vmul.f32 %v1340, %v1382
        %v1385 = vmul.f32 %v1341, %v1382
        %v1386 = vmul.f32 %v1342, %v1382
        %v1387 = vmul.f32 %v1343, %v1382
        %v1388 = vmul.f32 %v1344, %v1382
        %v1389 = vmul.f32 %v1345, %v1382
        %v1390 = vmul.f32 %v1346, %v1382
        %v1391 = vmul.f32 %v1347, %v1382
        %v1392 = vmul.f32 %v1348, %v1382
        %v1393 = vmul.f32 %v1349, %v1382
        %v1394 = vmul.f32 %v1350, %v1382
        %v1395 = vmul.f32 %v1351, %v1382
        %v1396 = vmul.f32 %v1352, %v1382
        %v1397 = vmul.f32 %v1353, %v1382
        %v1398 = vmul.f32 %v1354, %v1382
        %v1399 = vmul.f32 %v1355, %v1382
        %v1400 = vmul.f32 %v1356, %v1382
        %v1401 = vmul.f32 %v1357, %v1382
        %v1402 = vmul.f32 %v1358, %v1382
        %v1403 = vmul.f32 %v1359, %v1382
        %v1404 = vmul.f32 %v1360, %v1382
        %v1405 = vmul.f32 %v1361, %v1382
        %v1406 = vmul.f32 %v1362, %v1382
        %v1407 = vmul.f32 %v1363, %v1382
        %v1408 = vmul.f32 %v1364, %v1382
        %v1409 = vmul.f32 %v1365, %v1382
        %v1410 = vmul.f32 %v1366, %v1382
        %v1411 = vmul.f32 %v1367, %v1382
        %v1412 = vmul.f32 %v1368, %v1382
        %v1413 = vmul.f32 %v1369, %v1382
        %v1414 = vmul.f32 %v1370, %v1382
        %v1415 = vadd.f32 %v1307, %v1383
        %v1416 = vadd.f32 %v1308, %v1384
        %v1417 = vadd.f32 %v1309, %v1385
        %v1418 = vadd.f32 %v1310, %v1386
        %v1419 = vadd.f32 %v1311, %v1387
        %v1420 = vadd.f32 %v1312, %v1388
        %v1421 = vadd.f32 %v1313, %v1389
        %v1422 = vadd.f32 %v1314, %v1390
        %v1423 = vadd.f32 %v1315, %v1391
        %v1424 = vadd.f32 %v1316, %v1392
        %v1425 = vadd.f32 %v1317, %v1393
        %v1426 = vadd.f32 %v1318, %v1394
        %v1427 = vadd.f32 %v1319, %v1395
        %v1428 = vadd.f32 %v1320, %v1396
        %v1429 = vadd.f32 %v1321, %v1397
        %v1430 = vadd.f32 %v1322, %v1398
        %v1431 = vadd.f32 %v1323, %v1399
        %v1432 = vadd.f32 %v1324, %v1400
        %v1433 = vadd.f32 %v1325, %v1401
        %v1434 = vadd.f32 %v1326, %v1402
        %v1435 = vadd.f32 %v1327, %v1403
        %v1436 = vadd.f32 %v1328, %v1404
        %v1437 = vadd.f32 %v1329, %v1405
        %v1438 = vadd.f32 %v1330, %v1406
        %v1439 = vadd.f32 %v1331, %v1407
        %v1440 = vadd.f32 %v1332, %v1408
        %v1441 = vadd.f32 %v1333, %v1409
        %v1442 = vadd.f32 %v1334, %v1410
        %v1443 = vadd.f32 %v1335, %v1411
        %v1444 = vadd.f32 %v1336, %v1412
        %v1445 = vadd.f32 %v1337, %v1413
        %v1446 = vadd.f32 %v1338, %v1414
        %v1447 = vlaneseq
        %v1448 = vshrl.u32 %v1447, 7
        %v1449 = vsub.s32 7, %v1448
        %v1450 = vrot.slane %v575, %v1449
        %v1451 = vmul.f32 %v1341, %v1450
        %v1452 = vmul.f32 %v1342, %v1450
        %v1453 = vmul.f32 %v1343, %v1450
        %v1454 = vmul.f32 %v1344, %v1450
        %v1455 = vmul.f32 %v1345, %v1450
        %v1456 = vmul.f32 %v1346, %v1450
        %v1457 = vmul.f32 %v1347, %v1450
        %v1458 = vmul.f32 %v1348, %v1450
        %v1459 = vmul.f32 %v1349, %v1450
        %v1460 = vmul.f32 %v1350, %v1450
        %v1461 = vmul.f32 %v1351, %v1450
        %v1462 = vmul.f32 %v1352, %v1450
        %v1463 = vmul.f32 %v1353, %v1450
        %v1464 = vmul.f32 %v1354, %v1450
        %v1465 = vmul.f32 %v1355, %v1450
        %v1466 = vmul.f32 %v1356, %v1450
        %v1467 = vmul.f32 %v1357, %v1450
        %v1468 = vmul.f32 %v1358, %v1450
        %v1469 = vmul.f32 %v1359, %v1450
        %v1470 = vmul.f32 %v1360, %v1450
        %v1471 = vmul.f32 %v1361, %v1450
        %v1472 = vmul.f32 %v1362, %v1450
        %v1473 = vmul.f32 %v1363, %v1450
        %v1474 = vmul.f32 %v1364, %v1450
        %v1475 = vmul.f32 %v1365, %v1450
        %v1476 = vmul.f32 %v1366, %v1450
        %v1477 = vmul.f32 %v1367, %v1450
        %v1478 = vmul.f32 %v1368, %v1450
        %v1479 = vmul.f32 %v1369, %v1450
        %v1480 = vmul.f32 %v1370, %v1450
        %v1481 = vmul.f32 %v1371, %v1450
        %v1482 = vmul.f32 %v1372, %v1450
        %v1483 = vadd.f32 %v1415, %v1451
        %v1484 = vadd.f32 %v1416, %v1452
        %v1485 = vadd.f32 %v1417, %v1453
        %v1486 = vadd.f32 %v1418, %v1454
        %v1487 = vadd.f32 %v1419, %v1455
        %v1488 = vadd.f32 %v1420, %v1456
        %v1489 = vadd.f32 %v1421, %v1457
        %v1490 = vadd.f32 %v1422, %v1458
        %v1491 = vadd.f32 %v1423, %v1459
        %v1492 = vadd.f32 %v1424, %v1460
        %v1493 = vadd.f32 %v1425, %v1461
        %v1494 = vadd.f32 %v1426, %v1462
        %v1495 = vadd.f32 %v1427, %v1463
        %v1496 = vadd.f32 %v1428, %v1464
        %v1497 = vadd.f32 %v1429, %v1465
        %v1498 = vadd.f32 %v1430, %v1466
        %v1499 = vadd.f32 %v1431, %v1467
        %v1500 = vadd.f32 %v1432, %v1468
        %v1501 = vadd.f32 %v1433, %v1469
        %v1502 = vadd.f32 %v1434, %v1470
        %v1503 = vadd.f32 %v1435, %v1471
        %v1504 = vadd.f32 %v1436, %v1472
        %v1505 = vadd.f32 %v1437, %v1473
        %v1506 = vadd.f32 %v1438, %v1474
        %v1507 = vadd.f32 %v1439, %v1475
        %v1508 = vadd.f32 %v1440, %v1476
        %v1509 = vadd.f32 %v1441, %v1477
        %v1510 = vadd.f32 %v1442, %v1478
        %v1511 = vadd.f32 %v1443, %v1479
        %v1512 = vadd.f32 %v1444, %v1480
        %v1513 = vadd.f32 %v1445, %v1481
        %v1514 = vadd.f32 %v1446, %v1482
        %v1515 = vlaneseq
        %v1516 = vshrl.u32 %v1515, 7
        %v1517 = vsub.s32 4, %v1516
        %v1518 = vrot.slane %v576, %v1517
        %v1519 = vmul.f32 %v1343, %v1518
        %v1520 = vmul.f32 %v1344, %v1518
        %v1521 = vmul.f32 %v1345, %v1518
        %v1522 = vmul.f32 %v1346, %v1518
        %v1523 = vmul.f32 %v1347, %v1518
        %v1524 = vmul.f32 %v1348, %v1518
        %v1525 = vmul.f32 %v1349, %v1518
        %v1526 = vmul.f32 %v1350, %v1518
        %v1527 = vmul.f32 %v1351, %v1518
        %v1528 = vmul.f32 %v1352, %v1518
        %v1529 = vmul.f32 %v1353, %v1518
        %v1530 = vmul.f32 %v1354, %v1518
        %v1531 = vmul.f32 %v1355, %v1518
        %v1532 = vmul.f32 %v1356, %v1518
        %v1533 = vmul.f32 %v1357, %v1518
        %v1534 = vmul.f32 %v1358, %v1518
        %v1535 = vmul.f32 %v1359, %v1518
        %v1536 = vmul.f32 %v1360, %v1518
        %v1537 = vmul.f32 %v1361, %v1518
        %v1538 = vmul.f32 %v1362, %v1518
        %v1539 = vmul.f32 %v1363, %v1518
        %v1540 = vmul.f32 %v1364, %v1518
        %v1541 = vmul.f32 %v1365, %v1518
        %v1542 = vmul.f32 %v1366, %v1518
        %v1543 = vmul.f32 %v1367, %v1518
        %v1544 = vmul.f32 %v1368, %v1518
        %v1545 = vmul.f32 %v1369, %v1518
        %v1546 = vmul.f32 %v1370, %v1518
        %v1547 = vmul.f32 %v1371, %v1518
        %v1548 = vmul.f32 %v1372, %v1518
        %v1549 = vmul.f32 %v1373, %v1518
        %v1550 = vmul.f32 %v1374, %v1518
        %v1551 = vadd.f32 %v1483, %v1519
        %v1552 = vadd.f32 %v1484, %v1520
        %v1553 = vadd.f32 %v1485, %v1521
        %v1554 = vadd.f32 %v1486, %v1522
        %v1555 = vadd.f32 %v1487, %v1523
        %v1556 = vadd.f32 %v1488, %v1524
        %v1557 = vadd.f32 %v1489, %v1525
        %v1558 = vadd.f32 %v1490, %v1526
        %v1559 = vadd.f32 %v1491, %v1527
        %v1560 = vadd.f32 %v1492, %v1528
        %v1561 = vadd.f32 %v1493, %v1529
        %v1562 = vadd.f32 %v1494, %v1530
        %v1563 = vadd.f32 %v1495, %v1531
        %v1564 = vadd.f32 %v1496, %v1532
        %v1565 = vadd.f32 %v1497, %v1533
        %v1566 = vadd.f32 %v1498, %v1534
        %v1567 = vadd.f32 %v1499, %v1535
        %v1568 = vadd.f32 %v1500, %v1536
        %v1569 = vadd.f32 %v1501, %v1537
        %v1570 = vadd.f32 %v1502, %v1538
        %v1571 = vadd.f32 %v1503, %v1539
        %v1572 = vadd.f32 %v1504, %v1540
        %v1573 = vadd.f32 %v1505, %v1541
        %v1574 = vadd.f32 %v1506, %v1542
        %v1575 = vadd.f32 %v1507, %v1543
        %v1576 = vadd.f32 %v1508, %v1544
        %v1577 = vadd.f32 %v1509, %v1545
        %v1578 = vadd.f32 %v1510, %v1546
        %v1579 = vadd.f32 %v1511, %v1547
        %v1580 = vadd.f32 %v1512, %v1548
        %v1581 = vadd.f32 %v1513, %v1549
        %v1582 = vadd.f32 %v1514, %v1550
        %v1583 = vlaneseq
        %v1584 = vshrl.u32 %v1583, 7
        %v1585 = vsub.s32 1, %v1584
        %v1586 = vrot.slane %v577, %v1585
        %v1587 = vmul.f32 %v1345, %v1586
        %v1588 = vmul.f32 %v1346, %v1586
        %v1589 = vmul.f32 %v1347, %v1586
        %v1590 = vmul.f32 %v1348, %v1586
        %v1591 = vmul.f32 %v1349, %v1586
        %v1592 = vmul.f32 %v1350, %v1586
        %v1593 = vmul.f32 %v1351, %v1586
        %v1594 = vmul.f32 %v1352, %v1586
        %v1595 = vmul.f32 %v1353, %v1586
        %v1596 = vmul.f32 %v1354, %v1586
        %v1597 = vmul.f32 %v1355, %v1586
        %v1598 = vmul.f32 %v1356, %v1586
        %v1599 = vmul.f32 %v1357, %v1586
        %v1600 = vmul.f32 %v1358, %v1586
        %v1601 = vmul.f32 %v1359, %v1586
        %v1602 = vmul.f32 %v1360, %v1586
        %v1603 = vmul.f32 %v1361, %v1586
        %v1604 = vmul.f32 %v1362, %v1586
        %v1605 = vmul.f32 %v1363, %v1586
        %v1606 = vmul.f32 %v1364, %v1586
        %v1607 = vmul.f32 %v1365, %v1586
        %v1608 = vmul.f32 %v1366, %v1586
        %v1609 = vmul.f32 %v1367, %v1586
        %v1610 = vmul.f32 %v1368, %v1586
        %v1611 = vmul.f32 %v1369, %v1586
        %v1612 = vmul.f32 %v1370, %v1586
        %v1613 = vmul.f32 %v1371, %v1586
        %v1614 = vmul.f32 %v1372, %v1586
        %v1615 = vmul.f32 %v1373, %v1586
        %v1616 = vmul.f32 %v1374, %v1586
        %v1617 = vmul.f32 %v1375, %v1586
        %v1618 = vmul.f32 %v1376, %v1586
        %v1619 = vadd.f32 %v1551, %v1587
        %v1620 = vadd.f32 %v1552, %v1588
        %v1621 = vadd.f32 %v1553, %v1589
        %v1622 = vadd.f32 %v1554, %v1590
        %v1623 = vadd.f32 %v1555, %v1591
        %v1624 = vadd.f32 %v1556, %v1592
        %v1625 = vadd.f32 %v1557, %v1593
        %v1626 = vadd.f32 %v1558, %v1594
        %v1627 = vadd.f32 %v1559, %v1595
        %v1628 = vadd.f32 %v1560, %v1596
        %v1629 = vadd.f32 %v1561, %v1597
        %v1630 = vadd.f32 %v1562, %v1598
        %v1631 = vadd.f32 %v1563, %v1599
        %v1632 = vadd.f32 %v1564, %v1600
        %v1633 = vadd.f32 %v1565, %v1601
        %v1634 = vadd.f32 %v1566, %v1602
        %v1635 = vadd.f32 %v1567, %v1603
        %v1636 = vadd.f32 %v1568, %v1604
        %v1637 = vadd.f32 %v1569, %v1605
        %v1638 = vadd.f32 %v1570, %v1606
        %v1639 = vadd.f32 %v1571, %v1607
        %v1640 = vadd.f32 %v1572, %v1608
        %v1641 = vadd.f32 %v1573, %v1609
        %v1642 = vadd.f32 %v1574, %v1610
        %v1643 = vadd.f32 %v1575, %v1611
        %v1644 = vadd.f32 %v1576, %v1612
        %v1645 = vadd.f32 %v1577, %v1613
        %v1646 = vadd.f32 %v1578, %v1614
        %v1647 = vadd.f32 %v1579, %v1615
        %v1648 = vadd.f32 %v1580, %v1616
        %v1649 = vadd.f32 %v1581, %v1617
        %v1650 = vadd.f32 %v1582, %v1618
        %v1651 = vlaneseq
        %v1652 = vshrl.u32 %v1651, 7
        %v1653 = vsub.s32 6, %v1652
        %v1654 = vrot.slane %v577, %v1653
        %v1655 = vmul.f32 %v1347, %v1654
        %v1656 = vmul.f32 %v1348, %v1654
        %v1657 = vmul.f32 %v1349, %v1654
        %v1658 = vmul.f32 %v1350, %v1654
        %v1659 = vmul.f32 %v1351, %v1654
        %v1660 = vmul.f32 %v1352, %v1654
        %v1661 = vmul.f32 %v1353, %v1654
        %v1662 = vmul.f32 %v1354, %v1654
        %v1663 = vmul.f32 %v1355, %v1654
        %v1664 = vmul.f32 %v1356, %v1654
        %v1665 = vmul.f32 %v1357, %v1654
        %v1666 = vmul.f32 %v1358, %v1654
        %v1667 = vmul.f32 %v1359, %v1654
        %v1668 = vmul.f32 %v1360, %v1654
        %v1669 = vmul.f32 %v1361, %v1654
        %v1670 = vmul.f32 %v1362, %v1654
        %v1671 = vmul.f32 %v1363, %v1654
        %v1672 = vmul.f32 %v1364, %v1654
        %v1673 = vmul.f32 %v1365, %v1654
        %v1674 = vmul.f32 %v1366, %v1654
        %v1675 = vmul.f32 %v1367, %v1654
        %v1676 = vmul.f32 %v1368, %v1654
        %v1677 = vmul.f32 %v1369, %v1654
        %v1678 = vmul.f32 %v1370, %v1654
        %v1679 = vmul.f32 %v1371, %v1654
        %v1680 = vmul.f32 %v1372, %v1654
        %v1681 = vmul.f32 %v1373, %v1654
        %v1682 = vmul.f32 %v1374, %v1654
        %v1683 = vmul.f32 %v1375, %v1654
        %v1684 = vmul.f32 %v1376, %v1654
        %v1685 = vmul.f32 %v1377, %v1654
        %v1686 = vmul.f32 %v1378, %v1654
        %v1687 = vadd.f32 %v1619, %v1655
        %v1688 = vadd.f32 %v1620, %v1656
        %v1689 = vadd.f32 %v1621, %v1657
        %v1690 = vadd.f32 %v1622, %v1658
        %v1691 = vadd.f32 %v1623, %v1659
        %v1692 = vadd.f32 %v1624, %v1660
        %v1693 = vadd.f32 %v1625, %v1661
        %v1694 = vadd.f32 %v1626, %v1662
        %v1695 = vadd.f32 %v1627, %v1663
        %v1696 = vadd.f32 %v1628, %v1664
        %v1697 = vadd.f32 %v1629, %v1665
        %v1698 = vadd.f32 %v1630, %v1666
        %v1699 = vadd.f32 %v1631, %v1667
        %v1700 = vadd.f32 %v1632, %v1668
        %v1701 = vadd.f32 %v1633, %v1669
        %v1702 = vadd.f32 %v1634, %v1670
        %v1703 = vadd.f32 %v1635, %v1671
        %v1704 = vadd.f32 %v1636, %v1672
        %v1705 = vadd.f32 %v1637, %v1673
        %v1706 = vadd.f32 %v1638, %v1674
        %v1707 = vadd.f32 %v1639, %v1675
        %v1708 = vadd.f32 %v1640, %v1676
        %v1709 = vadd.f32 %v1641, %v1677
        %v1710 = vadd.f32 %v1642, %v1678
        %v1711 = vadd.f32 %v1643, %v1679
        %v1712 = vadd.f32 %v1644, %v1680
        %v1713 = vadd.f32 %v1645, %v1681
        %v1714 = vadd.f32 %v1646, %v1682
        %v1715 = vadd.f32 %v1647, %v1683
        %v1716 = vadd.f32 %v1648, %v1684
        %v1717 = vadd.f32 %v1649, %v1685
        %v1718 = vadd.f32 %v1650, %v1686
        %v1719 = vld [vmem:[#allocation2 + $0x3] sm:$0xff]
        %v1720 = vld [vmem:[#allocation2 + $0xb] sm:$0xff]
        %v1721 = vld [vmem:[#allocation2 + $0x1b] sm:$0xff]
        %v1722 = vld [vmem:[#allocation2 + $0x23] sm:$0xff]
        %v1723 = vld [vmem:[#allocation2 + $0x33] sm:$0xff]
        %v1724 = vld [vmem:[#allocation2 + $0x3b] sm:$0xff]
        %v1725 = vld [vmem:[#allocation2 + $0x4b] sm:$0xff]
        %v1726 = vld [vmem:[#allocation2 + $0x53] sm:$0xff]
        %v1727 = vld [vmem:[#allocation2 + $0x63] sm:$0xff]
        %v1728 = vld [vmem:[#allocation2 + $0x6b] sm:$0xff]
        %v1729 = vld [vmem:[#allocation2 + $0x7b] sm:$0xff]
        %v1730 = vld [vmem:[#allocation2 + $0x83] sm:$0xff]
        %v1731 = vld [vmem:[#allocation2 + $0x93] sm:$0xff]
        %v1732 = vld [vmem:[#allocation2 + $0x9b] sm:$0xff]
        %v1733 = vld [vmem:[#allocation2 + $0xab] sm:$0xff]
        %v1734 = vld [vmem:[#allocation2 + $0xb3] sm:$0xff]
        %v1735 = vld [vmem:[#allocation2 + $0xc3] sm:$0xff]
        %v1736 = vld [vmem:[#allocation2 + $0xcb] sm:$0xff]
        %v1737 = vld [vmem:[#allocation2 + $0xdb] sm:$0xff]
        %v1738 = vld [vmem:[#allocation2 + $0xe3] sm:$0xff]
        %v1739 = vld [vmem:[#allocation2 + $0xf3] sm:$0xff]
        %v1740 = vld [vmem:[#allocation2 + $0xfb] sm:$0xff]
        %v1741 = vld [vmem:[#allocation2 + $0x10b] sm:$0xff]
        %v1742 = vld [vmem:[#allocation2 + $0x113] sm:$0xff]
        %v1743 = vld [vmem:[#allocation2 + $0x123] sm:$0xff]
        %v1744 = vld [vmem:[#allocation2 + $0x12b] sm:$0xff]
        %v1745 = vld [vmem:[#allocation2 + $0x13b] sm:$0xff]
        %v1746 = vld [vmem:[#allocation2 + $0x143] sm:$0xff]
        %v1747 = vld [vmem:[#allocation2 + $0x153] sm:$0xff]
        %v1748 = vld [vmem:[#allocation2 + $0x15b] sm:$0xff]
        %v1749 = vld [vmem:[#allocation2 + $0x16b] sm:$0xff]
        %v1750 = vld [vmem:[#allocation2 + $0x173] sm:$0xff]
        %v1751 = vld [vmem:[#allocation2 + $0x183] sm:$0xff]
        %v1752 = vld [vmem:[#allocation2 + $0x18b] sm:$0xff]
        %v1753 = vld [vmem:[#allocation2 + $0x19b] sm:$0xff]
        %v1754 = vld [vmem:[#allocation2 + $0x1a3] sm:$0xff]
        %v1755 = vld [vmem:[#allocation2 + $0x1b3] sm:$0xff]
        %v1756 = vld [vmem:[#allocation2 + $0x1bb] sm:$0xff]
        %v1757 = vld [vmem:[#allocation2 + $0x1cb] sm:$0xff]
        %v1758 = vld [vmem:[#allocation2 + $0x1d3] sm:$0xff]
        %v1759 = vlaneseq
        %v1760 = vshrl.u32 %v1759, 7
        %v1761 = vsub.s32 3, %v1760
        %v1762 = vrot.slane %v575, %v1761
        %v1763 = vmul.f32 %v1719, %v1762
        %v1764 = vmul.f32 %v1720, %v1762
        %v1765 = vmul.f32 %v1721, %v1762
        %v1766 = vmul.f32 %v1722, %v1762
        %v1767 = vmul.f32 %v1723, %v1762
        %v1768 = vmul.f32 %v1724, %v1762
        %v1769 = vmul.f32 %v1725, %v1762
        %v1770 = vmul.f32 %v1726, %v1762
        %v1771 = vmul.f32 %v1727, %v1762
        %v1772 = vmul.f32 %v1728, %v1762
        %v1773 = vmul.f32 %v1729, %v1762
        %v1774 = vmul.f32 %v1730, %v1762
        %v1775 = vmul.f32 %v1731, %v1762
        %v1776 = vmul.f32 %v1732, %v1762
        %v1777 = vmul.f32 %v1733, %v1762
        %v1778 = vmul.f32 %v1734, %v1762
        %v1779 = vmul.f32 %v1735, %v1762
        %v1780 = vmul.f32 %v1736, %v1762
        %v1781 = vmul.f32 %v1737, %v1762
        %v1782 = vmul.f32 %v1738, %v1762
        %v1783 = vmul.f32 %v1739, %v1762
        %v1784 = vmul.f32 %v1740, %v1762
        %v1785 = vmul.f32 %v1741, %v1762
        %v1786 = vmul.f32 %v1742, %v1762
        %v1787 = vmul.f32 %v1743, %v1762
        %v1788 = vmul.f32 %v1744, %v1762
        %v1789 = vmul.f32 %v1745, %v1762
        %v1790 = vmul.f32 %v1746, %v1762
        %v1791 = vmul.f32 %v1747, %v1762
        %v1792 = vmul.f32 %v1748, %v1762
        %v1793 = vmul.f32 %v1749, %v1762
        %v1794 = vmul.f32 %v1750, %v1762
        %v1795 = vadd.f32 %v1687, %v1763
        %v1796 = vadd.f32 %v1688, %v1764
        %v1797 = vadd.f32 %v1689, %v1765
        %v1798 = vadd.f32 %v1690, %v1766
        %v1799 = vadd.f32 %v1691, %v1767
        %v1800 = vadd.f32 %v1692, %v1768
        %v1801 = vadd.f32 %v1693, %v1769
        %v1802 = vadd.f32 %v1694, %v1770
        %v1803 = vadd.f32 %v1695, %v1771
        %v1804 = vadd.f32 %v1696, %v1772
        %v1805 = vadd.f32 %v1697, %v1773
        %v1806 = vadd.f32 %v1698, %v1774
        %v1807 = vadd.f32 %v1699, %v1775
        %v1808 = vadd.f32 %v1700, %v1776
        %v1809 = vadd.f32 %v1701, %v1777
        %v1810 = vadd.f32 %v1702, %v1778
        %v1811 = vadd.f32 %v1703, %v1779
        %v1812 = vadd.f32 %v1704, %v1780
        %v1813 = vadd.f32 %v1705, %v1781
        %v1814 = vadd.f32 %v1706, %v1782
        %v1815 = vadd.f32 %v1707, %v1783
        %v1816 = vadd.f32 %v1708, %v1784
        %v1817 = vadd.f32 %v1709, %v1785
        %v1818 = vadd.f32 %v1710, %v1786
        %v1819 = vadd.f32 %v1711, %v1787
        %v1820 = vadd.f32 %v1712, %v1788
        %v1821 = vadd.f32 %v1713, %v1789
        %v1822 = vadd.f32 %v1714, %v1790
        %v1823 = vadd.f32 %v1715, %v1791
        %v1824 = vadd.f32 %v1716, %v1792
        %v1825 = vadd.f32 %v1717, %v1793
        %v1826 = vadd.f32 %v1718, %v1794
        %v1827 = vlaneseq
        %v1828 = vshrl.u32 %v1827, 7
        %v1829 = vsub.s32 0, %v1828
        %v1830 = vrot.slane %v576, %v1829
        %v1831 = vmul.f32 %v1721, %v1830
        %v1832 = vmul.f32 %v1722, %v1830
        %v1833 = vmul.f32 %v1723, %v1830
        %v1834 = vmul.f32 %v1724, %v1830
        %v1835 = vmul.f32 %v1725, %v1830
        %v1836 = vmul.f32 %v1726, %v1830
        %v1837 = vmul.f32 %v1727, %v1830
        %v1838 = vmul.f32 %v1728, %v1830
        %v1839 = vmul.f32 %v1729, %v1830
        %v1840 = vmul.f32 %v1730, %v1830
        %v1841 = vmul.f32 %v1731, %v1830
        %v1842 = vmul.f32 %v1732, %v1830
        %v1843 = vmul.f32 %v1733, %v1830
        %v1844 = vmul.f32 %v1734, %v1830
        %v1845 = vmul.f32 %v1735, %v1830
        %v1846 = vmul.f32 %v1736, %v1830
        %v1847 = vmul.f32 %v1737, %v1830
        %v1848 = vmul.f32 %v1738, %v1830
        %v1849 = vmul.f32 %v1739, %v1830
        %v1850 = vmul.f32 %v1740, %v1830
        %v1851 = vmul.f32 %v1741, %v1830
        %v1852 = vmul.f32 %v1742, %v1830
        %v1853 = vmul.f32 %v1743, %v1830
        %v1854 = vmul.f32 %v1744, %v1830
        %v1855 = vmul.f32 %v1745, %v1830
        %v1856 = vmul.f32 %v1746, %v1830
        %v1857 = vmul.f32 %v1747, %v1830
        %v1858 = vmul.f32 %v1748, %v1830
        %v1859 = vmul.f32 %v1749, %v1830
        %v1860 = vmul.f32 %v1750, %v1830
        %v1861 = vmul.f32 %v1751, %v1830
        %v1862 = vmul.f32 %v1752, %v1830
        %v1863 = vadd.f32 %v1795, %v1831
        %v1864 = vadd.f32 %v1796, %v1832
        %v1865 = vadd.f32 %v1797, %v1833
        %v1866 = vadd.f32 %v1798, %v1834
        %v1867 = vadd.f32 %v1799, %v1835
        %v1868 = vadd.f32 %v1800, %v1836
        %v1869 = vadd.f32 %v1801, %v1837
        %v1870 = vadd.f32 %v1802, %v1838
        %v1871 = vadd.f32 %v1803, %v1839
        %v1872 = vadd.f32 %v1804, %v1840
        %v1873 = vadd.f32 %v1805, %v1841
        %v1874 = vadd.f32 %v1806, %v1842
        %v1875 = vadd.f32 %v1807, %v1843
        %v1876 = vadd.f32 %v1808, %v1844
        %v1877 = vadd.f32 %v1809, %v1845
        %v1878 = vadd.f32 %v1810, %v1846
        %v1879 = vadd.f32 %v1811, %v1847
        %v1880 = vadd.f32 %v1812, %v1848
        %v1881 = vadd.f32 %v1813, %v1849
        %v1882 = vadd.f32 %v1814, %v1850
        %v1883 = vadd.f32 %v1815, %v1851
        %v1884 = vadd.f32 %v1816, %v1852
        %v1885 = vadd.f32 %v1817, %v1853
        %v1886 = vadd.f32 %v1818, %v1854
        %v1887 = vadd.f32 %v1819, %v1855
        %v1888 = vadd.f32 %v1820, %v1856
        %v1889 = vadd.f32 %v1821, %v1857
        %v1890 = vadd.f32 %v1822, %v1858
        %v1891 = vadd.f32 %v1823, %v1859
        %v1892 = vadd.f32 %v1824, %v1860
        %v1893 = vadd.f32 %v1825, %v1861
        %v1894 = vadd.f32 %v1826, %v1862
        %v1895 = vlaneseq
        %v1896 = vshrl.u32 %v1895, 7
        %v1897 = vsub.s32 5, %v1896
        %v1898 = vrot.slane %v576, %v1897
        %v1899 = vmul.f32 %v1723, %v1898
        %v1900 = vmul.f32 %v1724, %v1898
        %v1901 = vmul.f32 %v1725, %v1898
        %v1902 = vmul.f32 %v1726, %v1898
        %v1903 = vmul.f32 %v1727, %v1898
        %v1904 = vmul.f32 %v1728, %v1898
        %v1905 = vmul.f32 %v1729, %v1898
        %v1906 = vmul.f32 %v1730, %v1898
        %v1907 = vmul.f32 %v1731, %v1898
        %v1908 = vmul.f32 %v1732, %v1898
        %v1909 = vmul.f32 %v1733, %v1898
        %v1910 = vmul.f32 %v1734, %v1898
        %v1911 = vmul.f32 %v1735, %v1898
        %v1912 = vmul.f32 %v1736, %v1898
        %v1913 = vmul.f32 %v1737, %v1898
        %v1914 = vmul.f32 %v1738, %v1898
        %v1915 = vmul.f32 %v1739, %v1898
        %v1916 = vmul.f32 %v1740, %v1898
        %v1917 = vmul.f32 %v1741, %v1898
        %v1918 = vmul.f32 %v1742, %v1898
        %v1919 = vmul.f32 %v1743, %v1898
        %v1920 = vmul.f32 %v1744, %v1898
        %v1921 = vmul.f32 %v1745, %v1898
        %v1922 = vmul.f32 %v1746, %v1898
        %v1923 = vmul.f32 %v1747, %v1898
        %v1924 = vmul.f32 %v1748, %v1898
        %v1925 = vmul.f32 %v1749, %v1898
        %v1926 = vmul.f32 %v1750, %v1898
        %v1927 = vmul.f32 %v1751, %v1898
        %v1928 = vmul.f32 %v1752, %v1898
        %v1929 = vmul.f32 %v1753, %v1898
        %v1930 = vmul.f32 %v1754, %v1898
        %v1931 = vadd.f32 %v1863, %v1899
        %v1932 = vadd.f32 %v1864, %v1900
        %v1933 = vadd.f32 %v1865, %v1901
        %v1934 = vadd.f32 %v1866, %v1902
        %v1935 = vadd.f32 %v1867, %v1903
        %v1936 = vadd.f32 %v1868, %v1904
        %v1937 = vadd.f32 %v1869, %v1905
        %v1938 = vadd.f32 %v1870, %v1906
        %v1939 = vadd.f32 %v1871, %v1907
        %v1940 = vadd.f32 %v1872, %v1908
        %v1941 = vadd.f32 %v1873, %v1909
        %v1942 = vadd.f32 %v1874, %v1910
        %v1943 = vadd.f32 %v1875, %v1911
        %v1944 = vadd.f32 %v1876, %v1912
        %v1945 = vadd.f32 %v1877, %v1913
        %v1946 = vadd.f32 %v1878, %v1914
        %v1947 = vadd.f32 %v1879, %v1915
        %v1948 = vadd.f32 %v1880, %v1916
        %v1949 = vadd.f32 %v1881, %v1917
        %v1950 = vadd.f32 %v1882, %v1918
        %v1951 = vadd.f32 %v1883, %v1919
        %v1952 = vadd.f32 %v1884, %v1920
        %v1953 = vadd.f32 %v1885, %v1921
        %v1954 = vadd.f32 %v1886, %v1922
        %v1955 = vadd.f32 %v1887, %v1923
        %v1956 = vadd.f32 %v1888, %v1924
        %v1957 = vadd.f32 %v1889, %v1925
        %v1958 = vadd.f32 %v1890, %v1926
        %v1959 = vadd.f32 %v1891, %v1927
        %v1960 = vadd.f32 %v1892, %v1928
        %v1961 = vadd.f32 %v1893, %v1929
        %v1962 = vadd.f32 %v1894, %v1930
        %v1963 = vlaneseq
        %v1964 = vshrl.u32 %v1963, 7
        %v1965 = vsub.s32 2, %v1964
        %v1966 = vrot.slane %v577, %v1965
        %v1967 = vmul.f32 %v1725, %v1966
        %v1968 = vmul.f32 %v1726, %v1966
        %v1969 = vmul.f32 %v1727, %v1966
        %v1970 = vmul.f32 %v1728, %v1966
        %v1971 = vmul.f32 %v1729, %v1966
        %v1972 = vmul.f32 %v1730, %v1966
        %v1973 = vmul.f32 %v1731, %v1966
        %v1974 = vmul.f32 %v1732, %v1966
        %v1975 = vmul.f32 %v1733, %v1966
        %v1976 = vmul.f32 %v1734, %v1966
        %v1977 = vmul.f32 %v1735, %v1966
        %v1978 = vmul.f32 %v1736, %v1966
        %v1979 = vmul.f32 %v1737, %v1966
        %v1980 = vmul.f32 %v1738, %v1966
        %v1981 = vmul.f32 %v1739, %v1966
        %v1982 = vmul.f32 %v1740, %v1966
        %v1983 = vmul.f32 %v1741, %v1966
        %v1984 = vmul.f32 %v1742, %v1966
        %v1985 = vmul.f32 %v1743, %v1966
        %v1986 = vmul.f32 %v1744, %v1966
        %v1987 = vmul.f32 %v1745, %v1966
        %v1988 = vmul.f32 %v1746, %v1966
        %v1989 = vmul.f32 %v1747, %v1966
        %v1990 = vmul.f32 %v1748, %v1966
        %v1991 = vmul.f32 %v1749, %v1966
        %v1992 = vmul.f32 %v1750, %v1966
        %v1993 = vmul.f32 %v1751, %v1966
        %v1994 = vmul.f32 %v1752, %v1966
        %v1995 = vmul.f32 %v1753, %v1966
        %v1996 = vmul.f32 %v1754, %v1966
        %v1997 = vmul.f32 %v1755, %v1966
        %v1998 = vmul.f32 %v1756, %v1966
        %v1999 = vadd.f32 %v1931, %v1967
        %v2000 = vadd.f32 %v1932, %v1968
        %v2001 = vadd.f32 %v1933, %v1969
        %v2002 = vadd.f32 %v1934, %v1970
        %v2003 = vadd.f32 %v1935, %v1971
        %v2004 = vadd.f32 %v1936, %v1972
        %v2005 = vadd.f32 %v1937, %v1973
        %v2006 = vadd.f32 %v1938, %v1974
        %v2007 = vadd.f32 %v1939, %v1975
        %v2008 = vadd.f32 %v1940, %v1976
        %v2009 = vadd.f32 %v1941, %v1977
        %v2010 = vadd.f32 %v1942, %v1978
        %v2011 = vadd.f32 %v1943, %v1979
        %v2012 = vadd.f32 %v1944, %v1980
        %v2013 = vadd.f32 %v1945, %v1981
        %v2014 = vadd.f32 %v1946, %v1982
        %v2015 = vadd.f32 %v1947, %v1983
        %v2016 = vadd.f32 %v1948, %v1984
        %v2017 = vadd.f32 %v1949, %v1985
        %v2018 = vadd.f32 %v1950, %v1986
        %v2019 = vadd.f32 %v1951, %v1987
        %v2020 = vadd.f32 %v1952, %v1988
        %v2021 = vadd.f32 %v1953, %v1989
        %v2022 = vadd.f32 %v1954, %v1990
        %v2023 = vadd.f32 %v1955, %v1991
        %v2024 = vadd.f32 %v1956, %v1992
        %v2025 = vadd.f32 %v1957, %v1993
        %v2026 = vadd.f32 %v1958, %v1994
        %v2027 = vadd.f32 %v1959, %v1995
        %v2028 = vadd.f32 %v1960, %v1996
        %v2029 = vadd.f32 %v1961, %v1997
        %v2030 = vadd.f32 %v1962, %v1998
        %v2031 = vlaneseq
        %v2032 = vshrl.u32 %v2031, 7
        %v2033 = vsub.s32 7, %v2032
        %v2034 = vrot.slane %v577, %v2033
        %v2035 = vmul.f32 %v1727, %v2034
        %v2036 = vmul.f32 %v1728, %v2034
        %v2037 = vmul.f32 %v1729, %v2034
        %v2038 = vmul.f32 %v1730, %v2034
        %v2039 = vmul.f32 %v1731, %v2034
        %v2040 = vmul.f32 %v1732, %v2034
        %v2041 = vmul.f32 %v1733, %v2034
        %v2042 = vmul.f32 %v1734, %v2034
        %v2043 = vmul.f32 %v1735, %v2034
        %v2044 = vmul.f32 %v1736, %v2034
        %v2045 = vmul.f32 %v1737, %v2034
        %v2046 = vmul.f32 %v1738, %v2034
        %v2047 = vmul.f32 %v1739, %v2034
        %v2048 = vmul.f32 %v1740, %v2034
        %v2049 = vmul.f32 %v1741, %v2034
        %v2050 = vmul.f32 %v1742, %v2034
        %v2051 = vmul.f32 %v1743, %v2034
        %v2052 = vmul.f32 %v1744, %v2034
        %v2053 = vmul.f32 %v1745, %v2034
        %v2054 = vmul.f32 %v1746, %v2034
        %v2055 = vmul.f32 %v1747, %v2034
        %v2056 = vmul.f32 %v1748, %v2034
        %v2057 = vmul.f32 %v1749, %v2034
        %v2058 = vmul.f32 %v1750, %v2034
        %v2059 = vmul.f32 %v1751, %v2034
        %v2060 = vmul.f32 %v1752, %v2034
        %v2061 = vmul.f32 %v1753, %v2034
        %v2062 = vmul.f32 %v1754, %v2034
        %v2063 = vmul.f32 %v1755, %v2034
        %v2064 = vmul.f32 %v1756, %v2034
        %v2065 = vmul.f32 %v1757, %v2034
        %v2066 = vmul.f32 %v1758, %v2034
        %v2067 = vadd.f32 %v1999, %v2035
        %v2068 = vadd.f32 %v2000, %v2036
        %v2069 = vadd.f32 %v2001, %v2037
        %v2070 = vadd.f32 %v2002, %v2038
        %v2071 = vadd.f32 %v2003, %v2039
        %v2072 = vadd.f32 %v2004, %v2040
        %v2073 = vadd.f32 %v2005, %v2041
        %v2074 = vadd.f32 %v2006, %v2042
        %v2075 = vadd.f32 %v2007, %v2043
        %v2076 = vadd.f32 %v2008, %v2044
        %v2077 = vadd.f32 %v2009, %v2045
        %v2078 = vadd.f32 %v2010, %v2046
        %v2079 = vadd.f32 %v2011, %v2047
        %v2080 = vadd.f32 %v2012, %v2048
        %v2081 = vadd.f32 %v2013, %v2049
        %v2082 = vadd.f32 %v2014, %v2050
        %v2083 = vadd.f32 %v2015, %v2051
        %v2084 = vadd.f32 %v2016, %v2052
        %v2085 = vadd.f32 %v2017, %v2053
        %v2086 = vadd.f32 %v2018, %v2054
        %v2087 = vadd.f32 %v2019, %v2055
        %v2088 = vadd.f32 %v2020, %v2056
        %v2089 = vadd.f32 %v2021, %v2057
        %v2090 = vadd.f32 %v2022, %v2058
        %v2091 = vadd.f32 %v2023, %v2059
        %v2092 = vadd.f32 %v2024, %v2060
        %v2093 = vadd.f32 %v2025, %v2061
        %v2094 = vadd.f32 %v2026, %v2062
        %v2095 = vadd.f32 %v2027, %v2063
        %v2096 = vadd.f32 %v2028, %v2064
        %v2097 = vadd.f32 %v2029, %v2065
        %v2098 = vadd.f32 %v2030, %v2066
        %v2099 = vld [vmem:[#allocation2 + $0x4] sm:$0xff]
        %v2100 = vld [vmem:[#allocation2 + $0xc] sm:$0xff]
        %v2101 = vld [vmem:[#allocation2 + $0x1c] sm:$0xff]
        %v2102 = vld [vmem:[#allocation2 + $0x24] sm:$0xff]
        %v2103 = vld [vmem:[#allocation2 + $0x34] sm:$0xff]
        %v2104 = vld [vmem:[#allocation2 + $0x3c] sm:$0xff]
        %v2105 = vld [vmem:[#allocation2 + $0x4c] sm:$0xff]
        %v2106 = vld [vmem:[#allocation2 + $0x54] sm:$0xff]
        %v2107 = vld [vmem:[#allocation2 + $0x64] sm:$0xff]
        %v2108 = vld [vmem:[#allocation2 + $0x6c] sm:$0xff]
        %v2109 = vld [vmem:[#allocation2 + $0x7c] sm:$0xff]
        %v2110 = vld [vmem:[#allocation2 + $0x84] sm:$0xff]
        %v2111 = vld [vmem:[#allocation2 + $0x94] sm:$0xff]
        %v2112 = vld [vmem:[#allocation2 + $0x9c] sm:$0xff]
        %v2113 = vld [vmem:[#allocation2 + $0xac] sm:$0xff]
        %v2114 = vld [vmem:[#allocation2 + $0xb4] sm:$0xff]
        %v2115 = vld [vmem:[#allocation2 + $0xc4] sm:$0xff]
        %v2116 = vld [vmem:[#allocation2 + $0xcc] sm:$0xff]
        %v2117 = vld [vmem:[#allocation2 + $0xdc] sm:$0xff]
        %v2118 = vld [vmem:[#allocation2 + $0xe4] sm:$0xff]
        %v2119 = vld [vmem:[#allocation2 + $0xf4] sm:$0xff]
        %v2120 = vld [vmem:[#allocation2 + $0xfc] sm:$0xff]
        %v2121 = vld [vmem:[#allocation2 + $0x10c] sm:$0xff]
        %v2122 = vld [vmem:[#allocation2 + $0x114] sm:$0xff]
        %v2123 = vld [vmem:[#allocation2 + $0x124] sm:$0xff]
        %v2124 = vld [vmem:[#allocation2 + $0x12c] sm:$0xff]
        %v2125 = vld [vmem:[#allocation2 + $0x13c] sm:$0xff]
        %v2126 = vld [vmem:[#allocation2 + $0x144] sm:$0xff]
        %v2127 = vld [vmem:[#allocation2 + $0x154] sm:$0xff]
        %v2128 = vld [vmem:[#allocation2 + $0x15c] sm:$0xff]
        %v2129 = vld [vmem:[#allocation2 + $0x16c] sm:$0xff]
        %v2130 = vld [vmem:[#allocation2 + $0x174] sm:$0xff]
        %v2131 = vld [vmem:[#allocation2 + $0x184] sm:$0xff]
        %v2132 = vld [vmem:[#allocation2 + $0x18c] sm:$0xff]
        %v2133 = vld [vmem:[#allocation2 + $0x19c] sm:$0xff]
        %v2134 = vld [vmem:[#allocation2 + $0x1a4] sm:$0xff]
        %v2135 = vld [vmem:[#allocation2 + $0x1b4] sm:$0xff]
        %v2136 = vld [vmem:[#allocation2 + $0x1bc] sm:$0xff]
        %v2137 = vld [vmem:[#allocation2 + $0x1cc] sm:$0xff]
        %v2138 = vld [vmem:[#allocation2 + $0x1d4] sm:$0xff]
        %v2139 = vlaneseq
        %v2140 = vshrl.u32 %v2139, 7
        %v2141 = vsub.s32 4, %v2140
        %v2142 = vrot.slane %v575, %v2141
        %v2143 = vmul.f32 %v2099, %v2142
        %v2144 = vmul.f32 %v2100, %v2142
        %v2145 = vmul.f32 %v2101, %v2142
        %v2146 = vmul.f32 %v2102, %v2142
        %v2147 = vmul.f32 %v2103, %v2142
        %v2148 = vmul.f32 %v2104, %v2142
        %v2149 = vmul.f32 %v2105, %v2142
        %v2150 = vmul.f32 %v2106, %v2142
        %v2151 = vmul.f32 %v2107, %v2142
        %v2152 = vmul.f32 %v2108, %v2142
        %v2153 = vmul.f32 %v2109, %v2142
        %v2154 = vmul.f32 %v2110, %v2142
        %v2155 = vmul.f32 %v2111, %v2142
        %v2156 = vmul.f32 %v2112, %v2142
        %v2157 = vmul.f32 %v2113, %v2142
        %v2158 = vmul.f32 %v2114, %v2142
        %v2159 = vmul.f32 %v2115, %v2142
        %v2160 = vmul.f32 %v2116, %v2142
        %v2161 = vmul.f32 %v2117, %v2142
        %v2162 = vmul.f32 %v2118, %v2142
        %v2163 = vmul.f32 %v2119, %v2142
        %v2164 = vmul.f32 %v2120, %v2142
        %v2165 = vmul.f32 %v2121, %v2142
        %v2166 = vmul.f32 %v2122, %v2142
        %v2167 = vmul.f32 %v2123, %v2142
        %v2168 = vmul.f32 %v2124, %v2142
        %v2169 = vmul.f32 %v2125, %v2142
        %v2170 = vmul.f32 %v2126, %v2142
        %v2171 = vmul.f32 %v2127, %v2142
        %v2172 = vmul.f32 %v2128, %v2142
        %v2173 = vmul.f32 %v2129, %v2142
        %v2174 = vmul.f32 %v2130, %v2142
        %v2175 = vadd.f32 %v2067, %v2143
        %v2176 = vadd.f32 %v2068, %v2144
        %v2177 = vadd.f32 %v2069, %v2145
        %v2178 = vadd.f32 %v2070, %v2146
        %v2179 = vadd.f32 %v2071, %v2147
        %v2180 = vadd.f32 %v2072, %v2148
        %v2181 = vadd.f32 %v2073, %v2149
        %v2182 = vadd.f32 %v2074, %v2150
        %v2183 = vadd.f32 %v2075, %v2151
        %v2184 = vadd.f32 %v2076, %v2152
        %v2185 = vadd.f32 %v2077, %v2153
        %v2186 = vadd.f32 %v2078, %v2154
        %v2187 = vadd.f32 %v2079, %v2155
        %v2188 = vadd.f32 %v2080, %v2156
        %v2189 = vadd.f32 %v2081, %v2157
        %v2190 = vadd.f32 %v2082, %v2158
        %v2191 = vadd.f32 %v2083, %v2159
        %v2192 = vadd.f32 %v2084, %v2160
        %v2193 = vadd.f32 %v2085, %v2161
        %v2194 = vadd.f32 %v2086, %v2162
        %v2195 = vadd.f32 %v2087, %v2163
        %v2196 = vadd.f32 %v2088, %v2164
        %v2197 = vadd.f32 %v2089, %v2165
        %v2198 = vadd.f32 %v2090, %v2166
        %v2199 = vadd.f32 %v2091, %v2167
        %v2200 = vadd.f32 %v2092, %v2168
        %v2201 = vadd.f32 %v2093, %v2169
        %v2202 = vadd.f32 %v2094, %v2170
        %v2203 = vadd.f32 %v2095, %v2171
        %v2204 = vadd.f32 %v2096, %v2172
        %v2205 = vadd.f32 %v2097, %v2173
        %v2206 = vadd.f32 %v2098, %v2174
        %v2207 = vlaneseq
        %v2208 = vshrl.u32 %v2207, 7
        %v2209 = vsub.s32 1, %v2208
        %v2210 = vrot.slane %v576, %v2209
        %v2211 = vmul.f32 %v2101, %v2210
        %v2212 = vmul.f32 %v2102, %v2210
        %v2213 = vmul.f32 %v2103, %v2210
        %v2214 = vmul.f32 %v2104, %v2210
        %v2215 = vmul.f32 %v2105, %v2210
        %v2216 = vmul.f32 %v2106, %v2210
        %v2217 = vmul.f32 %v2107, %v2210
        %v2218 = vmul.f32 %v2108, %v2210
        %v2219 = vmul.f32 %v2109, %v2210
        %v2220 = vmul.f32 %v2110, %v2210
        %v2221 = vmul.f32 %v2111, %v2210
        %v2222 = vmul.f32 %v2112, %v2210
        %v2223 = vmul.f32 %v2113, %v2210
        %v2224 = vmul.f32 %v2114, %v2210
        %v2225 = vmul.f32 %v2115, %v2210
        %v2226 = vmul.f32 %v2116, %v2210
        %v2227 = vmul.f32 %v2117, %v2210
        %v2228 = vmul.f32 %v2118, %v2210
        %v2229 = vmul.f32 %v2119, %v2210
        %v2230 = vmul.f32 %v2120, %v2210
        %v2231 = vmul.f32 %v2121, %v2210
        %v2232 = vmul.f32 %v2122, %v2210
        %v2233 = vmul.f32 %v2123, %v2210
        %v2234 = vmul.f32 %v2124, %v2210
        %v2235 = vmul.f32 %v2125, %v2210
        %v2236 = vmul.f32 %v2126, %v2210
        %v2237 = vmul.f32 %v2127, %v2210
        %v2238 = vmul.f32 %v2128, %v2210
        %v2239 = vmul.f32 %v2129, %v2210
        %v2240 = vmul.f32 %v2130, %v2210
        %v2241 = vmul.f32 %v2131, %v2210
        %v2242 = vmul.f32 %v2132, %v2210
        %v2243 = vadd.f32 %v2175, %v2211
        %v2244 = vadd.f32 %v2176, %v2212
        %v2245 = vadd.f32 %v2177, %v2213
        %v2246 = vadd.f32 %v2178, %v2214
        %v2247 = vadd.f32 %v2179, %v2215
        %v2248 = vadd.f32 %v2180, %v2216
        %v2249 = vadd.f32 %v2181, %v2217
        %v2250 = vadd.f32 %v2182, %v2218
        %v2251 = vadd.f32 %v2183, %v2219
        %v2252 = vadd.f32 %v2184, %v2220
        %v2253 = vadd.f32 %v2185, %v2221
        %v2254 = vadd.f32 %v2186, %v2222
        %v2255 = vadd.f32 %v2187, %v2223
        %v2256 = vadd.f32 %v2188, %v2224
        %v2257 = vadd.f32 %v2189, %v2225
        %v2258 = vadd.f32 %v2190, %v2226
        %v2259 = vadd.f32 %v2191, %v2227
        %v2260 = vadd.f32 %v2192, %v2228
        %v2261 = vadd.f32 %v2193, %v2229
        %v2262 = vadd.f32 %v2194, %v2230
        %v2263 = vadd.f32 %v2195, %v2231
        %v2264 = vadd.f32 %v2196, %v2232
        %v2265 = vadd.f32 %v2197, %v2233
        %v2266 = vadd.f32 %v2198, %v2234
        %v2267 = vadd.f32 %v2199, %v2235
        %v2268 = vadd.f32 %v2200, %v2236
        %v2269 = vadd.f32 %v2201, %v2237
        %v2270 = vadd.f32 %v2202, %v2238
        %v2271 = vadd.f32 %v2203, %v2239
        %v2272 = vadd.f32 %v2204, %v2240
        %v2273 = vadd.f32 %v2205, %v2241
        %v2274 = vadd.f32 %v2206, %v2242
        %v2275 = vlaneseq
        %v2276 = vshrl.u32 %v2275, 7
        %v2277 = vsub.s32 6, %v2276
        %v2278 = vrot.slane %v576, %v2277
        %v2279 = vmul.f32 %v2103, %v2278
        %v2280 = vmul.f32 %v2104, %v2278
        %v2281 = vmul.f32 %v2105, %v2278
        %v2282 = vmul.f32 %v2106, %v2278
        %v2283 = vmul.f32 %v2107, %v2278
        %v2284 = vmul.f32 %v2108, %v2278
        %v2285 = vmul.f32 %v2109, %v2278
        %v2286 = vmul.f32 %v2110, %v2278
        %v2287 = vmul.f32 %v2111, %v2278
        %v2288 = vmul.f32 %v2112, %v2278
        %v2289 = vmul.f32 %v2113, %v2278
        %v2290 = vmul.f32 %v2114, %v2278
        %v2291 = vmul.f32 %v2115, %v2278
        %v2292 = vmul.f32 %v2116, %v2278
        %v2293 = vmul.f32 %v2117, %v2278
        %v2294 = vmul.f32 %v2118, %v2278
        %v2295 = vmul.f32 %v2119, %v2278
        %v2296 = vmul.f32 %v2120, %v2278
        %v2297 = vmul.f32 %v2121, %v2278
        %v2298 = vmul.f32 %v2122, %v2278
        %v2299 = vmul.f32 %v2123, %v2278
        %v2300 = vmul.f32 %v2124, %v2278
        %v2301 = vmul.f32 %v2125, %v2278
        %v2302 = vmul.f32 %v2126, %v2278
        %v2303 = vmul.f32 %v2127, %v2278
        %v2304 = vmul.f32 %v2128, %v2278
        %v2305 = vmul.f32 %v2129, %v2278
        %v2306 = vmul.f32 %v2130, %v2278
        %v2307 = vmul.f32 %v2131, %v2278
        %v2308 = vmul.f32 %v2132, %v2278
        %v2309 = vmul.f32 %v2133, %v2278
        %v2310 = vmul.f32 %v2134, %v2278
        %v2311 = vadd.f32 %v2243, %v2279
        %v2312 = vadd.f32 %v2244, %v2280
        %v2313 = vadd.f32 %v2245, %v2281
        %v2314 = vadd.f32 %v2246, %v2282
        %v2315 = vadd.f32 %v2247, %v2283
        %v2316 = vadd.f32 %v2248, %v2284
        %v2317 = vadd.f32 %v2249, %v2285
        %v2318 = vadd.f32 %v2250, %v2286
        %v2319 = vadd.f32 %v2251, %v2287
        %v2320 = vadd.f32 %v2252, %v2288
        %v2321 = vadd.f32 %v2253, %v2289
        %v2322 = vadd.f32 %v2254, %v2290
        %v2323 = vadd.f32 %v2255, %v2291
        %v2324 = vadd.f32 %v2256, %v2292
        %v2325 = vadd.f32 %v2257, %v2293
        %v2326 = vadd.f32 %v2258, %v2294
        %v2327 = vadd.f32 %v2259, %v2295
        %v2328 = vadd.f32 %v2260, %v2296
        %v2329 = vadd.f32 %v2261, %v2297
        %v2330 = vadd.f32 %v2262, %v2298
        %v2331 = vadd.f32 %v2263, %v2299
        %v2332 = vadd.f32 %v2264, %v2300
        %v2333 = vadd.f32 %v2265, %v2301
        %v2334 = vadd.f32 %v2266, %v2302
        %v2335 = vadd.f32 %v2267, %v2303
        %v2336 = vadd.f32 %v2268, %v2304
        %v2337 = vadd.f32 %v2269, %v2305
        %v2338 = vadd.f32 %v2270, %v2306
        %v2339 = vadd.f32 %v2271, %v2307
        %v2340 = vadd.f32 %v2272, %v2308
        %v2341 = vadd.f32 %v2273, %v2309
        %v2342 = vadd.f32 %v2274, %v2310
        %v2343 = vlaneseq
        %v2344 = vshrl.u32 %v2343, 7
        %v2345 = vsub.s32 3, %v2344
        %v2346 = vrot.slane %v577, %v2345
        %v2347 = vmul.f32 %v2105, %v2346
        %v2348 = vmul.f32 %v2106, %v2346
        %v2349 = vmul.f32 %v2107, %v2346
        %v2350 = vmul.f32 %v2108, %v2346
        %v2351 = vmul.f32 %v2109, %v2346
        %v2352 = vmul.f32 %v2110, %v2346
        %v2353 = vmul.f32 %v2111, %v2346
        %v2354 = vmul.f32 %v2112, %v2346
        %v2355 = vmul.f32 %v2113, %v2346
        %v2356 = vmul.f32 %v2114, %v2346
        %v2357 = vmul.f32 %v2115, %v2346
        %v2358 = vmul.f32 %v2116, %v2346
        %v2359 = vmul.f32 %v2117, %v2346
        %v2360 = vmul.f32 %v2118, %v2346
        %v2361 = vmul.f32 %v2119, %v2346
        %v2362 = vmul.f32 %v2120, %v2346
        %v2363 = vmul.f32 %v2121, %v2346
        %v2364 = vmul.f32 %v2122, %v2346
        %v2365 = vmul.f32 %v2123, %v2346
        %v2366 = vmul.f32 %v2124, %v2346
        %v2367 = vmul.f32 %v2125, %v2346
        %v2368 = vmul.f32 %v2126, %v2346
        %v2369 = vmul.f32 %v2127, %v2346
        %v2370 = vmul.f32 %v2128, %v2346
        %v2371 = vmul.f32 %v2129, %v2346
        %v2372 = vmul.f32 %v2130, %v2346
        %v2373 = vmul.f32 %v2131, %v2346
        %v2374 = vmul.f32 %v2132, %v2346
        %v2375 = vmul.f32 %v2133, %v2346
        %v2376 = vmul.f32 %v2134, %v2346
        %v2377 = vmul.f32 %v2135, %v2346
        %v2378 = vmul.f32 %v2136, %v2346
        %v2379 = vadd.f32 %v2311, %v2347
        %v2380 = vadd.f32 %v2312, %v2348
        %v2381 = vadd.f32 %v2313, %v2349
        %v2382 = vadd.f32 %v2314, %v2350
        %v2383 = vadd.f32 %v2315, %v2351
        %v2384 = vadd.f32 %v2316, %v2352
        %v2385 = vadd.f32 %v2317, %v2353
        %v2386 = vadd.f32 %v2318, %v2354
        %v2387 = vadd.f32 %v2319, %v2355
        %v2388 = vadd.f32 %v2320, %v2356
        %v2389 = vadd.f32 %v2321, %v2357
        %v2390 = vadd.f32 %v2322, %v2358
        %v2391 = vadd.f32 %v2323, %v2359
        %v2392 = vadd.f32 %v2324, %v2360
        %v2393 = vadd.f32 %v2325, %v2361
        %v2394 = vadd.f32 %v2326, %v2362
        %v2395 = vadd.f32 %v2327, %v2363
        %v2396 = vadd.f32 %v2328, %v2364
        %v2397 = vadd.f32 %v2329, %v2365
        %v2398 = vadd.f32 %v2330, %v2366
        %v2399 = vadd.f32 %v2331, %v2367
        %v2400 = vadd.f32 %v2332, %v2368
        %v2401 = vadd.f32 %v2333, %v2369
        %v2402 = vadd.f32 %v2334, %v2370
        %v2403 = vadd.f32 %v2335, %v2371
        %v2404 = vadd.f32 %v2336, %v2372
        %v2405 = vadd.f32 %v2337, %v2373
        %v2406 = vadd.f32 %v2338, %v2374
        %v2407 = vadd.f32 %v2339, %v2375
        %v2408 = vadd.f32 %v2340, %v2376
        %v2409 = vadd.f32 %v2341, %v2377
        %v2410 = vadd.f32 %v2342, %v2378
        %v2411 = vlaneseq
        %v2412 = vshrl.u32 %v2411, 7
        %v2413 = vsub.s32 0, %v2412
        %v2414 = vrot.slane %v578, %v2413
        %v2415 = vmul.f32 %v2107, %v2414
        %v2416 = vmul.f32 %v2108, %v2414
        %v2417 = vmul.f32 %v2109, %v2414
        %v2418 = vmul.f32 %v2110, %v2414
        %v2419 = vmul.f32 %v2111, %v2414
        %v2420 = vmul.f32 %v2112, %v2414
        %v2421 = vmul.f32 %v2113, %v2414
        %v2422 = vmul.f32 %v2114, %v2414
        %v2423 = vmul.f32 %v2115, %v2414
        %v2424 = vmul.f32 %v2116, %v2414
        %v2425 = vmul.f32 %v2117, %v2414
        %v2426 = vmul.f32 %v2118, %v2414
        %v2427 = vmul.f32 %v2119, %v2414
        %v2428 = vmul.f32 %v2120, %v2414
        %v2429 = vmul.f32 %v2121, %v2414
        %v2430 = vmul.f32 %v2122, %v2414
        %v2431 = vmul.f32 %v2123, %v2414
        %v2432 = vmul.f32 %v2124, %v2414
        %v2433 = vmul.f32 %v2125, %v2414
        %v2434 = vmul.f32 %v2126, %v2414
        %v2435 = vmul.f32 %v2127, %v2414
        %v2436 = vmul.f32 %v2128, %v2414
        %v2437 = vmul.f32 %v2129, %v2414
        %v2438 = vmul.f32 %v2130, %v2414
        %v2439 = vmul.f32 %v2131, %v2414
        %v2440 = vmul.f32 %v2132, %v2414
        %v2441 = vmul.f32 %v2133, %v2414
        %v2442 = vmul.f32 %v2134, %v2414
        %v2443 = vmul.f32 %v2135, %v2414
        %v2444 = vmul.f32 %v2136, %v2414
        %v2445 = vmul.f32 %v2137, %v2414
        %v2446 = vmul.f32 %v2138, %v2414
        %v2447 = vadd.f32 %v2379, %v2415
        %v2448 = vadd.f32 %v2380, %v2416
        %v2449 = vadd.f32 %v2381, %v2417
        %v2450 = vadd.f32 %v2382, %v2418
        %v2451 = vadd.f32 %v2383, %v2419
        %v2452 = vadd.f32 %v2384, %v2420
        %v2453 = vadd.f32 %v2385, %v2421
        %v2454 = vadd.f32 %v2386, %v2422
        %v2455 = vadd.f32 %v2387, %v2423
        %v2456 = vadd.f32 %v2388, %v2424
        %v2457 = vadd.f32 %v2389, %v2425
        %v2458 = vadd.f32 %v2390, %v2426
        %v2459 = vadd.f32 %v2391, %v2427
        %v2460 = vadd.f32 %v2392, %v2428
        %v2461 = vadd.f32 %v2393, %v2429
        %v2462 = vadd.f32 %v2394, %v2430
        %v2463 = vadd.f32 %v2395, %v2431
        %v2464 = vadd.f32 %v2396, %v2432
        %v2465 = vadd.f32 %v2397, %v2433
        %v2466 = vadd.f32 %v2398, %v2434
        %v2467 = vadd.f32 %v2399, %v2435
        %v2468 = vadd.f32 %v2400, %v2436
        %v2469 = vadd.f32 %v2401, %v2437
        %v2470 = vadd.f32 %v2402, %v2438
        %v2471 = vadd.f32 %v2403, %v2439
        %v2472 = vadd.f32 %v2404, %v2440
        %v2473 = vadd.f32 %v2405, %v2441
        %v2474 = vadd.f32 %v2406, %v2442
        %v2475 = vadd.f32 %v2407, %v2443
        %v2476 = vadd.f32 %v2408, %v2444
        %v2477 = vadd.f32 %v2409, %v2445
        %v2478 = vadd.f32 %v2410, %v2446
        %v2479 = vld [vmem:[%s2] sm:$0x1]
        %v2481 = vlaneseq
        %v2482 = vshrl.u32 %v2481, 7
        %v2483 = vsub.s32 0, %v2482
        %v2484 = vrot.slane %v2479, %v2483
        %v2486 = vadd.f32 %v2447, %v2484
        %v2487 = vadd.f32 %v2448, %v2484
        %v2488 = vadd.f32 %v2449, %v2484
        %v2489 = vadd.f32 %v2450, %v2484
        %v2490 = vadd.f32 %v2451, %v2484
        %v2491 = vadd.f32 %v2452, %v2484
        %v2492 = vadd.f32 %v2453, %v2484
        %v2493 = vadd.f32 %v2454, %v2484
        %v2494 = vadd.f32 %v2455, %v2484
        %v2495 = vadd.f32 %v2456, %v2484
        %v2496 = vadd.f32 %v2457, %v2484
        %v2497 = vadd.f32 %v2458, %v2484
        %v2498 = vadd.f32 %v2459, %v2484
        %v2499 = vadd.f32 %v2460, %v2484
        %v2500 = vadd.f32 %v2461, %v2484
        %v2501 = vadd.f32 %v2462, %v2484
        %v2502 = vadd.f32 %v2463, %v2484
        %v2503 = vadd.f32 %v2464, %v2484
        %v2504 = vadd.f32 %v2465, %v2484
        %v2505 = vadd.f32 %v2466, %v2484
        %v2506 = vadd.f32 %v2467, %v2484
        %v2507 = vadd.f32 %v2468, %v2484
        %v2508 = vadd.f32 %v2469, %v2484
        %v2509 = vadd.f32 %v2470, %v2484
        %v2510 = vadd.f32 %v2471, %v2484
        %v2511 = vadd.f32 %v2472, %v2484
        %v2512 = vadd.f32 %v2473, %v2484
        %v2513 = vadd.f32 %v2474, %v2484
        %v2514 = vadd.f32 %v2475, %v2484
        %v2515 = vadd.f32 %v2476, %v2484
        %v2516 = vadd.f32 %v2477, %v2484
        %v2517 = vadd.f32 %v2478, %v2484
        %v2518 = vadd.f32 %v2486, %v2488
        %v2519 = vadd.f32 %v2518, %v2490
        %v2520 = vadd.f32 %v2519, %v2492
        %v2521 = vadd.f32 %v2520, %v2494
        %v2522 = vadd.f32 %v2521, %v2496
        %v2523 = vadd.f32 %v2522, %v2498
        %v2524 = vadd.f32 %v2523, %v2500
        %v2525 = vadd.f32 %v2524, %v2502
        %v2526 = vadd.f32 %v2525, %v2504
        %v2527 = vadd.f32 %v2526, %v2506
        %v2528 = vadd.f32 %v2527, %v2508
        %v2529 = vadd.f32 %v2528, %v2510
        %v2530 = vadd.f32 %v2529, %v2512
        %v2531 = vadd.f32 %v2530, %v2514
        %v2532 = vadd.f32 %v2531, %v2516
        %v2533 = vadd.f32 %v2487, %v2489
        %v2534 = vadd.f32 %v2533, %v2491
        %v2535 = vadd.f32 %v2534, %v2493
        %v2536 = vadd.f32 %v2535, %v2495
        %v2537 = vadd.f32 %v2536, %v2497
        %v2538 = vadd.f32 %v2537, %v2499
        %v2539 = vadd.f32 %v2538, %v2501
        %v2540 = vadd.f32 %v2539, %v2503
        %v2541 = vadd.f32 %v2540, %v2505
        %v2542 = vadd.f32 %v2541, %v2507
        %v2543 = vadd.f32 %v2542, %v2509
        %v2544 = vadd.f32 %v2543, %v2511
        %v2545 = vadd.f32 %v2544, %v2513
        %v2546 = vadd.f32 %v2545, %v2515
        %v2547 = vadd.f32 %v2546, %v2517
        %v2548 = vrcp.pop 16.0
        %v2549 = vmul.f32 %v2532, %v2548
        %v2550 = vmul.f32 %v2547, %v2548
        %v2551 = vsub.f32 %v2486, %v2549
        %v2552 = vsub.f32 %v2487, %v2550
        %v2553 = vsub.f32 %v2488, %v2549
        %v2554 = vsub.f32 %v2489, %v2550
        %v2555 = vsub.f32 %v2490, %v2549
        %v2556 = vsub.f32 %v2491, %v2550
        %v2557 = vsub.f32 %v2492, %v2549
        %v2558 = vsub.f32 %v2493, %v2550
        %v2559 = vsub.f32 %v2494, %v2549
        %v2560 = vsub.f32 %v2495, %v2550
        %v2561 = vsub.f32 %v2496, %v2549
        %v2562 = vsub.f32 %v2497, %v2550
        %v2563 = vsub.f32 %v2498, %v2549
        %v2564 = vsub.f32 %v2499, %v2550
        %v2565 = vsub.f32 %v2500, %v2549
        %v2566 = vsub.f32 %v2501, %v2550
        %v2567 = vsub.f32 %v2502, %v2549
        %v2568 = vsub.f32 %v2503, %v2550
        %v2569 = vsub.f32 %v2504, %v2549
        %v2570 = vsub.f32 %v2505, %v2550
        %v2571 = vsub.f32 %v2506, %v2549
        %v2572 = vsub.f32 %v2507, %v2550
        %v2573 = vsub.f32 %v2508, %v2549
        %v2574 = vsub.f32 %v2509, %v2550
        %v2575 = vsub.f32 %v2510, %v2549
        %v2576 = vsub.f32 %v2511, %v2550
        %v2577 = vsub.f32 %v2512, %v2549
        %v2578 = vsub.f32 %v2513, %v2550
        %v2579 = vsub.f32 %v2514, %v2549
        %v2580 = vsub.f32 %v2515, %v2550
        %v2581 = vsub.f32 %v2516, %v2549
        %v2582 = vsub.f32 %v2517, %v2550
        %v2583 = vmul.f32 %v2551, %v2551
        %v2584 = vmul.f32 %v2552, %v2552
        %v2585 = vmul.f32 %v2553, %v2553
        %v2586 = vmul.f32 %v2554, %v2554
        %v2587 = vmul.f32 %v2555, %v2555
        %v2588 = vmul.f32 %v2556, %v2556
        %v2589 = vmul.f32 %v2557, %v2557
        %v2590 = vmul.f32 %v2558, %v2558
        %v2591 = vmul.f32 %v2559, %v2559
        %v2592 = vmul.f32 %v2560, %v2560
        %v2593 = vmul.f32 %v2561, %v2561
        %v2594 = vmul.f32 %v2562, %v2562
        %v2595 = vmul.f32 %v2563, %v2563
        %v2596 = vmul.f32 %v2564, %v2564
        %v2597 = vmul.f32 %v2565, %v2565
        %v2598 = vmul.f32 %v2566, %v2566
        %v2599 = vmul.f32 %v2567, %v2567
        %v2600 = vmul.f32 %v2568, %v2568
        %v2601 = vmul.f32 %v2569, %v2569
        %v2602 = vmul.f32 %v2570, %v2570
        %v2603 = vmul.f32 %v2571, %v2571
        %v2604 = vmul.f32 %v2572, %v2572
        %v2605 = vmul.f32 %v2573, %v2573
        %v2606 = vmul.f32 %v2574, %v2574
        %v2607 = vmul.f32 %v2575, %v2575
        %v2608 = vmul.f32 %v2576, %v2576
        %v2609 = vmul.f32 %v2577, %v2577
        %v2610 = vmul.f32 %v2578, %v2578
        %v2611 = vmul.f32 %v2579, %v2579
        %v2612 = vmul.f32 %v2580, %v2580
        %v2613 = vmul.f32 %v2581, %v2581
        %v2614 = vmul.f32 %v2582, %v2582
        %v2615 = vadd.f32 %v2583, %v2585
        %v2616 = vadd.f32 %v2615, %v2587
        %v2617 = vadd.f32 %v2616, %v2589
        %v2618 = vadd.f32 %v2617, %v2591
        %v2619 = vadd.f32 %v2618, %v2593
        %v2620 = vadd.f32 %v2619, %v2595
        %v2621 = vadd.f32 %v2620, %v2597
        %v2622 = vadd.f32 %v2621, %v2599
        %v2623 = vadd.f32 %v2622, %v2601
        %v2624 = vadd.f32 %v2623, %v2603
        %v2625 = vadd.f32 %v2624, %v2605
        %v2626 = vadd.f32 %v2625, %v2607
        %v2627 = vadd.f32 %v2626, %v2609
        %v2628 = vadd.f32 %v2627, %v2611
        %v2629 = vadd.f32 %v2628, %v2613
        %v2630 = vadd.f32 %v2584, %v2586
        %v2631 = vadd.f32 %v2630, %v2588
        %v2632 = vadd.f32 %v2631, %v2590
        %v2633 = vadd.f32 %v2632, %v2592
        %v2634 = vadd.f32 %v2633, %v2594
        %v2635 = vadd.f32 %v2634, %v2596
        %v2636 = vadd.f32 %v2635, %v2598
        %v2637 = vadd.f32 %v2636, %v2600
        %v2638 = vadd.f32 %v2637, %v2602
        %v2639 = vadd.f32 %v2638, %v2604
        %v2640 = vadd.f32 %v2639, %v2606
        %v2641 = vadd.f32 %v2640, %v2608
        %v2642 = vadd.f32 %v2641, %v2610
        %v2643 = vadd.f32 %v2642, %v2612
        %v2644 = vadd.f32 %v2643, %v2614
        %v2645 = vmul.f32 %v2629, %v2548
        %v2646 = vmul.f32 %v2644, %v2548
        %v2647 = vadd.f32 %v2645, 1e-06
        %v2648 = vadd.f32 %v2646, 1e-06
        %v2649 = vrsqrt.pop %v2647
        %v2650 = vrsqrt.pop %v2648
        %v2651 = vmul.f32 %v2551, %v2649
        %v2652 = vmul.f32 %v2552, %v2650
        %v2653 = vmul.f32 %v2553, %v2649
        %v2654 = vmul.f32 %v2554, %v2650
        %v2655 = vmul.f32 %v2555, %v2649
        %v2656 = vmul.f32 %v2556, %v2650
        %v2657 = vmul.f32 %v2557, %v2649
        %v2658 = vmul.f32 %v2558, %v2650
        %v2659 = vmul.f32 %v2559, %v2649
        %v2660 = vmul.f32 %v2560, %v2650
        %v2661 = vmul.f32 %v2561, %v2649
        %v2662 = vmul.f32 %v2562, %v2650
        %v2663 = vmul.f32 %v2563, %v2649
        %v2664 = vmul.f32 %v2564, %v2650
        %v2665 = vmul.f32 %v2565, %v2649
        %v2666 = vmul.f32 %v2566, %v2650
        %v2667 = vmul.f32 %v2567, %v2649
        %v2668 = vmul.f32 %v2568, %v2650
        %v2669 = vmul.f32 %v2569, %v2649
        %v2670 = vmul.f32 %v2570, %v2650
        %v2671 = vmul.f32 %v2571, %v2649
        %v2672 = vmul.f32 %v2572, %v2650
        %v2673 = vmul.f32 %v2573, %v2649
        %v2674 = vmul.f32 %v2574, %v2650
        %v2675 = vmul.f32 %v2575, %v2649
        %v2676 = vmul.f32 %v2576, %v2650
        %v2677 = vmul.f32 %v2577, %v2649
        %v2678 = vmul.f32 %v2578, %v2650
        %v2679 = vmul.f32 %v2579, %v2649
        %v2680 = vmul.f32 %v2580, %v2650
        %v2681 = vmul.f32 %v2581, %v2649
        %v2682 = vmul.f32 %v2582, %v2650
        %v2683 = vld [vmem:[%s3] sm:$0x1]
        %v2685 = vlaneseq
        %v2686 = vshrl.u32 %v2685, 7
        %v2687 = vsub.s32 0, %v2686
        %v2688 = vrot.slane %v2683, %v2687
        %v2690 = vmul.f32 %v2688, %v2651
        %v2691 = vmul.f32 %v2688, %v2652
        %v2692 = vmul.f32 %v2688, %v2653
        %v2693 = vmul.f32 %v2688, %v2654
        %v2694 = vmul.f32 %v2688, %v2655
        %v2695 = vmul.f32 %v2688, %v2656
        %v2696 = vmul.f32 %v2688, %v2657
        %v2697 = vmul.f32 %v2688, %v2658
        %v2698 = vmul.f32 %v2688, %v2659
        %v2699 = vmul.f32 %v2688, %v2660
        %v2700 = vmul.f32 %v2688, %v2661
        %v2701 = vmul.f32 %v2688, %v2662
        %v2702 = vmul.f32 %v2688, %v2663
        %v2703 = vmul.f32 %v2688, %v2664
        %v2704 = vmul.f32 %v2688, %v2665
        %v2705 = vmul.f32 %v2688, %v2666
        %v2706 = vmul.f32 %v2688, %v2667
        %v2707 = vmul.f32 %v2688, %v2668
        %v2708 = vmul.f32 %v2688, %v2669
        %v2709 = vmul.f32 %v2688, %v2670
        %v2710 = vmul.f32 %v2688, %v2671
        %v2711 = vmul.f32 %v2688, %v2672
        %v2712 = vmul.f32 %v2688, %v2673
        %v2713 = vmul.f32 %v2688, %v2674
        %v2714 = vmul.f32 %v2688, %v2675
        %v2715 = vmul.f32 %v2688, %v2676
        %v2716 = vmul.f32 %v2688, %v2677
        %v2717 = vmul.f32 %v2688, %v2678
        %v2718 = vmul.f32 %v2688, %v2679
        %v2719 = vmul.f32 %v2688, %v2680
        %v2720 = vmul.f32 %v2688, %v2681
        %v2721 = vmul.f32 %v2688, %v2682
        %v2722 = vld [vmem:[%s4] sm:$0x1]
        %v2724 = vlaneseq
        %v2725 = vshrl.u32 %v2724, 7
        %v2726 = vsub.s32 0, %v2725
        %v2727 = vrot.slane %v2722, %v2726
        %v2729 = vadd.f32 %v2690, %v2727
        %v2730 = vadd.f32 %v2691, %v2727
        %v2731 = vadd.f32 %v2692, %v2727
        %v2732 = vadd.f32 %v2693, %v2727
        %v2733 = vadd.f32 %v2694, %v2727
        %v2734 = vadd.f32 %v2695, %v2727
        %v2735 = vadd.f32 %v2696, %v2727
        %v2736 = vadd.f32 %v2697, %v2727
        %v2737 = vadd.f32 %v2698, %v2727
        %v2738 = vadd.f32 %v2699, %v2727
        %v2739 = vadd.f32 %v2700, %v2727
        %v2740 = vadd.f32 %v2701, %v2727
        %v2741 = vadd.f32 %v2702, %v2727
        %v2742 = vadd.f32 %v2703, %v2727
        %v2743 = vadd.f32 %v2704, %v2727
        %v2744 = vadd.f32 %v2705, %v2727
        %v2745 = vadd.f32 %v2706, %v2727
        %v2746 = vadd.f32 %v2707, %v2727
        %v2747 = vadd.f32 %v2708, %v2727
        %v2748 = vadd.f32 %v2709, %v2727
        %v2749 = vadd.f32 %v2710, %v2727
        %v2750 = vadd.f32 %v2711, %v2727
        %v2751 = vadd.f32 %v2712, %v2727
        %v2752 = vadd.f32 %v2713, %v2727
        %v2753 = vadd.f32 %v2714, %v2727
        %v2754 = vadd.f32 %v2715, %v2727
        %v2755 = vadd.f32 %v2716, %v2727
        %v2756 = vadd.f32 %v2717, %v2727
        %v2757 = vadd.f32 %v2718, %v2727
        %v2758 = vadd.f32 %v2719, %v2727
        %v2759 = vadd.f32 %v2720, %v2727
        %v2760 = vadd.f32 %v2721, %v2727
        %2761 = vst [vmem:[#allocation3] sm:$0xff] %v2729
        %2762 = vst [vmem:[#allocation3 + $0x8] sm:$0xff] %v2730
        %2763 = vst [vmem:[#allocation3 + $0x10] sm:$0xff] %v2731
        %2764 = vst [vmem:[#allocation3 + $0x18] sm:$0xff] %v2732
        %2765 = vst [vmem:[#allocation3 + $0x20] sm:$0xff] %v2733
        %2766 = vst [vmem:[#allocation3 + $0x28] sm:$0xff] %v2734
        %2767 = vst [vmem:[#allocation3 + $0x30] sm:$0xff] %v2735
        %2768 = vst [vmem:[#allocation3 + $0x38] sm:$0xff] %v2736
        %2769 = vst [vmem:[#allocation3 + $0x40] sm:$0xff] %v2737
        %2770 = vst [vmem:[#allocation3 + $0x48] sm:$0xff] %v2738
        %2771 = vst [vmem:[#allocation3 + $0x50] sm:$0xff] %v2739
        %2772 = vst [vmem:[#allocation3 + $0x58] sm:$0xff] %v2740
        %2773 = vst [vmem:[#allocation3 + $0x60] sm:$0xff] %v2741
        %2774 = vst [vmem:[#allocation3 + $0x68] sm:$0xff] %v2742
        %2775 = vst [vmem:[#allocation3 + $0x70] sm:$0xff] %v2743
        %2776 = vst [vmem:[#allocation3 + $0x78] sm:$0xff] %v2744
        %2777 = vst [vmem:[#allocation3 + $0x80] sm:$0xff] %v2745
        %2778 = vst [vmem:[#allocation3 + $0x88] sm:$0xff] %v2746
        %2779 = vst [vmem:[#allocation3 + $0x90] sm:$0xff] %v2747
        %2780 = vst [vmem:[#allocation3 + $0x98] sm:$0xff] %v2748
        %2781 = vst [vmem:[#allocation3 + $0xa0] sm:$0xff] %v2749
        %2782 = vst [vmem:[#allocation3 + $0xa8] sm:$0xff] %v2750
        %2783 = vst [vmem:[#allocation3 + $0xb0] sm:$0xff] %v2751
        %2784 = vst [vmem:[#allocation3 + $0xb8] sm:$0xff] %v2752
        %2785 = vst [vmem:[#allocation3 + $0xc0] sm:$0xff] %v2753
        %2786 = vst [vmem:[#allocation3 + $0xc8] sm:$0xff] %v2754
        %2787 = vst [vmem:[#allocation3 + $0xd0] sm:$0xff] %v2755
        %2788 = vst [vmem:[#allocation3 + $0xd8] sm:$0xff] %v2756
        %2789 = vst [vmem:[#allocation3 + $0xe0] sm:$0xff] %v2757
        %2790 = vst [vmem:[#allocation3 + $0xe8] sm:$0xff] %v2758
        %2791 = vst [vmem:[#allocation3 + $0xf0] sm:$0xff] %v2759
        %2792 = vst [vmem:[#allocation3 + $0xf8] sm:$0xff] %v2760
        %v2793 = vld [vmem:[#allocation10] sm:$0xf]
        %v2794 = vld [vmem:[#allocation10 + $0x4] sm:$0xf]
        %v2795 = vld [vmem:[#allocation10 + $0x8] sm:$0xf]
        %v2796 = vld [vmem:[#allocation10 + $0xc] sm:$0xf]
        %v2797 = vld [vmem:[#allocation10 + $0x10] sm:$0xf]
        %v2798 = vld [vmem:[#allocation10 + $0x14] sm:$0xf]
        %v2799 = vld [vmem:[#allocation10 + $0x18] sm:$0xf]
        %v2800 = vld [vmem:[#allocation10 + $0x1c] sm:$0xf]
        %v2801 = vld [vmem:[#allocation10 + $0x20] sm:$0xf]
        %v2802 = vld [vmem:[#allocation10 + $0x24] sm:$0xf]
        %v2803 = vld [vmem:[#allocation10 + $0x28] sm:$0xf]
        %v2804 = vld [vmem:[#allocation10 + $0x2c] sm:$0xf]
        %v2805 = vld [vmem:[#allocation10 + $0x30] sm:$0xf]
        %v2806 = vld [vmem:[#allocation10 + $0x34] sm:$0xf]
        %v2807 = vld [vmem:[#allocation10 + $0x38] sm:$0xf]
        %v2808 = vld [vmem:[#allocation10 + $0x3c] sm:$0xf]
        %v2809 = vld [vmem:[%s6] sm:$0x1]
        %v2810 = vld [vmem:[#allocation3] sm:$0xff]
        %v2811 = vld [vmem:[#allocation3 + $0x8] sm:$0xff]
        %v2812 = vld [vmem:[#allocation3 + $0x10] sm:$0xff]
        %v2813 = vld [vmem:[#allocation3 + $0x18] sm:$0xff]
        %v2814 = vld [vmem:[#allocation3 + $0x20] sm:$0xff]
        %v2815 = vld [vmem:[#allocation3 + $0x28] sm:$0xff]
        %v2816 = vld [vmem:[#allocation3 + $0x30] sm:$0xff]
        %v2817 = vld [vmem:[#allocation3 + $0x38] sm:$0xff]
        %v2818 = vpack.c.bf16 %v2811, %v2810
        %v2819 = vpack.c.bf16 %v2813, %v2812
        %v2820 = vpack.c.bf16 %v2815, %v2814
        %v2821 = vpack.c.bf16 %v2817, %v2816
        %v2823 = vlaneseq
        %v2824 = vshrl.u32 %v2823, 7
        %v2825 = vsub.s32 0, %v2824
        %v2826 = vrot.slane %v2809, %v2825
        %v2844 = vunpack.c.l.b16 %v2793
        %v2845 = vunpack.c.l.b16 %v2794
        %v2846 = vunpack.c.l.b16 %v2795
        %v2847 = vunpack.c.l.b16 %v2796
        %v2848 = vunpack.c.l.b16 %v2797
        %v2849 = vunpack.c.l.b16 %v2798
        %v2850 = vunpack.c.l.b16 %v2799
        %v2851 = vunpack.c.l.b16 %v2800
        %v2852 = vunpack.c.l.b16 %v2801
        %v2853 = vunpack.c.l.b16 %v2802
        %v2854 = vunpack.c.l.b16 %v2803
        %v2855 = vunpack.c.l.b16 %v2804
        %v2856 = vunpack.c.l.b16 %v2805
        %v2857 = vunpack.c.l.b16 %v2806
        %v2858 = vunpack.c.l.b16 %v2807
        %v2859 = vunpack.c.l.b16 %v2808
        %v2860 = vpack.c.b16 %v2845, %v2844
        %v2861 = vpack.c.b16 %v2847, %v2846
        %v2862 = vpack.c.b16 %v2849, %v2848
        %v2863 = vpack.c.b16 %v2851, %v2850
        %v2864 = vpack.c.b16 %v2853, %v2852
        %v2865 = vpack.c.b16 %v2855, %v2854
        %v2866 = vpack.c.b16 %v2857, %v2856
        %v2867 = vpack.c.b16 %v2859, %v2858
        %2876 = vmatprep.subr.bf16.mxu0 0
        %2877 = vmatpush1.bf16.msra.mxu0 %v2860
        %2878 = vmatprep.subr.bf16.mxu0 0
        %2879 = vmatpush1.bf16.msra.mxu0 %v2861
        %2880 = vmatprep.subr.bf16.mxu0 0
        %2881 = vmatpush1.bf16.msra.mxu0 %v2862
        %2882 = vmatprep.subr.bf16.mxu0 0
        %2883 = vmatpush1.bf16.msra.mxu0 %v2863
        %2884 = vmatprep.subr.bf16.mxu0 0
        %2885 = vmatpush1.bf16.msra.mxu0 %v2864
        %2886 = vmatprep.subr.bf16.mxu0 0
        %2887 = vmatpush1.bf16.msra.mxu0 %v2865
        %2888 = vmatprep.subr.bf16.mxu0 0
        %2889 = vmatpush1.bf16.msra.mxu0 %v2866
        %2890 = vmatprep.subr.bf16.mxu0 0
        %2891 = vmatpush1.bf16.msra.mxu0 %v2867
        %2892 = vmatprep.subr.bf16.mxu0 0
        %2893 = vmatpush1.bf16.msra.mxu0 0
        %2894 = vmatprep.subr.bf16.mxu0 0
        %2895 = vmatpush1.bf16.msra.mxu0 0
        %2896 = vmatprep.subr.bf16.mxu0 0
        %2897 = vmatpush1.bf16.msra.mxu0 0
        %2898 = vmatprep.subr.bf16.mxu0 0
        %2899 = vmatpush1.bf16.msra.mxu0 0
        %2900 = vmatprep.subr.bf16.mxu0 0
        %2901 = vmatpush1.bf16.msra.mxu0 0
        %2902 = vmatprep.subr.bf16.mxu0 0
        %2903 = vmatpush1.bf16.msra.mxu0 0
        %2904 = vmatprep.subr.bf16.mxu0 0
        %2905 = vmatpush1.bf16.msra.mxu0 0
        %2906 = vmatprep.subr.bf16.mxu0 0
        %2907 = vmatpush1.bf16.msra.mxu0 0
        %2908 = vmatprep.mubr.bf16.mxu0 0
        %2909 = vmatmul.mubr.bf16.gmra.mrb[0].mxu0 %v2818
        %v2910 = vpop.f32.mrb[0].mxu0
        %v2911 = vadd.f32 %v2826, %v2910
        %v2912 = vpop.f32.mrb[0].mxu0
        %v2913 = vpop.f32.mrb[0].mxu0
        %v2914 = vadd.f32 %v2826, %v2913
        %v2915 = vpop.f32.mrb[0].mxu0
        %2916 = vmatprep.mubr.bf16.mxu0 0
        %2917 = vmatmul.mubr.bf16.gmra.mrb[0].mxu0 %v2819
        %v2918 = vpop.f32.mrb[0].mxu0
        %v2919 = vadd.f32 %v2826, %v2918
        %v2920 = vpop.f32.mrb[0].mxu0
        %v2921 = vpop.f32.mrb[0].mxu0
        %v2922 = vadd.f32 %v2826, %v2921
        %v2923 = vpop.f32.mrb[0].mxu0
        %2924 = vmatprep.mubr.bf16.mxu0 0
        %2925 = vmatmul.mubr.bf16.gmra.mrb[0].mxu0 %v2820
        %v2926 = vpop.f32.mrb[0].mxu0
        %v2927 = vadd.f32 %v2826, %v2926
        %v2928 = vpop.f32.mrb[0].mxu0
        %v2929 = vpop.f32.mrb[0].mxu0
        %v2930 = vadd.f32 %v2826, %v2929
        %v2931 = vpop.f32.mrb[0].mxu0
        %2932 = vmatprep.mubr.bf16.mxu0 0
        %2933 = vmatmul.mubr.bf16.gmra.mrb[0].mxu0 %v2821
        %v2934 = vpop.f32.mrb[0].mxu0
        %v2935 = vadd.f32 %v2826, %v2934
        %v2936 = vpop.f32.mrb[0].mxu0
        %v2937 = vpop.f32.mrb[0].mxu0
        %v2938 = vadd.f32 %v2826, %v2937
        %v2939 = vpop.f32.mrb[0].mxu0
        %2940 = vdwg.mxu0
        %v2941 = vmul.f32 %v2911, 0.5
        %v2942 = vmul.f32 %v2914, 0.5
        %v2943 = vmul.f32 %v2919, 0.5
        %v2944 = vmul.f32 %v2922, 0.5
        %v2945 = vmul.f32 %v2927, 0.5
        %v2946 = vmul.f32 %v2930, 0.5
        %v2947 = vmul.f32 %v2935, 0.5
        %v2948 = vmul.f32 %v2938, 0.5
        %v2949 = vmul.f32 %v2911, 0.70710677
        %v2950 = vmul.f32 %v2914, 0.70710677
        %v2951 = vmul.f32 %v2919, 0.70710677
        %v2952 = vmul.f32 %v2922, 0.70710677
        %v2953 = vmul.f32 %v2927, 0.70710677
        %v2954 = vmul.f32 %v2930, 0.70710677
        %v2955 = vmul.f32 %v2935, 0.70710677
        %v2956 = vmul.f32 %v2938, 0.70710677
        %v2957 = vand.u32 2147483647, %v2949
        %v2958 = vand.u32 2147483647, %v2950
        %v2959 = vand.u32 2147483647, %v2951
        %v2960 = vand.u32 2147483647, %v2952
        %v2961 = vand.u32 2147483647, %v2953
        %v2962 = vand.u32 2147483647, %v2954
        %v2963 = vand.u32 2147483647, %v2955
        %v2964 = vand.u32 2147483647, %v2956
        %v2965 = vmul.f32 %v2957, 0.3275911
        %v2966 = vmul.f32 %v2958, 0.3275911
        %v2967 = vmul.f32 %v2959, 0.3275911
        %v2968 = vmul.f32 %v2960, 0.3275911
        %v2969 = vmul.f32 %v2961, 0.3275911
        %v2970 = vmul.f32 %v2962, 0.3275911
        %v2971 = vmul.f32 %v2963, 0.3275911
        %v2972 = vmul.f32 %v2964, 0.3275911
        %v2973 = vadd.f32 %v2965, 1.0
        %v2974 = vadd.f32 %v2966, 1.0
        %v2975 = vadd.f32 %v2967, 1.0
        %v2976 = vadd.f32 %v2968, 1.0
        %v2977 = vadd.f32 %v2969, 1.0
        %v2978 = vadd.f32 %v2970, 1.0
        %v2979 = vadd.f32 %v2971, 1.0
        %v2980 = vadd.f32 %v2972, 1.0
        %v2981 = vrcp.pop %v2973
        %v2982 = vmul.f32 1.0, %v2981
        %v2983 = vrcp.pop %v2974
        %v2984 = vmul.f32 1.0, %v2983
        %v2985 = vrcp.pop %v2975
        %v2986 = vmul.f32 1.0, %v2985
        %v2987 = vrcp.pop %v2976
        %v2988 = vmul.f32 1.0, %v2987
        %v2989 = vrcp.pop %v2977
        %v2990 = vmul.f32 1.0, %v2989
        %v2991 = vrcp.pop %v2978
        %v2992 = vmul.f32 1.0, %v2991
        %v2993 = vrcp.pop %v2979
        %v2994 = vmul.f32 1.0, %v2993
        %v2995 = vrcp.pop %v2980
        %v2996 = vmul.f32 1.0, %v2995
        %v2997 = vmul.f32 %v2982, 1.0614054
        %v2998 = vmul.f32 %v2984, 1.0614054
        %v2999 = vmul.f32 %v2986, 1.0614054
        %v3000 = vmul.f32 %v2988, 1.0614054
        %v3001 = vmul.f32 %v2990, 1.0614054
        %v3002 = vmul.f32 %v2992, 1.0614054
        %v3003 = vmul.f32 %v2994, 1.0614054
        %v3004 = vmul.f32 %v2996, 1.0614054
        %v3005 = vadd.f32 %v2997, -1.4531521
        %v3006 = vadd.f32 %v2998, -1.4531521
        %v3007 = vadd.f32 %v2999, -1.4531521
        %v3008 = vadd.f32 %v3000, -1.4531521
        %v3009 = vadd.f32 %v3001, -1.4531521
        %v3010 = vadd.f32 %v3002, -1.4531521
        %v3011 = vadd.f32 %v3003, -1.4531521
        %v3012 = vadd.f32 %v3004, -1.4531521
        %v3013 = vmul.f32 %v3005, %v2982
        %v3014 = vmul.f32 %v3006, %v2984
        %v3015 = vmul.f32 %v3007, %v2986
        %v3016 = vmul.f32 %v3008, %v2988
        %v3017 = vmul.f32 %v3009, %v2990
        %v3018 = vmul.f32 %v3010, %v2992
        %v3019 = vmul.f32 %v3011, %v2994
        %v3020 = vmul.f32 %v3012, %v2996
        %v3021 = vadd.f32 %v3013, 1.4214138
        %v3022 = vadd.f32 %v3014, 1.4214138
        %v3023 = vadd.f32 %v3015, 1.4214138
        %v3024 = vadd.f32 %v3016, 1.4214138
        %v3025 = vadd.f32 %v3017, 1.4214138
        %v3026 = vadd.f32 %v3018, 1.4214138
        %v3027 = vadd.f32 %v3019, 1.4214138
        %v3028 = vadd.f32 %v3020, 1.4214138
        %v3029 = vmul.f32 %v3021, %v2982
        %v3030 = vmul.f32 %v3022, %v2984
        %v3031 = vmul.f32 %v3023, %v2986
        %v3032 = vmul.f32 %v3024, %v2988
        %v3033 = vmul.f32 %v3025, %v2990
        %v3034 = vmul.f32 %v3026, %v2992
        %v3035 = vmul.f32 %v3027, %v2994
        %v3036 = vmul.f32 %v3028, %v2996
        %v3037 = vadd.f32 %v3029, -0.28449672
        %v3038 = vadd.f32 %v3030, -0.28449672
        %v3039 = vadd.f32 %v3031, -0.28449672
        %v3040 = vadd.f32 %v3032, -0.28449672
        %v3041 = vadd.f32 %v3033, -0.28449672
        %v3042 = vadd.f32 %v3034, -0.28449672
        %v3043 = vadd.f32 %v3035, -0.28449672
        %v3044 = vadd.f32 %v3036, -0.28449672
        %v3045 = vmul.f32 %v3037, %v2982
        %v3046 = vmul.f32 %v3038, %v2984
        %v3047 = vmul.f32 %v3039, %v2986
        %v3048 = vmul.f32 %v3040, %v2988
        %v3049 = vmul.f32 %v3041, %v2990
        %v3050 = vmul.f32 %v3042, %v2992
        %v3051 = vmul.f32 %v3043, %v2994
        %v3052 = vmul.f32 %v3044, %v2996
        %v3053 = vadd.f32 %v3045, 0.2548296
        %v3054 = vadd.f32 %v3046, 0.2548296
        %v3055 = vadd.f32 %v3047, 0.2548296
        %v3056 = vadd.f32 %v3048, 0.2548296
        %v3057 = vadd.f32 %v3049, 0.2548296
        %v3058 = vadd.f32 %v3050, 0.2548296
        %v3059 = vadd.f32 %v3051, 0.2548296
        %v3060 = vadd.f32 %v3052, 0.2548296
        %v3061 = vmul.f32 %v3053, %v2982
        %v3062 = vmul.f32 %v3054, %v2984
        %v3063 = vmul.f32 %v3055, %v2986
        %v3064 = vmul.f32 %v3056, %v2988
        %v3065 = vmul.f32 %v3057, %v2990
        %v3066 = vmul.f32 %v3058, %v2992
        %v3067 = vmul.f32 %v3059, %v2994
        %v3068 = vmul.f32 %v3060, %v2996
        %v3069 = vsub.f32 0.0, %v2957
        %v3070 = vsub.f32 0.0, %v2958
        %v3071 = vsub.f32 0.0, %v2959
        %v3072 = vsub.f32 0.0, %v2960
        %v3073 = vsub.f32 0.0, %v2961
        %v3074 = vsub.f32 0.0, %v2962
        %v3075 = vsub.f32 0.0, %v2963
        %v3076 = vsub.f32 0.0, %v2964
        %v3077 = vmul.f32 %v3069, %v2957
        %v3078 = vmul.f32 %v3070, %v2958
        %v3079 = vmul.f32 %v3071, %v2959
        %v3080 = vmul.f32 %v3072, %v2960
        %v3081 = vmul.f32 %v3073, %v2961
        %v3082 = vmul.f32 %v3074, %v2962
        %v3083 = vmul.f32 %v3075, %v2963
        %v3084 = vmul.f32 %v3076, %v2964
        %v3085 = vmul.f32 %v3077, 1.442695
        %v3086 = vpow.pop %v3085
        %v3087 = vmul.f32 %v3078, 1.442695
        %v3088 = vpow.pop %v3087
        %v3089 = vmul.f32 %v3079, 1.442695
        %v3090 = vpow.pop %v3089
        %v3091 = vmul.f32 %v3080, 1.442695
        %v3092 = vpow.pop %v3091
        %v3093 = vmul.f32 %v3081, 1.442695
        %v3094 = vpow.pop %v3093
        %v3095 = vmul.f32 %v3082, 1.442695
        %v3096 = vpow.pop %v3095
        %v3097 = vmul.f32 %v3083, 1.442695
        %v3098 = vpow.pop %v3097
        %v3099 = vmul.f32 %v3084, 1.442695
        %v3100 = vpow.pop %v3099
        %v3101 = vmul.f32 %v3061, %v3086
        %v3102 = vmul.f32 %v3062, %v3088
        %v3103 = vmul.f32 %v3063, %v3090
        %v3104 = vmul.f32 %v3064, %v3092
        %v3105 = vmul.f32 %v3065, %v3094
        %v3106 = vmul.f32 %v3066, %v3096
        %v3107 = vmul.f32 %v3067, %v3098
        %v3108 = vmul.f32 %v3068, %v3100
        %v3109 = vsub.f32 1.0, %v3101
        %v3110 = vsub.f32 1.0, %v3102
        %v3111 = vsub.f32 1.0, %v3103
        %v3112 = vsub.f32 1.0, %v3104
        %v3113 = vsub.f32 1.0, %v3105
        %v3114 = vsub.f32 1.0, %v3106
        %v3115 = vsub.f32 1.0, %v3107
        %v3116 = vsub.f32 1.0, %v3108
        %vm3117 = vcmp.lt.f32.partialorder %v2949, 0.0
        %vm3118 = vcmp.lt.f32.partialorder %v2950, 0.0
        %vm3119 = vcmp.lt.f32.partialorder %v2951, 0.0
        %vm3120 = vcmp.lt.f32.partialorder %v2952, 0.0
        %vm3121 = vcmp.lt.f32.partialorder %v2953, 0.0
        %vm3122 = vcmp.lt.f32.partialorder %v2954, 0.0
        %vm3123 = vcmp.lt.f32.partialorder %v2955, 0.0
        %vm3124 = vcmp.lt.f32.partialorder %v2956, 0.0
        %v3125 = vsub.f32 0.0, %v3109
        %v3126 = vsub.f32 0.0, %v3110
        %v3127 = vsub.f32 0.0, %v3111
        %v3128 = vsub.f32 0.0, %v3112
        %v3129 = vsub.f32 0.0, %v3113
        %v3130 = vsub.f32 0.0, %v3114
        %v3131 = vsub.f32 0.0, %v3115
        %v3132 = vsub.f32 0.0, %v3116
        %v3133 = vsel %vm3117, %v3125, %v3109
        %v3134 = vsel %vm3118, %v3126, %v3110
        %v3135 = vsel %vm3119, %v3127, %v3111
        %v3136 = vsel %vm3120, %v3128, %v3112
        %v3137 = vsel %vm3121, %v3129, %v3113
        %v3138 = vsel %vm3122, %v3130, %v3114
        %v3139 = vsel %vm3123, %v3131, %v3115
        %v3140 = vsel %vm3124, %v3132, %v3116
        %v3141 = vadd.f32 %v3133, 1.0
        %v3142 = vadd.f32 %v3134, 1.0
        %v3143 = vadd.f32 %v3135, 1.0
        %v3144 = vadd.f32 %v3136, 1.0
        %v3145 = vadd.f32 %v3137, 1.0
        %v3146 = vadd.f32 %v3138, 1.0
        %v3147 = vadd.f32 %v3139, 1.0
        %v3148 = vadd.f32 %v3140, 1.0
        %v3149 = vmul.f32 %v2941, %v3141
        %v3150 = vmul.f32 %v2942, %v3142
        %v3151 = vmul.f32 %v2943, %v3143
        %v3152 = vmul.f32 %v2944, %v3144
        %v3153 = vmul.f32 %v2945, %v3145
        %v3154 = vmul.f32 %v2946, %v3146
        %v3155 = vmul.f32 %v2947, %v3147
        %v3156 = vmul.f32 %v2948, %v3148
        %v3157 = vmul.f32 %v3149, %v3149
        %v3158 = vmul.f32 %v3150, %v3150
        %v3159 = vmul.f32 %v3151, %v3151
        %v3160 = vmul.f32 %v3152, %v3152
        %v3161 = vmul.f32 %v3153, %v3153
        %v3162 = vmul.f32 %v3154, %v3154
        %v3163 = vmul.f32 %v3155, %v3155
        %v3164 = vmul.f32 %v3156, %v3156
        %v3165 = vadd.f32 %v3157, %v3158
        %v3166 = vadd.f32 %v3165, %v3159
        %v3167 = vadd.f32 %v3166, %v3160
        %v3168 = vadd.f32 %v3167, %v3161
        %v3169 = vadd.f32 %v3168, %v3162
        %v3170 = vadd.f32 %v3169, %v3163
        %v3171 = vadd.f32 %v3170, %v3164
        %v3172 = vrot.slane %v3171, 4
        %v3173 = vadd.f32 %v3171, %v3172
        %v3174 = vrot.slane %v3173, 2
        %v3175 = vadd.f32 %v3173, %v3174
        %v3176 = vrot.slane %v3175, 1
        %v3177 = vadd.f32 %v3175, %v3176
        %v3178 = vadd.f32 %v3177, 0.0
        %v3179 = vpack.c.bf16 %v3150, %v3149
        %v3180 = vpack.c.bf16 %v3152, %v3151
        %v3181 = vpack.c.bf16 %v3154, %v3153
        %v3182 = vpack.c.bf16 %v3156, %v3155
        %3183 = vst [vmem:[#allocation4] sm:$0xff] %v3179
        %3184 = vst [vmem:[#allocation4 + $0x8] sm:$0xff] %v3180
        %3185 = vst [vmem:[#allocation4 + $0x10] sm:$0xff] %v3181
        %3186 = vst [vmem:[#allocation4 + $0x18] sm:$0xff] %v3182
        %s3187 = scalar_lea.vmem [#allocation3], 64
        %v3188 = vld [vmem:[%s3187] sm:$0xff]
        %v3189 = vld [vmem:[%s3187 + $0x8] sm:$0xff]
        %v3190 = vld [vmem:[%s3187 + $0x10] sm:$0xff]
        %v3191 = vld [vmem:[%s3187 + $0x18] sm:$0xff]
        %v3192 = vld [vmem:[%s3187 + $0x20] sm:$0xff]
        %v3193 = vld [vmem:[%s3187 + $0x28] sm:$0xff]
        %v3194 = vld [vmem:[%s3187 + $0x30] sm:$0xff]
        %v3195 = vld [vmem:[%s3187 + $0x38] sm:$0xff]
        %v3196 = vpack.c.bf16 %v3189, %v3188
        %v3197 = vpack.c.bf16 %v3191, %v3190
        %v3198 = vpack.c.bf16 %v3193, %v3192
        %v3199 = vpack.c.bf16 %v3195, %v3194
        %3200 = vmatprep.subr.bf16.mxu0 0
        %3201 = vmatpush1.bf16.msra.mxu0 %v2860
        %3202 = vmatprep.subr.bf16.mxu0 0
        %3203 = vmatpush1.bf16.msra.mxu0 %v2861
        %3204 = vmatprep.subr.bf16.mxu0 0
        %3205 = vmatpush1.bf16.msra.mxu0 %v2862
        %3206 = vmatprep.subr.bf16.mxu0 0
        %3207 = vmatpush1.bf16.msra.mxu0 %v2863
        %3208 = vmatprep.subr.bf16.mxu0 0
        %3209 = vmatpush1.bf16.msra.mxu0 %v2864
        %3210 = vmatprep.subr.bf16.mxu0 0
        %3211 = vmatpush1.bf16.msra.mxu0 %v2865
        %3212 = vmatprep.subr.bf16.mxu0 0
        %3213 = vmatpush1.bf16.msra.mxu0 %v2866
        %3214 = vmatprep.subr.bf16.mxu0 0
        %3215 = vmatpush1.bf16.msra.mxu0 %v2867
        %3216 = vmatprep.subr.bf16.mxu0 0
        %3217 = vmatpush1.bf16.msra.mxu0 0
        %3218 = vmatprep.subr.bf16.mxu0 0
        %3219 = vmatpush1.bf16.msra.mxu0 0
        %3220 = vmatprep.subr.bf16.mxu0 0
        %3221 = vmatpush1.bf16.msra.mxu0 0
        %3222 = vmatprep.subr.bf16.mxu0 0
        %3223 = vmatpush1.bf16.msra.mxu0 0
        %3224 = vmatprep.subr.bf16.mxu0 0
        %3225 = vmatpush1.bf16.msra.mxu0 0
        %3226 = vmatprep.subr.bf16.mxu0 0
        %3227 = vmatpush1.bf16.msra.mxu0 0
        %3228 = vmatprep.subr.bf16.mxu0 0
        %3229 = vmatpush1.bf16.msra.mxu0 0
        %3230 = vmatprep.subr.bf16.mxu0 0
        %3231 = vmatpush1.bf16.msra.mxu0 0
        %3232 = vmatprep.mubr.bf16.mxu0 0
        %3233 = vmatmul.mubr.bf16.gmra.mrb[0].mxu0 %v3196
        %v3234 = vpop.f32.mrb[0].mxu0
        %v3235 = vadd.f32 %v2826, %v3234
        %v3236 = vpop.f32.mrb[0].mxu0
        %v3237 = vpop.f32.mrb[0].mxu0
        %v3238 = vadd.f32 %v2826, %v3237
        %v3239 = vpop.f32.mrb[0].mxu0
        %3240 = vmatprep.mubr.bf16.mxu0 0
        %3241 = vmatmul.mubr.bf16.gmra.mrb[0].mxu0 %v3197
        %v3242 = vpop.f32.mrb[0].mxu0
        %v3243 = vadd.f32 %v2826, %v3242
        %v3244 = vpop.f32.mrb[0].mxu0
        %v3245 = vpop.f32.mrb[0].mxu0
        %v3246 = vadd.f32 %v2826, %v3245
        %v3247 = vpop.f32.mrb[0].mxu0
        %3248 = vmatprep.mubr.bf16.mxu0 0
        %3249 = vmatmul.mubr.bf16.gmra.mrb[0].mxu0 %v3198
        %v3250 = vpop.f32.mrb[0].mxu0
        %v3251 = vadd.f32 %v2826, %v3250
        %v3252 = vpop.f32.mrb[0].mxu0
        %v3253 = vpop.f32.mrb[0].mxu0
        %v3254 = vadd.f32 %v2826, %v3253
        %v3255 = vpop.f32.mrb[0].mxu0
        %3256 = vmatprep.mubr.bf16.mxu0 0
        %3257 = vmatmul.mubr.bf16.gmra.mrb[0].mxu0 %v3199
        %v3258 = vpop.f32.mrb[0].mxu0
        %v3259 = vadd.f32 %v2826, %v3258
        %v3260 = vpop.f32.mrb[0].mxu0
        %v3261 = vpop.f32.mrb[0].mxu0
        %v3262 = vadd.f32 %v2826, %v3261
        %v3263 = vpop.f32.mrb[0].mxu0
        %3264 = vdwg.mxu0
        %v3265 = vmul.f32 %v3235, 0.5
        %v3266 = vmul.f32 %v3238, 0.5
        %v3267 = vmul.f32 %v3243, 0.5
        %v3268 = vmul.f32 %v3246, 0.5
        %v3269 = vmul.f32 %v3251, 0.5
        %v3270 = vmul.f32 %v3254, 0.5
        %v3271 = vmul.f32 %v3259, 0.5
        %v3272 = vmul.f32 %v3262, 0.5
        %v3273 = vmul.f32 %v3235, 0.70710677
        %v3274 = vmul.f32 %v3238, 0.70710677
        %v3275 = vmul.f32 %v3243, 0.70710677
        %v3276 = vmul.f32 %v3246, 0.70710677
        %v3277 = vmul.f32 %v3251, 0.70710677
        %v3278 = vmul.f32 %v3254, 0.70710677
        %v3279 = vmul.f32 %v3259, 0.70710677
        %v3280 = vmul.f32 %v3262, 0.70710677
        %v3281 = vand.u32 2147483647, %v3273
        %v3282 = vand.u32 2147483647, %v3274
        %v3283 = vand.u32 2147483647, %v3275
        %v3284 = vand.u32 2147483647, %v3276
        %v3285 = vand.u32 2147483647, %v3277
        %v3286 = vand.u32 2147483647, %v3278
        %v3287 = vand.u32 2147483647, %v3279
        %v3288 = vand.u32 2147483647, %v3280
        %v3289 = vmul.f32 %v3281, 0.3275911
        %v3290 = vmul.f32 %v3282, 0.3275911
        %v3291 = vmul.f32 %v3283, 0.3275911
        %v3292 = vmul.f32 %v3284, 0.3275911
        %v3293 = vmul.f32 %v3285, 0.3275911
        %v3294 = vmul.f32 %v3286, 0.3275911
        %v3295 = vmul.f32 %v3287, 0.3275911
        %v3296 = vmul.f32 %v3288, 0.3275911
        %v3297 = vadd.f32 %v3289, 1.0
        %v3298 = vadd.f32 %v3290, 1.0
        %v3299 = vadd.f32 %v3291, 1.0
        %v3300 = vadd.f32 %v3292, 1.0
        %v3301 = vadd.f32 %v3293, 1.0
        %v3302 = vadd.f32 %v3294, 1.0
        %v3303 = vadd.f32 %v3295, 1.0
        %v3304 = vadd.f32 %v3296, 1.0
        %v3305 = vrcp.pop %v3297
        %v3306 = vmul.f32 1.0, %v3305
        %v3307 = vrcp.pop %v3298
        %v3308 = vmul.f32 1.0, %v3307
        %v3309 = vrcp.pop %v3299
        %v3310 = vmul.f32 1.0, %v3309
        %v3311 = vrcp.pop %v3300
        %v3312 = vmul.f32 1.0, %v3311
        %v3313 = vrcp.pop %v3301
        %v3314 = vmul.f32 1.0, %v3313
        %v3315 = vrcp.pop %v3302
        %v3316 = vmul.f32 1.0, %v3315
        %v3317 = vrcp.pop %v3303
        %v3318 = vmul.f32 1.0, %v3317
        %v3319 = vrcp.pop %v3304
        %v3320 = vmul.f32 1.0, %v3319
        %v3321 = vmul.f32 %v3306, 1.0614054
        %v3322 = vmul.f32 %v3308, 1.0614054
        %v3323 = vmul.f32 %v3310, 1.0614054
        %v3324 = vmul.f32 %v3312, 1.0614054
        %v3325 = vmul.f32 %v3314, 1.0614054
        %v3326 = vmul.f32 %v3316, 1.0614054
        %v3327 = vmul.f32 %v3318, 1.0614054
        %v3328 = vmul.f32 %v3320, 1.0614054
        %v3329 = vadd.f32 %v3321, -1.4531521
        %v3330 = vadd.f32 %v3322, -1.4531521
        %v3331 = vadd.f32 %v3323, -1.4531521
        %v3332 = vadd.f32 %v3324, -1.4531521
        %v3333 = vadd.f32 %v3325, -1.4531521
        %v3334 = vadd.f32 %v3326, -1.4531521
        %v3335 = vadd.f32 %v3327, -1.4531521
        %v3336 = vadd.f32 %v3328, -1.4531521
        %v3337 = vmul.f32 %v3329, %v3306
        %v3338 = vmul.f32 %v3330, %v3308
        %v3339 = vmul.f32 %v3331, %v3310
        %v3340 = vmul.f32 %v3332, %v3312
        %v3341 = vmul.f32 %v3333, %v3314
        %v3342 = vmul.f32 %v3334, %v3316
        %v3343 = vmul.f32 %v3335, %v3318
        %v3344 = vmul.f32 %v3336, %v3320
        %v3345 = vadd.f32 %v3337, 1.4214138
        %v3346 = vadd.f32 %v3338, 1.4214138
        %v3347 = vadd.f32 %v3339, 1.4214138
        %v3348 = vadd.f32 %v3340, 1.4214138
        %v3349 = vadd.f32 %v3341, 1.4214138
        %v3350 = vadd.f32 %v3342, 1.4214138
        %v3351 = vadd.f32 %v3343, 1.4214138
        %v3352 = vadd.f32 %v3344, 1.4214138
        %v3353 = vmul.f32 %v3345, %v3306
        %v3354 = vmul.f32 %v3346, %v3308
        %v3355 = vmul.f32 %v3347, %v3310
        %v3356 = vmul.f32 %v3348, %v3312
        %v3357 = vmul.f32 %v3349, %v3314
        %v3358 = vmul.f32 %v3350, %v3316
        %v3359 = vmul.f32 %v3351, %v3318
        %v3360 = vmul.f32 %v3352, %v3320
        %v3361 = vadd.f32 %v3353, -0.28449672
        %v3362 = vadd.f32 %v3354, -0.28449672
        %v3363 = vadd.f32 %v3355, -0.28449672
        %v3364 = vadd.f32 %v3356, -0.28449672
        %v3365 = vadd.f32 %v3357, -0.28449672
        %v3366 = vadd.f32 %v3358, -0.28449672
        %v3367 = vadd.f32 %v3359, -0.28449672
        %v3368 = vadd.f32 %v3360, -0.28449672
        %v3369 = vmul.f32 %v3361, %v3306
        %v3370 = vmul.f32 %v3362, %v3308
        %v3371 = vmul.f32 %v3363, %v3310
        %v3372 = vmul.f32 %v3364, %v3312
        %v3373 = vmul.f32 %v3365, %v3314
        %v3374 = vmul.f32 %v3366, %v3316
        %v3375 = vmul.f32 %v3367, %v3318
        %v3376 = vmul.f32 %v3368, %v3320
        %v3377 = vadd.f32 %v3369, 0.2548296
        %v3378 = vadd.f32 %v3370, 0.2548296
        %v3379 = vadd.f32 %v3371, 0.2548296
        %v3380 = vadd.f32 %v3372, 0.2548296
        %v3381 = vadd.f32 %v3373, 0.2548296
        %v3382 = vadd.f32 %v3374, 0.2548296
        %v3383 = vadd.f32 %v3375, 0.2548296
        %v3384 = vadd.f32 %v3376, 0.2548296
        %v3385 = vmul.f32 %v3377, %v3306
        %v3386 = vmul.f32 %v3378, %v3308
        %v3387 = vmul.f32 %v3379, %v3310
        %v3388 = vmul.f32 %v3380, %v3312
        %v3389 = vmul.f32 %v3381, %v3314
        %v3390 = vmul.f32 %v3382, %v3316
        %v3391 = vmul.f32 %v3383, %v3318
        %v3392 = vmul.f32 %v3384, %v3320
        %v3393 = vsub.f32 0.0, %v3281
        %v3394 = vsub.f32 0.0, %v3282
        %v3395 = vsub.f32 0.0, %v3283
        %v3396 = vsub.f32 0.0, %v3284
        %v3397 = vsub.f32 0.0, %v3285
        %v3398 = vsub.f32 0.0, %v3286
        %v3399 = vsub.f32 0.0, %v3287
        %v3400 = vsub.f32 0.0, %v3288
        %v3401 = vmul.f32 %v3393, %v3281
        %v3402 = vmul.f32 %v3394, %v3282
        %v3403 = vmul.f32 %v3395, %v3283
        %v3404 = vmul.f32 %v3396, %v3284
        %v3405 = vmul.f32 %v3397, %v3285
        %v3406 = vmul.f32 %v3398, %v3286
        %v3407 = vmul.f32 %v3399, %v3287
        %v3408 = vmul.f32 %v3400, %v3288
        %v3409 = vmul.f32 %v3401, 1.442695
        %v3410 = vpow.pop %v3409
        %v3411 = vmul.f32 %v3402, 1.442695
        %v3412 = vpow.pop %v3411
        %v3413 = vmul.f32 %v3403, 1.442695
        %v3414 = vpow.pop %v3413
        %v3415 = vmul.f32 %v3404, 1.442695
        %v3416 = vpow.pop %v3415
        %v3417 = vmul.f32 %v3405, 1.442695
        %v3418 = vpow.pop %v3417
        %v3419 = vmul.f32 %v3406, 1.442695
        %v3420 = vpow.pop %v3419
        %v3421 = vmul.f32 %v3407, 1.442695
        %v3422 = vpow.pop %v3421
        %v3423 = vmul.f32 %v3408, 1.442695
        %v3424 = vpow.pop %v3423
        %v3425 = vmul.f32 %v3385, %v3410
        %v3426 = vmul.f32 %v3386, %v3412
        %v3427 = vmul.f32 %v3387, %v3414
        %v3428 = vmul.f32 %v3388, %v3416
        %v3429 = vmul.f32 %v3389, %v3418
        %v3430 = vmul.f32 %v3390, %v3420
        %v3431 = vmul.f32 %v3391, %v3422
        %v3432 = vmul.f32 %v3392, %v3424
        %v3433 = vsub.f32 1.0, %v3425
        %v3434 = vsub.f32 1.0, %v3426
        %v3435 = vsub.f32 1.0, %v3427
        %v3436 = vsub.f32 1.0, %v3428
        %v3437 = vsub.f32 1.0, %v3429
        %v3438 = vsub.f32 1.0, %v3430
        %v3439 = vsub.f32 1.0, %v3431
        %v3440 = vsub.f32 1.0, %v3432
        %vm3441 = vcmp.lt.f32.partialorder %v3273, 0.0
        %vm3442 = vcmp.lt.f32.partialorder %v3274, 0.0
        %vm3443 = vcmp.lt.f32.partialorder %v3275, 0.0
        %vm3444 = vcmp.lt.f32.partialorder %v3276, 0.0
        %vm3445 = vcmp.lt.f32.partialorder %v3277, 0.0
        %vm3446 = vcmp.lt.f32.partialorder %v3278, 0.0
        %vm3447 = vcmp.lt.f32.partialorder %v3279, 0.0
        %vm3448 = vcmp.lt.f32.partialorder %v3280, 0.0
        %v3449 = vsub.f32 0.0, %v3433
        %v3450 = vsub.f32 0.0, %v3434
        %v3451 = vsub.f32 0.0, %v3435
        %v3452 = vsub.f32 0.0, %v3436
        %v3453 = vsub.f32 0.0, %v3437
        %v3454 = vsub.f32 0.0, %v3438
        %v3455 = vsub.f32 0.0, %v3439
        %v3456 = vsub.f32 0.0, %v3440
        %v3457 = vsel %vm3441, %v3449, %v3433
        %v3458 = vsel %vm3442, %v3450, %v3434
        %v3459 = vsel %vm3443, %v3451, %v3435
        %v3460 = vsel %vm3444, %v3452, %v3436
        %v3461 = vsel %vm3445, %v3453, %v3437
        %v3462 = vsel %vm3446, %v3454, %v3438
        %v3463 = vsel %vm3447, %v3455, %v3439
        %v3464 = vsel %vm3448, %v3456, %v3440
        %v3465 = vadd.f32 %v3457, 1.0
        %v3466 = vadd.f32 %v3458, 1.0
        %v3467 = vadd.f32 %v3459, 1.0
        %v3468 = vadd.f32 %v3460, 1.0
        %v3469 = vadd.f32 %v3461, 1.0
        %v3470 = vadd.f32 %v3462, 1.0
        %v3471 = vadd.f32 %v3463, 1.0
        %v3472 = vadd.f32 %v3464, 1.0
        %v3473 = vmul.f32 %v3265, %v3465
        %v3474 = vmul.f32 %v3266, %v3466
        %v3475 = vmul.f32 %v3267, %v3467
        %v3476 = vmul.f32 %v3268, %v3468
        %v3477 = vmul.f32 %v3269, %v3469
        %v3478 = vmul.f32 %v3270, %v3470
        %v3479 = vmul.f32 %v3271, %v3471
        %v3480 = vmul.f32 %v3272, %v3472
        %v3481 = vmul.f32 %v3473, %v3473
        %v3482 = vmul.f32 %v3474, %v3474
        %v3483 = vmul.f32 %v3475, %v3475
        %v3484 = vmul.f32 %v3476, %v3476
        %v3485 = vmul.f32 %v3477, %v3477
        %v3486 = vmul.f32 %v3478, %v3478
        %v3487 = vmul.f32 %v3479, %v3479
        %v3488 = vmul.f32 %v3480, %v3480
        %v3489 = vadd.f32 %v3481, %v3482
        %v3490 = vadd.f32 %v3489, %v3483
        %v3491 = vadd.f32 %v3490, %v3484
        %v3492 = vadd.f32 %v3491, %v3485
        %v3493 = vadd.f32 %v3492, %v3486
        %v3494 = vadd.f32 %v3493, %v3487
        %v3495 = vadd.f32 %v3494, %v3488
        %v3496 = vrot.slane %v3495, 4
        %v3497 = vadd.f32 %v3495, %v3496
        %v3498 = vrot.slane %v3497, 2
        %v3499 = vadd.f32 %v3497, %v3498
        %v3500 = vrot.slane %v3499, 1
        %v3501 = vadd.f32 %v3499, %v3500
        %v3502 = vadd.f32 %v3178, %v3501
        %v3503 = vpack.c.bf16 %v3474, %v3473
        %v3504 = vpack.c.bf16 %v3476, %v3475
        %v3505 = vpack.c.bf16 %v3478, %v3477
        %v3506 = vpack.c.bf16 %v3480, %v3479
        %s3507 = scalar_lea.vmem [#allocation4], 32
        %3508 = vst [vmem:[%s3507] sm:$0xff] %v3503
        %3509 = vst [vmem:[%s3507 + $0x8] sm:$0xff] %v3504
        %3510 = vst [vmem:[%s3507 + $0x10] sm:$0xff] %v3505
        %3511 = vst [vmem:[%s3507 + $0x18] sm:$0xff] %v3506
        %s3512 = scalar_lea.vmem [#allocation3], 128
        %v3513 = vld [vmem:[%s3512] sm:$0xff]
        %v3514 = vld [vmem:[%s3512 + $0x8] sm:$0xff]
        %v3515 = vld [vmem:[%s3512 + $0x10] sm:$0xff]
        %v3516 = vld [vmem:[%s3512 + $0x18] sm:$0xff]
        %v3517 = vld [vmem:[%s3512 + $0x20] sm:$0xff]
        %v3518 = vld [vmem:[%s3512 + $0x28] sm:$0xff]
        %v3519 = vld [vmem:[%s3512 + $0x30] sm:$0xff]
        %v3520 = vld [vmem:[%s3512 + $0x38] sm:$0xff]
        %v3521 = vpack.c.bf16 %v3514, %v3513
        %v3522 = vpack.c.bf16 %v3516, %v3515
        %v3523 = vpack.c.bf16 %v3518, %v3517
        %v3524 = vpack.c.bf16 %v3520, %v3519
        %3525 = vmatprep.subr.bf16.mxu0 0
        %3526 = vmatpush1.bf16.msra.mxu0 %v2860
        %3527 = vmatprep.subr.bf16.mxu0 0
        %3528 = vmatpush1.bf16.msra.mxu0 %v2861
        %3529 = vmatprep.subr.bf16.mxu0 0
        %3530 = vmatpush1.bf16.msra.mxu0 %v2862
        %3531 = vmatprep.subr.bf16.mxu0 0
        %3532 = vmatpush1.bf16.msra.mxu0 %v2863
        %3533 = vmatprep.subr.bf16.mxu0 0
        %3534 = vmatpush1.bf16.msra.mxu0 %v2864
        %3535 = vmatprep.subr.bf16.mxu0 0
        %3536 = vmatpush1.bf16.msra.mxu0 %v2865
        %3537 = vmatprep.subr.bf16.mxu0 0
        %3538 = vmatpush1.bf16.msra.mxu0 %v2866
        %3539 = vmatprep.subr.bf16.mxu0 0
        %3540 = vmatpush1.bf16.msra.mxu0 %v2867
        %3541 = vmatprep.subr.bf16.mxu0 0
        %3542 = vmatpush1.bf16.msra.mxu0 0
        %3543 = vmatprep.subr.bf16.mxu0 0
        %3544 = vmatpush1.bf16.msra.mxu0 0
        %3545 = vmatprep.subr.bf16.mxu0 0
        %3546 = vmatpush1.bf16.msra.mxu0 0
        %3547 = vmatprep.subr.bf16.mxu0 0
        %3548 = vmatpush1.bf16.msra.mxu0 0
        %3549 = vmatprep.subr.bf16.mxu0 0
        %3550 = vmatpush1.bf16.msra.mxu0 0
        %3551 = vmatprep.subr.bf16.mxu0 0
        %3552 = vmatpush1.bf16.msra.mxu0 0
        %3553 = vmatprep.subr.bf16.mxu0 0
        %3554 = vmatpush1.bf16.msra.mxu0 0
        %3555 = vmatprep.subr.bf16.mxu0 0
        %3556 = vmatpush1.bf16.msra.mxu0 0
        %3557 = vmatprep.mubr.bf16.mxu0 0
        %3558 = vmatmul.mubr.bf16.gmra.mrb[0].mxu0 %v3521
        %v3559 = vpop.f32.mrb[0].mxu0
        %v3560 = vadd.f32 %v2826, %v3559
        %v3561 = vpop.f32.mrb[0].mxu0
        %v3562 = vpop.f32.mrb[0].mxu0
        %v3563 = vadd.f32 %v2826, %v3562
        %v3564 = vpop.f32.mrb[0].mxu0
        %3565 = vmatprep.mubr.bf16.mxu0 0
        %3566 = vmatmul.mubr.bf16.gmra.mrb[0].mxu0 %v3522
        %v3567 = vpop.f32.mrb[0].mxu0
        %v3568 = vadd.f32 %v2826, %v3567
        %v3569 = vpop.f32.mrb[0].mxu0
        %v3570 = vpop.f32.mrb[0].mxu0
        %v3571 = vadd.f32 %v2826, %v3570
        %v3572 = vpop.f32.mrb[0].mxu0
        %3573 = vmatprep.mubr.bf16.mxu0 0
        %3574 = vmatmul.mubr.bf16.gmra.mrb[0].mxu0 %v3523
        %v3575 = vpop.f32.mrb[0].mxu0
        %v3576 = vadd.f32 %v2826, %v3575
        %v3577 = vpop.f32.mrb[0].mxu0
        %v3578 = vpop.f32.mrb[0].mxu0
        %v3579 = vadd.f32 %v2826, %v3578
        %v3580 = vpop.f32.mrb[0].mxu0
        %3581 = vmatprep.mubr.bf16.mxu0 0
        %3582 = vmatmul.mubr.bf16.gmra.mrb[0].mxu0 %v3524
        %v3583 = vpop.f32.mrb[0].mxu0
        %v3584 = vadd.f32 %v2826, %v3583
        %v3585 = vpop.f32.mrb[0].mxu0
        %v3586 = vpop.f32.mrb[0].mxu0
        %v3587 = vadd.f32 %v2826, %v3586
        %v3588 = vpop.f32.mrb[0].mxu0
        %3589 = vdwg.mxu0
        %v3590 = vmul.f32 %v3560, 0.5
        %v3591 = vmul.f32 %v3563, 0.5
        %v3592 = vmul.f32 %v3568, 0.5
        %v3593 = vmul.f32 %v3571, 0.5
        %v3594 = vmul.f32 %v3576, 0.5
        %v3595 = vmul.f32 %v3579, 0.5
        %v3596 = vmul.f32 %v3584, 0.5
        %v3597 = vmul.f32 %v3587, 0.5
        %v3598 = vmul.f32 %v3560, 0.70710677
        %v3599 = vmul.f32 %v3563, 0.70710677
        %v3600 = vmul.f32 %v3568, 0.70710677
        %v3601 = vmul.f32 %v3571, 0.70710677
        %v3602 = vmul.f32 %v3576, 0.70710677
        %v3603 = vmul.f32 %v3579, 0.70710677
        %v3604 = vmul.f32 %v3584, 0.70710677
        %v3605 = vmul.f32 %v3587, 0.70710677
        %v3606 = vand.u32 2147483647, %v3598
        %v3607 = vand.u32 2147483647, %v3599
        %v3608 = vand.u32 2147483647, %v3600
        %v3609 = vand.u32 2147483647, %v3601
        %v3610 = vand.u32 2147483647, %v3602
        %v3611 = vand.u32 2147483647, %v3603
        %v3612 = vand.u32 2147483647, %v3604
        %v3613 = vand.u32 2147483647, %v3605
        %v3614 = vmul.f32 %v3606, 0.3275911
        %v3615 = vmul.f32 %v3607, 0.3275911
        %v3616 = vmul.f32 %v3608, 0.3275911
        %v3617 = vmul.f32 %v3609, 0.3275911
        %v3618 = vmul.f32 %v3610, 0.3275911
        %v3619 = vmul.f32 %v3611, 0.3275911
        %v3620 = vmul.f32 %v3612, 0.3275911
        %v3621 = vmul.f32 %v3613, 0.3275911
        %v3622 = vadd.f32 %v3614, 1.0
        %v3623 = vadd.f32 %v3615, 1.0
        %v3624 = vadd.f32 %v3616, 1.0
        %v3625 = vadd.f32 %v3617, 1.0
        %v3626 = vadd.f32 %v3618, 1.0
        %v3627 = vadd.f32 %v3619, 1.0
        %v3628 = vadd.f32 %v3620, 1.0
        %v3629 = vadd.f32 %v3621, 1.0
        %v3630 = vrcp.pop %v3622
        %v3631 = vmul.f32 1.0, %v3630
        %v3632 = vrcp.pop %v3623
        %v3633 = vmul.f32 1.0, %v3632
        %v3634 = vrcp.pop %v3624
        %v3635 = vmul.f32 1.0, %v3634
        %v3636 = vrcp.pop %v3625
        %v3637 = vmul.f32 1.0, %v3636
        %v3638 = vrcp.pop %v3626
        %v3639 = vmul.f32 1.0, %v3638
        %v3640 = vrcp.pop %v3627
        %v3641 = vmul.f32 1.0, %v3640
        %v3642 = vrcp.pop %v3628
        %v3643 = vmul.f32 1.0, %v3642
        %v3644 = vrcp.pop %v3629
        %v3645 = vmul.f32 1.0, %v3644
        %v3646 = vmul.f32 %v3631, 1.0614054
        %v3647 = vmul.f32 %v3633, 1.0614054
        %v3648 = vmul.f32 %v3635, 1.0614054
        %v3649 = vmul.f32 %v3637, 1.0614054
        %v3650 = vmul.f32 %v3639, 1.0614054
        %v3651 = vmul.f32 %v3641, 1.0614054
        %v3652 = vmul.f32 %v3643, 1.0614054
        %v3653 = vmul.f32 %v3645, 1.0614054
        %v3654 = vadd.f32 %v3646, -1.4531521
        %v3655 = vadd.f32 %v3647, -1.4531521
        %v3656 = vadd.f32 %v3648, -1.4531521
        %v3657 = vadd.f32 %v3649, -1.4531521
        %v3658 = vadd.f32 %v3650, -1.4531521
        %v3659 = vadd.f32 %v3651, -1.4531521
        %v3660 = vadd.f32 %v3652, -1.4531521
        %v3661 = vadd.f32 %v3653, -1.4531521
        %v3662 = vmul.f32 %v3654, %v3631
        %v3663 = vmul.f32 %v3655, %v3633
        %v3664 = vmul.f32 %v3656, %v3635
        %v3665 = vmul.f32 %v3657, %v3637
        %v3666 = vmul.f32 %v3658, %v3639
        %v3667 = vmul.f32 %v3659, %v3641
        %v3668 = vmul.f32 %v3660, %v3643
        %v3669 = vmul.f32 %v3661, %v3645
        %v3670 = vadd.f32 %v3662, 1.4214138
        %v3671 = vadd.f32 %v3663, 1.4214138
        %v3672 = vadd.f32 %v3664, 1.4214138
        %v3673 = vadd.f32 %v3665, 1.4214138
        %v3674 = vadd.f32 %v3666, 1.4214138
        %v3675 = vadd.f32 %v3667, 1.4214138
        %v3676 = vadd.f32 %v3668, 1.4214138
        %v3677 = vadd.f32 %v3669, 1.4214138
        %v3678 = vmul.f32 %v3670, %v3631
        %v3679 = vmul.f32 %v3671, %v3633
        %v3680 = vmul.f32 %v3672, %v3635
        %v3681 = vmul.f32 %v3673, %v3637
        %v3682 = vmul.f32 %v3674, %v3639
        %v3683 = vmul.f32 %v3675, %v3641
        %v3684 = vmul.f32 %v3676, %v3643
        %v3685 = vmul.f32 %v3677, %v3645
        %v3686 = vadd.f32 %v3678, -0.28449672
        %v3687 = vadd.f32 %v3679, -0.28449672
        %v3688 = vadd.f32 %v3680, -0.28449672
        %v3689 = vadd.f32 %v3681, -0.28449672
        %v3690 = vadd.f32 %v3682, -0.28449672
        %v3691 = vadd.f32 %v3683, -0.28449672
        %v3692 = vadd.f32 %v3684, -0.28449672
        %v3693 = vadd.f32 %v3685, -0.28449672
        %v3694 = vmul.f32 %v3686, %v3631
        %v3695 = vmul.f32 %v3687, %v3633
        %v3696 = vmul.f32 %v3688, %v3635
        %v3697 = vmul.f32 %v3689, %v3637
        %v3698 = vmul.f32 %v3690, %v3639
        %v3699 = vmul.f32 %v3691, %v3641
        %v3700 = vmul.f32 %v3692, %v3643
        %v3701 = vmul.f32 %v3693, %v3645
        %v3702 = vadd.f32 %v3694, 0.2548296
        %v3703 = vadd.f32 %v3695, 0.2548296
        %v3704 = vadd.f32 %v3696, 0.2548296
        %v3705 = vadd.f32 %v3697, 0.2548296
        %v3706 = vadd.f32 %v3698, 0.2548296
        %v3707 = vadd.f32 %v3699, 0.2548296
        %v3708 = vadd.f32 %v3700, 0.2548296
        %v3709 = vadd.f32 %v3701, 0.2548296
        %v3710 = vmul.f32 %v3702, %v3631
        %v3711 = vmul.f32 %v3703, %v3633
        %v3712 = vmul.f32 %v3704, %v3635
        %v3713 = vmul.f32 %v3705, %v3637
        %v3714 = vmul.f32 %v3706, %v3639
        %v3715 = vmul.f32 %v3707, %v3641
        %v3716 = vmul.f32 %v3708, %v3643
        %v3717 = vmul.f32 %v3709, %v3645
        %v3718 = vsub.f32 0.0, %v3606
        %v3719 = vsub.f32 0.0, %v3607
        %v3720 = vsub.f32 0.0, %v3608
        %v3721 = vsub.f32 0.0, %v3609
        %v3722 = vsub.f32 0.0, %v3610
        %v3723 = vsub.f32 0.0, %v3611
        %v3724 = vsub.f32 0.0, %v3612
        %v3725 = vsub.f32 0.0, %v3613
        %v3726 = vmul.f32 %v3718, %v3606
        %v3727 = vmul.f32 %v3719, %v3607
        %v3728 = vmul.f32 %v3720, %v3608
        %v3729 = vmul.f32 %v3721, %v3609
        %v3730 = vmul.f32 %v3722, %v3610
        %v3731 = vmul.f32 %v3723, %v3611
        %v3732 = vmul.f32 %v3724, %v3612
        %v3733 = vmul.f32 %v3725, %v3613
        %v3734 = vmul.f32 %v3726, 1.442695
        %v3735 = vpow.pop %v3734
        %v3736 = vmul.f32 %v3727, 1.442695
        %v3737 = vpow.pop %v3736
        %v3738 = vmul.f32 %v3728, 1.442695
        %v3739 = vpow.pop %v3738
        %v3740 = vmul.f32 %v3729, 1.442695
        %v3741 = vpow.pop %v3740
        %v3742 = vmul.f32 %v3730, 1.442695
        %v3743 = vpow.pop %v3742
        %v3744 = vmul.f32 %v3731, 1.442695
        %v3745 = vpow.pop %v3744
        %v3746 = vmul.f32 %v3732, 1.442695
        %v3747 = vpow.pop %v3746
        %v3748 = vmul.f32 %v3733, 1.442695
        %v3749 = vpow.pop %v3748
        %v3750 = vmul.f32 %v3710, %v3735
        %v3751 = vmul.f32 %v3711, %v3737
        %v3752 = vmul.f32 %v3712, %v3739
        %v3753 = vmul.f32 %v3713, %v3741
        %v3754 = vmul.f32 %v3714, %v3743
        %v3755 = vmul.f32 %v3715, %v3745
        %v3756 = vmul.f32 %v3716, %v3747
        %v3757 = vmul.f32 %v3717, %v3749
        %v3758 = vsub.f32 1.0, %v3750
        %v3759 = vsub.f32 1.0, %v3751
        %v3760 = vsub.f32 1.0, %v3752
        %v3761 = vsub.f32 1.0, %v3753
        %v3762 = vsub.f32 1.0, %v3754
        %v3763 = vsub.f32 1.0, %v3755
        %v3764 = vsub.f32 1.0, %v3756
        %v3765 = vsub.f32 1.0, %v3757
        %vm3766 = vcmp.lt.f32.partialorder %v3598, 0.0
        %vm3767 = vcmp.lt.f32.partialorder %v3599, 0.0
        %vm3768 = vcmp.lt.f32.partialorder %v3600, 0.0
        %vm3769 = vcmp.lt.f32.partialorder %v3601, 0.0
        %vm3770 = vcmp.lt.f32.partialorder %v3602, 0.0
        %vm3771 = vcmp.lt.f32.partialorder %v3603, 0.0
        %vm3772 = vcmp.lt.f32.partialorder %v3604, 0.0
        %vm3773 = vcmp.lt.f32.partialorder %v3605, 0.0
        %v3774 = vsub.f32 0.0, %v3758
        %v3775 = vsub.f32 0.0, %v3759
        %v3776 = vsub.f32 0.0, %v3760
        %v3777 = vsub.f32 0.0, %v3761
        %v3778 = vsub.f32 0.0, %v3762
        %v3779 = vsub.f32 0.0, %v3763
        %v3780 = vsub.f32 0.0, %v3764
        %v3781 = vsub.f32 0.0, %v3765
        %v3782 = vsel %vm3766, %v3774, %v3758
        %v3783 = vsel %vm3767, %v3775, %v3759
        %v3784 = vsel %vm3768, %v3776, %v3760
        %v3785 = vsel %vm3769, %v3777, %v3761
        %v3786 = vsel %vm3770, %v3778, %v3762
        %v3787 = vsel %vm3771, %v3779, %v3763
        %v3788 = vsel %vm3772, %v3780, %v3764
        %v3789 = vsel %vm3773, %v3781, %v3765
        %v3790 = vadd.f32 %v3782, 1.0
        %v3791 = vadd.f32 %v3783, 1.0
        %v3792 = vadd.f32 %v3784, 1.0
        %v3793 = vadd.f32 %v3785, 1.0
        %v3794 = vadd.f32 %v3786, 1.0
        %v3795 = vadd.f32 %v3787, 1.0
        %v3796 = vadd.f32 %v3788, 1.0
        %v3797 = vadd.f32 %v3789, 1.0
        %v3798 = vmul.f32 %v3590, %v3790
        %v3799 = vmul.f32 %v3591, %v3791
        %v3800 = vmul.f32 %v3592, %v3792
        %v3801 = vmul.f32 %v3593, %v3793
        %v3802 = vmul.f32 %v3594, %v3794
        %v3803 = vmul.f32 %v3595, %v3795
        %v3804 = vmul.f32 %v3596, %v3796
        %v3805 = vmul.f32 %v3597, %v3797
        %v3806 = vmul.f32 %v3798, %v3798
        %v3807 = vmul.f32 %v3799, %v3799
        %v3808 = vmul.f32 %v3800, %v3800
        %v3809 = vmul.f32 %v3801, %v3801
        %v3810 = vmul.f32 %v3802, %v3802
        %v3811 = vmul.f32 %v3803, %v3803
        %v3812 = vmul.f32 %v3804, %v3804
        %v3813 = vmul.f32 %v3805, %v3805
        %v3814 = vadd.f32 %v3806, %v3807
        %v3815 = vadd.f32 %v3814, %v3808
        %v3816 = vadd.f32 %v3815, %v3809
        %v3817 = vadd.f32 %v3816, %v3810
        %v3818 = vadd.f32 %v3817, %v3811
        %v3819 = vadd.f32 %v3818, %v3812
        %v3820 = vadd.f32 %v3819, %v3813
        %v3821 = vrot.slane %v3820, 4
        %v3822 = vadd.f32 %v3820, %v3821
        %v3823 = vrot.slane %v3822, 2
        %v3824 = vadd.f32 %v3822, %v3823
        %v3825 = vrot.slane %v3824, 1
        %v3826 = vadd.f32 %v3824, %v3825
        %v3827 = vadd.f32 %v3502, %v3826
        %v3828 = vpack.c.bf16 %v3799, %v3798
        %v3829 = vpack.c.bf16 %v3801, %v3800
        %v3830 = vpack.c.bf16 %v3803, %v3802
        %v3831 = vpack.c.bf16 %v3805, %v3804
        %s3832 = scalar_lea.vmem [#allocation4], 64
        %3833 = vst [vmem:[%s3832] sm:$0xff] %v3828
        %3834 = vst [vmem:[%s3832 + $0x8] sm:$0xff] %v3829
        %3835 = vst [vmem:[%s3832 + $0x10] sm:$0xff] %v3830
        %3836 = vst [vmem:[%s3832 + $0x18] sm:$0xff] %v3831
        %s3837 = scalar_lea.vmem [#allocation3], 192
        %v3838 = vld [vmem:[%s3837] sm:$0xff]
        %v3839 = vld [vmem:[%s3837 + $0x8] sm:$0xff]
        %v3840 = vld [vmem:[%s3837 + $0x10] sm:$0xff]
        %v3841 = vld [vmem:[%s3837 + $0x18] sm:$0xff]
        %v3842 = vld [vmem:[%s3837 + $0x20] sm:$0xff]
        %v3843 = vld [vmem:[%s3837 + $0x28] sm:$0xff]
        %v3844 = vld [vmem:[%s3837 + $0x30] sm:$0xff]
        %v3845 = vld [vmem:[%s3837 + $0x38] sm:$0xff]
        %v3846 = vpack.c.bf16 %v3839, %v3838
        %v3847 = vpack.c.bf16 %v3841, %v3840
        %v3848 = vpack.c.bf16 %v3843, %v3842
        %v3849 = vpack.c.bf16 %v3845, %v3844
        %3850 = vmatprep.subr.bf16.mxu0 0
        %3851 = vmatpush1.bf16.msra.mxu0 %v2860
        %3852 = vmatprep.subr.bf16.mxu0 0
        %3853 = vmatpush1.bf16.msra.mxu0 %v2861
        %3854 = vmatprep.subr.bf16.mxu0 0
        %3855 = vmatpush1.bf16.msra.mxu0 %v2862
        %3856 = vmatprep.subr.bf16.mxu0 0
        %3857 = vmatpush1.bf16.msra.mxu0 %v2863
        %3858 = vmatprep.subr.bf16.mxu0 0
        %3859 = vmatpush1.bf16.msra.mxu0 %v2864
        %3860 = vmatprep.subr.bf16.mxu0 0
        %3861 = vmatpush1.bf16.msra.mxu0 %v2865
        %3862 = vmatprep.subr.bf16.mxu0 0
        %3863 = vmatpush1.bf16.msra.mxu0 %v2866
        %3864 = vmatprep.subr.bf16.mxu0 0
        %3865 = vmatpush1.bf16.msra.mxu0 %v2867
        %3866 = vmatprep.subr.bf16.mxu0 0
        %3867 = vmatpush1.bf16.msra.mxu0 0
        %3868 = vmatprep.subr.bf16.mxu0 0
        %3869 = vmatpush1.bf16.msra.mxu0 0
        %3870 = vmatprep.subr.bf16.mxu0 0
        %3871 = vmatpush1.bf16.msra.mxu0 0
        %3872 = vmatprep.subr.bf16.mxu0 0
        %3873 = vmatpush1.bf16.msra.mxu0 0
        %3874 = vmatprep.subr.bf16.mxu0 0
        %3875 = vmatpush1.bf16.msra.mxu0 0
        %3876 = vmatprep.subr.bf16.mxu0 0
        %3877 = vmatpush1.bf16.msra.mxu0 0
        %3878 = vmatprep.subr.bf16.mxu0 0
        %3879 = vmatpush1.bf16.msra.mxu0 0
        %3880 = vmatprep.subr.bf16.mxu0 0
        %3881 = vmatpush1.bf16.msra.mxu0 0
        %3882 = vmatprep.mubr.bf16.mxu0 0
        %3883 = vmatmul.mubr.bf16.gmra.mrb[0].mxu0 %v3846
        %v3884 = vpop.f32.mrb[0].mxu0
        %v3885 = vadd.f32 %v2826, %v3884
        %v3886 = vpop.f32.mrb[0].mxu0
        %v3887 = vpop.f32.mrb[0].mxu0
        %v3888 = vadd.f32 %v2826, %v3887
        %v3889 = vpop.f32.mrb[0].mxu0
        %3890 = vmatprep.mubr.bf16.mxu0 0
        %3891 = vmatmul.mubr.bf16.gmra.mrb[0].mxu0 %v3847
        %v3892 = vpop.f32.mrb[0].mxu0
        %v3893 = vadd.f32 %v2826, %v3892
        %v3894 = vpop.f32.mrb[0].mxu0
        %v3895 = vpop.f32.mrb[0].mxu0
        %v3896 = vadd.f32 %v2826, %v3895
        %v3897 = vpop.f32.mrb[0].mxu0
        %3898 = vmatprep.mubr.bf16.mxu0 0
        %3899 = vmatmul.mubr.bf16.gmra.mrb[0].mxu0 %v3848
        %v3900 = vpop.f32.mrb[0].mxu0
        %v3901 = vadd.f32 %v2826, %v3900
        %v3902 = vpop.f32.mrb[0].mxu0
        %v3903 = vpop.f32.mrb[0].mxu0
        %v3904 = vadd.f32 %v2826, %v3903
        %v3905 = vpop.f32.mrb[0].mxu0
        %3906 = vmatprep.mubr.bf16.mxu0 0
        %3907 = vmatmul.mubr.bf16.gmra.mrb[0].mxu0 %v3849
        %v3908 = vpop.f32.mrb[0].mxu0
        %v3909 = vadd.f32 %v2826, %v3908
        %v3910 = vpop.f32.mrb[0].mxu0
        %v3911 = vpop.f32.mrb[0].mxu0
        %v3912 = vadd.f32 %v2826, %v3911
        %v3913 = vpop.f32.mrb[0].mxu0
        %3914 = vdwg.mxu0
        %v3915 = vmul.f32 %v3885, 0.5
        %v3916 = vmul.f32 %v3888, 0.5
        %v3917 = vmul.f32 %v3893, 0.5
        %v3918 = vmul.f32 %v3896, 0.5
        %v3919 = vmul.f32 %v3901, 0.5
        %v3920 = vmul.f32 %v3904, 0.5
        %v3921 = vmul.f32 %v3909, 0.5
        %v3922 = vmul.f32 %v3912, 0.5
        %v3923 = vmul.f32 %v3885, 0.70710677
        %v3924 = vmul.f32 %v3888, 0.70710677
        %v3925 = vmul.f32 %v3893, 0.70710677
        %v3926 = vmul.f32 %v3896, 0.70710677
        %v3927 = vmul.f32 %v3901, 0.70710677
        %v3928 = vmul.f32 %v3904, 0.70710677
        %v3929 = vmul.f32 %v3909, 0.70710677
        %v3930 = vmul.f32 %v3912, 0.70710677
        %v3931 = vand.u32 2147483647, %v3923
        %v3932 = vand.u32 2147483647, %v3924
        %v3933 = vand.u32 2147483647, %v3925
        %v3934 = vand.u32 2147483647, %v3926
        %v3935 = vand.u32 2147483647, %v3927
        %v3936 = vand.u32 2147483647, %v3928
        %v3937 = vand.u32 2147483647, %v3929
        %v3938 = vand.u32 2147483647, %v3930
        %v3939 = vmul.f32 %v3931, 0.3275911
        %v3940 = vmul.f32 %v3932, 0.3275911
        %v3941 = vmul.f32 %v3933, 0.3275911
        %v3942 = vmul.f32 %v3934, 0.3275911
        %v3943 = vmul.f32 %v3935, 0.3275911
        %v3944 = vmul.f32 %v3936, 0.3275911
        %v3945 = vmul.f32 %v3937, 0.3275911
        %v3946 = vmul.f32 %v3938, 0.3275911
        %v3947 = vadd.f32 %v3939, 1.0
        %v3948 = vadd.f32 %v3940, 1.0
        %v3949 = vadd.f32 %v3941, 1.0
        %v3950 = vadd.f32 %v3942, 1.0
        %v3951 = vadd.f32 %v3943, 1.0
        %v3952 = vadd.f32 %v3944, 1.0
        %v3953 = vadd.f32 %v3945, 1.0
        %v3954 = vadd.f32 %v3946, 1.0
        %v3955 = vrcp.pop %v3947
        %v3956 = vmul.f32 1.0, %v3955
        %v3957 = vrcp.pop %v3948
        %v3958 = vmul.f32 1.0, %v3957
        %v3959 = vrcp.pop %v3949
        %v3960 = vmul.f32 1.0, %v3959
        %v3961 = vrcp.pop %v3950
        %v3962 = vmul.f32 1.0, %v3961
        %v3963 = vrcp.pop %v3951
        %v3964 = vmul.f32 1.0, %v3963
        %v3965 = vrcp.pop %v3952
        %v3966 = vmul.f32 1.0, %v3965
        %v3967 = vrcp.pop %v3953
        %v3968 = vmul.f32 1.0, %v3967
        %v3969 = vrcp.pop %v3954
        %v3970 = vmul.f32 1.0, %v3969
        %v3971 = vmul.f32 %v3956, 1.0614054
        %v3972 = vmul.f32 %v3958, 1.0614054
        %v3973 = vmul.f32 %v3960, 1.0614054
        %v3974 = vmul.f32 %v3962, 1.0614054
        %v3975 = vmul.f32 %v3964, 1.0614054
        %v3976 = vmul.f32 %v3966, 1.0614054
        %v3977 = vmul.f32 %v3968, 1.0614054
        %v3978 = vmul.f32 %v3970, 1.0614054
        %v3979 = vadd.f32 %v3971, -1.4531521
        %v3980 = vadd.f32 %v3972, -1.4531521
        %v3981 = vadd.f32 %v3973, -1.4531521
        %v3982 = vadd.f32 %v3974, -1.4531521
        %v3983 = vadd.f32 %v3975, -1.4531521
        %v3984 = vadd.f32 %v3976, -1.4531521
        %v3985 = vadd.f32 %v3977, -1.4531521
        %v3986 = vadd.f32 %v3978, -1.4531521
        %v3987 = vmul.f32 %v3979, %v3956
        %v3988 = vmul.f32 %v3980, %v3958
        %v3989 = vmul.f32 %v3981, %v3960
        %v3990 = vmul.f32 %v3982, %v3962
        %v3991 = vmul.f32 %v3983, %v3964
        %v3992 = vmul.f32 %v3984, %v3966
        %v3993 = vmul.f32 %v3985, %v3968
        %v3994 = vmul.f32 %v3986, %v3970
        %v3995 = vadd.f32 %v3987, 1.4214138
        %v3996 = vadd.f32 %v3988, 1.4214138
        %v3997 = vadd.f32 %v3989, 1.4214138
        %v3998 = vadd.f32 %v3990, 1.4214138
        %v3999 = vadd.f32 %v3991, 1.4214138
        %v4000 = vadd.f32 %v3992, 1.4214138
        %v4001 = vadd.f32 %v3993, 1.4214138
        %v4002 = vadd.f32 %v3994, 1.4214138
        %v4003 = vmul.f32 %v3995, %v3956
        %v4004 = vmul.f32 %v3996, %v3958
        %v4005 = vmul.f32 %v3997, %v3960
        %v4006 = vmul.f32 %v3998, %v3962
        %v4007 = vmul.f32 %v3999, %v3964
        %v4008 = vmul.f32 %v4000, %v3966
        %v4009 = vmul.f32 %v4001, %v3968
        %v4010 = vmul.f32 %v4002, %v3970
        %v4011 = vadd.f32 %v4003, -0.28449672
        %v4012 = vadd.f32 %v4004, -0.28449672
        %v4013 = vadd.f32 %v4005, -0.28449672
        %v4014 = vadd.f32 %v4006, -0.28449672
        %v4015 = vadd.f32 %v4007, -0.28449672
        %v4016 = vadd.f32 %v4008, -0.28449672
        %v4017 = vadd.f32 %v4009, -0.28449672
        %v4018 = vadd.f32 %v4010, -0.28449672
        %v4019 = vmul.f32 %v4011, %v3956
        %v4020 = vmul.f32 %v4012, %v3958
        %v4021 = vmul.f32 %v4013, %v3960
        %v4022 = vmul.f32 %v4014, %v3962
        %v4023 = vmul.f32 %v4015, %v3964
        %v4024 = vmul.f32 %v4016, %v3966
        %v4025 = vmul.f32 %v4017, %v3968
        %v4026 = vmul.f32 %v4018, %v3970
        %v4027 = vadd.f32 %v4019, 0.2548296
        %v4028 = vadd.f32 %v4020, 0.2548296
        %v4029 = vadd.f32 %v4021, 0.2548296
        %v4030 = vadd.f32 %v4022, 0.2548296
        %v4031 = vadd.f32 %v4023, 0.2548296
        %v4032 = vadd.f32 %v4024, 0.2548296
        %v4033 = vadd.f32 %v4025, 0.2548296
        %v4034 = vadd.f32 %v4026, 0.2548296
        %v4035 = vmul.f32 %v4027, %v3956
        %v4036 = vmul.f32 %v4028, %v3958
        %v4037 = vmul.f32 %v4029, %v3960
        %v4038 = vmul.f32 %v4030, %v3962
        %v4039 = vmul.f32 %v4031, %v3964
        %v4040 = vmul.f32 %v4032, %v3966
        %v4041 = vmul.f32 %v4033, %v3968
        %v4042 = vmul.f32 %v4034, %v3970
        %v4043 = vsub.f32 0.0, %v3931
        %v4044 = vsub.f32 0.0, %v3932
        %v4045 = vsub.f32 0.0, %v3933
        %v4046 = vsub.f32 0.0, %v3934
        %v4047 = vsub.f32 0.0, %v3935
        %v4048 = vsub.f32 0.0, %v3936
        %v4049 = vsub.f32 0.0, %v3937
        %v4050 = vsub.f32 0.0, %v3938
        %v4051 = vmul.f32 %v4043, %v3931
        %v4052 = vmul.f32 %v4044, %v3932
        %v4053 = vmul.f32 %v4045, %v3933
        %v4054 = vmul.f32 %v4046, %v3934
        %v4055 = vmul.f32 %v4047, %v3935
        %v4056 = vmul.f32 %v4048, %v3936
        %v4057 = vmul.f32 %v4049, %v3937
        %v4058 = vmul.f32 %v4050, %v3938
        %v4059 = vmul.f32 %v4051, 1.442695
        %v4060 = vpow.pop %v4059
        %v4061 = vmul.f32 %v4052, 1.442695
        %v4062 = vpow.pop %v4061
        %v4063 = vmul.f32 %v4053, 1.442695
        %v4064 = vpow.pop %v4063
        %v4065 = vmul.f32 %v4054, 1.442695
        %v4066 = vpow.pop %v4065
        %v4067 = vmul.f32 %v4055, 1.442695
        %v4068 = vpow.pop %v4067
        %v4069 = vmul.f32 %v4056, 1.442695
        %v4070 = vpow.pop %v4069
        %v4071 = vmul.f32 %v4057, 1.442695
        %v4072 = vpow.pop %v4071
        %v4073 = vmul.f32 %v4058, 1.442695
        %v4074 = vpow.pop %v4073
        %v4075 = vmul.f32 %v4035, %v4060
        %v4076 = vmul.f32 %v4036, %v4062
        %v4077 = vmul.f32 %v4037, %v4064
        %v4078 = vmul.f32 %v4038, %v4066
        %v4079 = vmul.f32 %v4039, %v4068
        %v4080 = vmul.f32 %v4040, %v4070
        %v4081 = vmul.f32 %v4041, %v4072
        %v4082 = vmul.f32 %v4042, %v4074
        %v4083 = vsub.f32 1.0, %v4075
        %v4084 = vsub.f32 1.0, %v4076
        %v4085 = vsub.f32 1.0, %v4077
        %v4086 = vsub.f32 1.0, %v4078
        %v4087 = vsub.f32 1.0, %v4079
        %v4088 = vsub.f32 1.0, %v4080
        %v4089 = vsub.f32 1.0, %v4081
        %v4090 = vsub.f32 1.0, %v4082
        %vm4091 = vcmp.lt.f32.partialorder %v3923, 0.0
        %vm4092 = vcmp.lt.f32.partialorder %v3924, 0.0
        %vm4093 = vcmp.lt.f32.partialorder %v3925, 0.0
        %vm4094 = vcmp.lt.f32.partialorder %v3926, 0.0
        %vm4095 = vcmp.lt.f32.partialorder %v3927, 0.0
        %vm4096 = vcmp.lt.f32.partialorder %v3928, 0.0
        %vm4097 = vcmp.lt.f32.partialorder %v3929, 0.0
        %vm4098 = vcmp.lt.f32.partialorder %v3930, 0.0
        %v4099 = vsub.f32 0.0, %v4083
        %v4100 = vsub.f32 0.0, %v4084
        %v4101 = vsub.f32 0.0, %v4085
        %v4102 = vsub.f32 0.0, %v4086
        %v4103 = vsub.f32 0.0, %v4087
        %v4104 = vsub.f32 0.0, %v4088
        %v4105 = vsub.f32 0.0, %v4089
        %v4106 = vsub.f32 0.0, %v4090
        %v4107 = vsel %vm4091, %v4099, %v4083
        %v4108 = vsel %vm4092, %v4100, %v4084
        %v4109 = vsel %vm4093, %v4101, %v4085
        %v4110 = vsel %vm4094, %v4102, %v4086
        %v4111 = vsel %vm4095, %v4103, %v4087
        %v4112 = vsel %vm4096, %v4104, %v4088
        %v4113 = vsel %vm4097, %v4105, %v4089
        %v4114 = vsel %vm4098, %v4106, %v4090
        %v4115 = vadd.f32 %v4107, 1.0
        %v4116 = vadd.f32 %v4108, 1.0
        %v4117 = vadd.f32 %v4109, 1.0
        %v4118 = vadd.f32 %v4110, 1.0
        %v4119 = vadd.f32 %v4111, 1.0
        %v4120 = vadd.f32 %v4112, 1.0
        %v4121 = vadd.f32 %v4113, 1.0
        %v4122 = vadd.f32 %v4114, 1.0
        %v4123 = vmul.f32 %v3915, %v4115
        %v4124 = vmul.f32 %v3916, %v4116
        %v4125 = vmul.f32 %v3917, %v4117
        %v4126 = vmul.f32 %v3918, %v4118
        %v4127 = vmul.f32 %v3919, %v4119
        %v4128 = vmul.f32 %v3920, %v4120
        %v4129 = vmul.f32 %v3921, %v4121
        %v4130 = vmul.f32 %v3922, %v4122
        %v4131 = vmul.f32 %v4123, %v4123
        %v4132 = vmul.f32 %v4124, %v4124
        %v4133 = vmul.f32 %v4125, %v4125
        %v4134 = vmul.f32 %v4126, %v4126
        %v4135 = vmul.f32 %v4127, %v4127
        %v4136 = vmul.f32 %v4128, %v4128
        %v4137 = vmul.f32 %v4129, %v4129
        %v4138 = vmul.f32 %v4130, %v4130
        %v4139 = vadd.f32 %v4131, %v4132
        %v4140 = vadd.f32 %v4139, %v4133
        %v4141 = vadd.f32 %v4140, %v4134
        %v4142 = vadd.f32 %v4141, %v4135
        %v4143 = vadd.f32 %v4142, %v4136
        %v4144 = vadd.f32 %v4143, %v4137
        %v4145 = vadd.f32 %v4144, %v4138
        %v4146 = vrot.slane %v4145, 4
        %v4147 = vadd.f32 %v4145, %v4146
        %v4148 = vrot.slane %v4147, 2
        %v4149 = vadd.f32 %v4147, %v4148
        %v4150 = vrot.slane %v4149, 1
        %v4151 = vadd.f32 %v4149, %v4150
        %v4152 = vadd.f32 %v3827, %v4151
        %v4153 = vpack.c.bf16 %v4124, %v4123
        %v4154 = vpack.c.bf16 %v4126, %v4125
        %v4155 = vpack.c.bf16 %v4128, %v4127
        %v4156 = vpack.c.bf16 %v4130, %v4129
        %s4157 = scalar_lea.vmem [#allocation4], 96
        %4158 = vst [vmem:[%s4157] sm:$0xff] %v4153
        %4159 = vst [vmem:[%s4157 + $0x8] sm:$0xff] %v4154
        %4160 = vst [vmem:[%s4157 + $0x10] sm:$0xff] %v4155
        %4161 = vst [vmem:[%s4157 + $0x18] sm:$0xff] %v4156
        %v4162 = vrsqrt.pop %v4152
        %v4163 = vmul.f32 %v4152, %v4162
        %vm4164 = vcmp.eq.f32.partialorder %v4152, inf
        %v4165 = vsel %vm4164, %v4152, %v4163
        %vm4166 = vcmp.eq.f32.partialorder %v4152, 0.0
        %v4167 = vand.u32 %v4152, 2147483648
        %v4168 = vsel %vm4166, %v4167, %v4165
        %4169 = vadd.xlane.f32.xlu0 %v4168
        %v4170 = vpop.xlane.xlu0 %4169
        %v4171 = vmul.f32 %v4170, 0.03125
        %v4172 = vadd.f32 %v4171, 1e-06
        %v4173 = vrcp.pop %v4172
        %v4174 = vmul.f32 %v4168, %v4173
        %v4175 = vld [vmem:[%s7] sm:$0x1]
        %v4176 = vmul.f32 %v4175, %v4174
        %v4177 = vadd.f32 %v4176, 1.0
        %v4178 = vld [vmem:[%s8] sm:$0x1]
        %v4179 = vld [vmem:[#allocation11] sm:$0xf]
        %v4180 = vld [vmem:[#allocation11 + $0x4] sm:$0xf]
        %v4181 = vld [vmem:[#allocation11 + $0x8] sm:$0xf]
        %v4182 = vld [vmem:[#allocation11 + $0xc] sm:$0xf]
        %v4183 = vld [vmem:[#allocation11 + $0x10] sm:$0xf]
        %v4184 = vld [vmem:[#allocation11 + $0x14] sm:$0xf]
        %v4185 = vld [vmem:[#allocation11 + $0x18] sm:$0xf]
        %v4186 = vld [vmem:[#allocation11 + $0x1c] sm:$0xf]
        %v4187 = vld [vmem:[#allocation11 + $0x20] sm:$0xf]
        %v4188 = vld [vmem:[#allocation11 + $0x24] sm:$0xf]
        %v4189 = vld [vmem:[#allocation11 + $0x28] sm:$0xf]
        %v4190 = vld [vmem:[#allocation11 + $0x2c] sm:$0xf]
        %v4191 = vld [vmem:[#allocation11 + $0x30] sm:$0xf]
        %v4192 = vld [vmem:[#allocation11 + $0x34] sm:$0xf]
        %v4193 = vld [vmem:[#allocation11 + $0x38] sm:$0xf]
        %v4194 = vld [vmem:[#allocation11 + $0x3c] sm:$0xf]
        %v4195 = vld [vmem:[%s10] sm:$0x1]
        %v4196 = vld [vmem:[#allocation4] sm:$0xff]
        %v4197 = vld [vmem:[#allocation4 + $0x8] sm:$0xff]
        %v4198 = vld [vmem:[#allocation4 + $0x10] sm:$0xff]
        %v4199 = vld [vmem:[#allocation4 + $0x18] sm:$0xff]
        %v4200 = vunpack.c.l.bf16 %v4196
        %v4201 = vunpack.c.h.bf16 %v4196
        %v4202 = vunpack.c.l.bf16 %v4197
        %v4203 = vunpack.c.h.bf16 %v4197
        %v4204 = vunpack.c.l.bf16 %v4198
        %v4205 = vunpack.c.h.bf16 %v4198
        %v4206 = vunpack.c.l.bf16 %v4199
        %v4207 = vunpack.c.h.bf16 %v4199
        %v4209 = vlaneseq
        %v4210 = vshrl.u32 %v4209, 7
        %v4211 = vsub.s32 0, %v4210
        %v4212 = vrot.slane %v4177, %v4211
        %v4214 = vmul.f32 %v4200, %v4212
        %v4215 = vmul.f32 %v4201, %v4212
        %v4216 = vmul.f32 %v4202, %v4212
        %v4217 = vmul.f32 %v4203, %v4212
        %v4218 = vmul.f32 %v4204, %v4212
        %v4219 = vmul.f32 %v4205, %v4212
        %v4220 = vmul.f32 %v4206, %v4212
        %v4221 = vmul.f32 %v4207, %v4212
        %v4223 = vlaneseq
        %v4224 = vshrl.u32 %v4223, 7
        %v4225 = vsub.s32 0, %v4224
        %v4226 = vrot.slane %v4178, %v4225
        %v4228 = vadd.f32 %v4214, %v4226
        %v4229 = vadd.f32 %v4215, %v4226
        %v4230 = vadd.f32 %v4216, %v4226
        %v4231 = vadd.f32 %v4217, %v4226
        %v4232 = vadd.f32 %v4218, %v4226
        %v4233 = vadd.f32 %v4219, %v4226
        %v4234 = vadd.f32 %v4220, %v4226
        %v4235 = vadd.f32 %v4221, %v4226
        %v4236 = vpack.c.bf16 %v4229, %v4228
        %v4237 = vpack.c.bf16 %v4231, %v4230
        %v4238 = vpack.c.bf16 %v4233, %v4232
        %v4239 = vpack.c.bf16 %v4235, %v4234
        %v4241 = vlaneseq
        %v4242 = vshrl.u32 %v4241, 7
        %v4243 = vsub.s32 0, %v4242
        %v4244 = vrot.slane %v4195, %v4243
        %v4262 = vunpack.c.l.b16 %v4179
        %v4263 = vunpack.c.l.b16 %v4180
        %v4264 = vunpack.c.l.b16 %v4181
        %v4265 = vunpack.c.l.b16 %v4182
        %v4266 = vunpack.c.l.b16 %v4183
        %v4267 = vunpack.c.l.b16 %v4184
        %v4268 = vunpack.c.l.b16 %v4185
        %v4269 = vunpack.c.l.b16 %v4186
        %v4270 = vunpack.c.l.b16 %v4187
        %v4271 = vunpack.c.l.b16 %v4188
        %v4272 = vunpack.c.l.b16 %v4189
        %v4273 = vunpack.c.l.b16 %v4190
        %v4274 = vunpack.c.l.b16 %v4191
        %v4275 = vunpack.c.l.b16 %v4192
        %v4276 = vunpack.c.l.b16 %v4193
        %v4277 = vunpack.c.l.b16 %v4194
        %v4278 = vpack.c.b16 %v4263, %v4262
        %v4279 = vpack.c.b16 %v4265, %v4264
        %v4280 = vpack.c.b16 %v4267, %v4266
        %v4281 = vpack.c.b16 %v4269, %v4268
        %v4282 = vpack.c.b16 %v4271, %v4270
        %v4283 = vpack.c.b16 %v4273, %v4272
        %v4284 = vpack.c.b16 %v4275, %v4274
        %v4285 = vpack.c.b16 %v4277, %v4276
        %4294 = vmatprep.subr.bf16.mxu0 0
        %4295 = vmatpush1.bf16.msra.mxu0 %v4278
        %4296 = vmatprep.subr.bf16.mxu0 0
        %4297 = vmatpush1.bf16.msra.mxu0 %v4279
        %4298 = vmatprep.subr.bf16.mxu0 0
        %4299 = vmatpush1.bf16.msra.mxu0 %v4280
        %4300 = vmatprep.subr.bf16.mxu0 0
        %4301 = vmatpush1.bf16.msra.mxu0 %v4281
        %4302 = vmatprep.subr.bf16.mxu0 0
        %4303 = vmatpush1.bf16.msra.mxu0 %v4282
        %4304 = vmatprep.subr.bf16.mxu0 0
        %4305 = vmatpush1.bf16.msra.mxu0 %v4283
        %4306 = vmatprep.subr.bf16.mxu0 0
        %4307 = vmatpush1.bf16.msra.mxu0 %v4284
        %4308 = vmatprep.subr.bf16.mxu0 0
        %4309 = vmatpush1.bf16.msra.mxu0 %v4285
        %4310 = vmatprep.subr.bf16.mxu0 0
        %4311 = vmatpush1.bf16.msra.mxu0 0
        %4312 = vmatprep.subr.bf16.mxu0 0
        %4313 = vmatpush1.bf16.msra.mxu0 0
        %4314 = vmatprep.subr.bf16.mxu0 0
        %4315 = vmatpush1.bf16.msra.mxu0 0
        %4316 = vmatprep.subr.bf16.mxu0 0
        %4317 = vmatpush1.bf16.msra.mxu0 0
        %4318 = vmatprep.subr.bf16.mxu0 0
        %4319 = vmatpush1.bf16.msra.mxu0 0
        %4320 = vmatprep.subr.bf16.mxu0 0
        %4321 = vmatpush1.bf16.msra.mxu0 0
        %4322 = vmatprep.subr.bf16.mxu0 0
        %4323 = vmatpush1.bf16.msra.mxu0 0
        %4324 = vmatprep.subr.bf16.mxu0 0
        %4325 = vmatpush1.bf16.msra.mxu0 0
        %4326 = vmatprep.mubr.bf16.mxu0 0
        %4327 = vmatmul.mubr.bf16.gmra.mrb[0].mxu0 %v4236
        %v4328 = vpop.f32.mrb[0].mxu0
        %v4329 = vadd.f32 %v4244, %v4328
        %v4330 = vpop.f32.mrb[0].mxu0
        %v4331 = vpop.f32.mrb[0].mxu0
        %v4332 = vadd.f32 %v4244, %v4331
        %v4333 = vpop.f32.mrb[0].mxu0
        %4334 = vmatprep.mubr.bf16.mxu0 0
        %4335 = vmatmul.mubr.bf16.gmra.mrb[0].mxu0 %v4237
        %v4336 = vpop.f32.mrb[0].mxu0
        %v4337 = vadd.f32 %v4244, %v4336
        %v4338 = vpop.f32.mrb[0].mxu0
        %v4339 = vpop.f32.mrb[0].mxu0
        %v4340 = vadd.f32 %v4244, %v4339
        %v4341 = vpop.f32.mrb[0].mxu0
        %4342 = vmatprep.mubr.bf16.mxu0 0
        %4343 = vmatmul.mubr.bf16.gmra.mrb[0].mxu0 %v4238
        %v4344 = vpop.f32.mrb[0].mxu0
        %v4345 = vadd.f32 %v4244, %v4344
        %v4346 = vpop.f32.mrb[0].mxu0
        %v4347 = vpop.f32.mrb[0].mxu0
        %v4348 = vadd.f32 %v4244, %v4347
        %v4349 = vpop.f32.mrb[0].mxu0
        %4350 = vmatprep.mubr.bf16.mxu0 0
        %4351 = vmatmul.mubr.bf16.gmra.mrb[0].mxu0 %v4239
        %v4352 = vpop.f32.mrb[0].mxu0
        %v4353 = vadd.f32 %v4244, %v4352
        %v4354 = vpop.f32.mrb[0].mxu0
        %v4355 = vpop.f32.mrb[0].mxu0
        %v4356 = vadd.f32 %v4244, %v4355
        %v4357 = vpop.f32.mrb[0].mxu0
        %4358 = vdwg.mxu0
        %v4359 = vld [vmem:[%s398] sm:$0xff]
        %v4360 = vld [vmem:[%s398 + $0x8] sm:$0xff]
        %v4361 = vld [vmem:[%s398 + $0x10] sm:$0xff]
        %v4362 = vld [vmem:[%s398 + $0x18] sm:$0xff]
        %v4363 = vld [vmem:[%s398 + $0x20] sm:$0xff]
        %v4364 = vld [vmem:[%s398 + $0x28] sm:$0xff]
        %v4365 = vld [vmem:[%s398 + $0x30] sm:$0xff]
        %v4366 = vld [vmem:[%s398 + $0x38] sm:$0xff]
        %v4367 = vadd.f32 %v4329, %v4359
        %v4368 = vadd.f32 %v4332, %v4360
        %v4369 = vadd.f32 %v4337, %v4361
        %v4370 = vadd.f32 %v4340, %v4362
        %v4371 = vadd.f32 %v4345, %v4363
        %v4372 = vadd.f32 %v4348, %v4364
        %v4373 = vadd.f32 %v4353, %v4365
        %v4374 = vadd.f32 %v4356, %v4366
        %4375 = vst [vmem:[%s448] sm:$0xff] %v4367
        %4376 = vst [vmem:[%s448 + $0x8] sm:$0xff] %v4368
        %4377 = vst [vmem:[%s448 + $0x10] sm:$0xff] %v4369
        %4378 = vst [vmem:[%s448 + $0x18] sm:$0xff] %v4370
        %4379 = vst [vmem:[%s448 + $0x20] sm:$0xff] %v4371
        %4380 = vst [vmem:[%s448 + $0x28] sm:$0xff] %v4372
        %4381 = vst [vmem:[%s448 + $0x30] sm:$0xff] %v4373
        %4382 = vst [vmem:[%s448 + $0x38] sm:$0xff] %v4374
        %v4383 = vld [vmem:[%s3507] sm:$0xff]
        %v4384 = vld [vmem:[%s3507 + $0x8] sm:$0xff]
        %v4385 = vld [vmem:[%s3507 + $0x10] sm:$0xff]
        %v4386 = vld [vmem:[%s3507 + $0x18] sm:$0xff]
        %v4387 = vunpack.c.l.bf16 %v4383
        %v4388 = vunpack.c.h.bf16 %v4383
        %v4389 = vunpack.c.l.bf16 %v4384
        %v4390 = vunpack.c.h.bf16 %v4384
        %v4391 = vunpack.c.l.bf16 %v4385
        %v4392 = vunpack.c.h.bf16 %v4385
        %v4393 = vunpack.c.l.bf16 %v4386
        %v4394 = vunpack.c.h.bf16 %v4386
        %v4395 = vmul.f32 %v4387, %v4212
        %v4396 = vmul.f32 %v4388, %v4212
        %v4397 = vmul.f32 %v4389, %v4212
        %v4398 = vmul.f32 %v4390, %v4212
        %v4399 = vmul.f32 %v4391, %v4212
        %v4400 = vmul.f32 %v4392, %v4212
        %v4401 = vmul.f32 %v4393, %v4212
        %v4402 = vmul.f32 %v4394, %v4212
        %v4403 = vadd.f32 %v4395, %v4226
        %v4404 = vadd.f32 %v4396, %v4226
        %v4405 = vadd.f32 %v4397, %v4226
        %v4406 = vadd.f32 %v4398, %v4226
        %v4407 = vadd.f32 %v4399, %v4226
        %v4408 = vadd.f32 %v4400, %v4226
        %v4409 = vadd.f32 %v4401, %v4226
        %v4410 = vadd.f32 %v4402, %v4226
        %v4411 = vpack.c.bf16 %v4404, %v4403
        %v4412 = vpack.c.bf16 %v4406, %v4405
        %v4413 = vpack.c.bf16 %v4408, %v4407
        %v4414 = vpack.c.bf16 %v4410, %v4409
        %4415 = vmatprep.subr.bf16.mxu0 0
        %4416 = vmatpush1.bf16.msra.mxu0 %v4278
        %4417 = vmatprep.subr.bf16.mxu0 0
        %4418 = vmatpush1.bf16.msra.mxu0 %v4279
        %4419 = vmatprep.subr.bf16.mxu0 0
        %4420 = vmatpush1.bf16.msra.mxu0 %v4280
        %4421 = vmatprep.subr.bf16.mxu0 0
        %4422 = vmatpush1.bf16.msra.mxu0 %v4281
        %4423 = vmatprep.subr.bf16.mxu0 0
        %4424 = vmatpush1.bf16.msra.mxu0 %v4282
        %4425 = vmatprep.subr.bf16.mxu0 0
        %4426 = vmatpush1.bf16.msra.mxu0 %v4283
        %4427 = vmatprep.subr.bf16.mxu0 0
        %4428 = vmatpush1.bf16.msra.mxu0 %v4284
        %4429 = vmatprep.subr.bf16.mxu0 0
        %4430 = vmatpush1.bf16.msra.mxu0 %v4285
        %4431 = vmatprep.subr.bf16.mxu0 0
        %4432 = vmatpush1.bf16.msra.mxu0 0
        %4433 = vmatprep.subr.bf16.mxu0 0
        %4434 = vmatpush1.bf16.msra.mxu0 0
        %4435 = vmatprep.subr.bf16.mxu0 0
        %4436 = vmatpush1.bf16.msra.mxu0 0
        %4437 = vmatprep.subr.bf16.mxu0 0
        %4438 = vmatpush1.bf16.msra.mxu0 0
        %4439 = vmatprep.subr.bf16.mxu0 0
        %4440 = vmatpush1.bf16.msra.mxu0 0
        %4441 = vmatprep.subr.bf16.mxu0 0
        %4442 = vmatpush1.bf16.msra.mxu0 0
        %4443 = vmatprep.subr.bf16.mxu0 0
        %4444 = vmatpush1.bf16.msra.mxu0 0
        %4445 = vmatprep.subr.bf16.mxu0 0
        %4446 = vmatpush1.bf16.msra.mxu0 0
        %4447 = vmatprep.mubr.bf16.mxu0 0
        %4448 = vmatmul.mubr.bf16.gmra.mrb[0].mxu0 %v4411
        %v4449 = vpop.f32.mrb[0].mxu0
        %v4450 = vadd.f32 %v4244, %v4449
        %v4451 = vpop.f32.mrb[0].mxu0
        %v4452 = vpop.f32.mrb[0].mxu0
        %v4453 = vadd.f32 %v4244, %v4452
        %v4454 = vpop.f32.mrb[0].mxu0
        %4455 = vmatprep.mubr.bf16.mxu0 0
        %4456 = vmatmul.mubr.bf16.gmra.mrb[0].mxu0 %v4412
        %v4457 = vpop.f32.mrb[0].mxu0
        %v4458 = vadd.f32 %v4244, %v4457
        %v4459 = vpop.f32.mrb[0].mxu0
        %v4460 = vpop.f32.mrb[0].mxu0
        %v4461 = vadd.f32 %v4244, %v4460
        %v4462 = vpop.f32.mrb[0].mxu0
        %4463 = vmatprep.mubr.bf16.mxu0 0
        %4464 = vmatmul.mubr.bf16.gmra.mrb[0].mxu0 %v4413
        %v4465 = vpop.f32.mrb[0].mxu0
        %v4466 = vadd.f32 %v4244, %v4465
        %v4467 = vpop.f32.mrb[0].mxu0
        %v4468 = vpop.f32.mrb[0].mxu0
        %v4469 = vadd.f32 %v4244, %v4468
        %v4470 = vpop.f32.mrb[0].mxu0
        %4471 = vmatprep.mubr.bf16.mxu0 0
        %4472 = vmatmul.mubr.bf16.gmra.mrb[0].mxu0 %v4414
        %v4473 = vpop.f32.mrb[0].mxu0
        %v4474 = vadd.f32 %v4244, %v4473
        %v4475 = vpop.f32.mrb[0].mxu0
        %v4476 = vpop.f32.mrb[0].mxu0
        %v4477 = vadd.f32 %v4244, %v4476
        %v4478 = vpop.f32.mrb[0].mxu0
        %4479 = vdwg.mxu0
        %s4480 = scalar_lea.vmem %s398, 64 [#allocation5]
        %v4481 = vld [vmem:[%s4480] sm:$0xff]
        %v4482 = vld [vmem:[%s4480 + $0x8] sm:$0xff]
        %v4483 = vld [vmem:[%s4480 + $0x10] sm:$0xff]
        %v4484 = vld [vmem:[%s4480 + $0x18] sm:$0xff]
        %v4485 = vld [vmem:[%s4480 + $0x20] sm:$0xff]
        %v4486 = vld [vmem:[%s4480 + $0x28] sm:$0xff]
        %v4487 = vld [vmem:[%s4480 + $0x30] sm:$0xff]
        %v4488 = vld [vmem:[%s4480 + $0x38] sm:$0xff]
        %v4489 = vadd.f32 %v4450, %v4481
        %v4490 = vadd.f32 %v4453, %v4482
        %v4491 = vadd.f32 %v4458, %v4483
        %v4492 = vadd.f32 %v4461, %v4484
        %v4493 = vadd.f32 %v4466, %v4485
        %v4494 = vadd.f32 %v4469, %v4486
        %v4495 = vadd.f32 %v4474, %v4487
        %v4496 = vadd.f32 %v4477, %v4488
        %s4497 = scalar_lea.vmem %s448, 64 [#allocation13]
        %4498 = vst [vmem:[%s4497] sm:$0xff] %v4489
        %4499 = vst [vmem:[%s4497 + $0x8] sm:$0xff] %v4490
        %4500 = vst [vmem:[%s4497 + $0x10] sm:$0xff] %v4491
        %4501 = vst [vmem:[%s4497 + $0x18] sm:$0xff] %v4492
        %4502 = vst [vmem:[%s4497 + $0x20] sm:$0xff] %v4493
        %4503 = vst [vmem:[%s4497 + $0x28] sm:$0xff] %v4494
        %4504 = vst [vmem:[%s4497 + $0x30] sm:$0xff] %v4495
        %4505 = vst [vmem:[%s4497 + $0x38] sm:$0xff] %v4496
        %v4506 = vld [vmem:[%s3832] sm:$0xff]
        %v4507 = vld [vmem:[%s3832 + $0x8] sm:$0xff]
        %v4508 = vld [vmem:[%s3832 + $0x10] sm:$0xff]
        %v4509 = vld [vmem:[%s3832 + $0x18] sm:$0xff]
        %v4510 = vunpack.c.l.bf16 %v4506
        %v4511 = vunpack.c.h.bf16 %v4506
        %v4512 = vunpack.c.l.bf16 %v4507
        %v4513 = vunpack.c.h.bf16 %v4507
        %v4514 = vunpack.c.l.bf16 %v4508
        %v4515 = vunpack.c.h.bf16 %v4508
        %v4516 = vunpack.c.l.bf16 %v4509
        %v4517 = vunpack.c.h.bf16 %v4509
        %v4518 = vmul.f32 %v4510, %v4212
        %v4519 = vmul.f32 %v4511, %v4212
        %v4520 = vmul.f32 %v4512, %v4212
        %v4521 = vmul.f32 %v4513, %v4212
        %v4522 = vmul.f32 %v4514, %v4212
        %v4523 = vmul.f32 %v4515, %v4212
        %v4524 = vmul.f32 %v4516, %v4212
        %v4525 = vmul.f32 %v4517, %v4212
        %v4526 = vadd.f32 %v4518, %v4226
        %v4527 = vadd.f32 %v4519, %v4226
        %v4528 = vadd.f32 %v4520, %v4226
        %v4529 = vadd.f32 %v4521, %v4226
        %v4530 = vadd.f32 %v4522, %v4226
        %v4531 = vadd.f32 %v4523, %v4226
        %v4532 = vadd.f32 %v4524, %v4226
        %v4533 = vadd.f32 %v4525, %v4226
        %v4534 = vpack.c.bf16 %v4527, %v4526
        %v4535 = vpack.c.bf16 %v4529, %v4528
        %v4536 = vpack.c.bf16 %v4531, %v4530
        %v4537 = vpack.c.bf16 %v4533, %v4532
        %4538 = vmatprep.subr.bf16.mxu0 0
        %4539 = vmatpush1.bf16.msra.mxu0 %v4278
        %4540 = vmatprep.subr.bf16.mxu0 0
        %4541 = vmatpush1.bf16.msra.mxu0 %v4279
        %4542 = vmatprep.subr.bf16.mxu0 0
        %4543 = vmatpush1.bf16.msra.mxu0 %v4280
        %4544 = vmatprep.subr.bf16.mxu0 0
        %4545 = vmatpush1.bf16.msra.mxu0 %v4281
        %4546 = vmatprep.subr.bf16.mxu0 0
        %4547 = vmatpush1.bf16.msra.mxu0 %v4282
        %4548 = vmatprep.subr.bf16.mxu0 0
        %4549 = vmatpush1.bf16.msra.mxu0 %v4283
        %4550 = vmatprep.subr.bf16.mxu0 0
        %4551 = vmatpush1.bf16.msra.mxu0 %v4284
        %4552 = vmatprep.subr.bf16.mxu0 0
        %4553 = vmatpush1.bf16.msra.mxu0 %v4285
        %4554 = vmatprep.subr.bf16.mxu0 0
        %4555 = vmatpush1.bf16.msra.mxu0 0
        %4556 = vmatprep.subr.bf16.mxu0 0
        %4557 = vmatpush1.bf16.msra.mxu0 0
        %4558 = vmatprep.subr.bf16.mxu0 0
        %4559 = vmatpush1.bf16.msra.mxu0 0
        %4560 = vmatprep.subr.bf16.mxu0 0
        %4561 = vmatpush1.bf16.msra.mxu0 0
        %4562 = vmatprep.subr.bf16.mxu0 0
        %4563 = vmatpush1.bf16.msra.mxu0 0
        %4564 = vmatprep.subr.bf16.mxu0 0
        %4565 = vmatpush1.bf16.msra.mxu0 0
        %4566 = vmatprep.subr.bf16.mxu0 0
        %4567 = vmatpush1.bf16.msra.mxu0 0
        %4568 = vmatprep.subr.bf16.mxu0 0
        %4569 = vmatpush1.bf16.msra.mxu0 0
        %4570 = vmatprep.mubr.bf16.mxu0 0
        %4571 = vmatmul.mubr.bf16.gmra.mrb[0].mxu0 %v4534
        %v4572 = vpop.f32.mrb[0].mxu0
        %v4573 = vadd.f32 %v4244, %v4572
        %v4574 = vpop.f32.mrb[0].mxu0
        %v4575 = vpop.f32.mrb[0].mxu0
        %v4576 = vadd.f32 %v4244, %v4575
        %v4577 = vpop.f32.mrb[0].mxu0
        %4578 = vmatprep.mubr.bf16.mxu0 0
        %4579 = vmatmul.mubr.bf16.gmra.mrb[0].mxu0 %v4535
        %v4580 = vpop.f32.mrb[0].mxu0
        %v4581 = vadd.f32 %v4244, %v4580
        %v4582 = vpop.f32.mrb[0].mxu0
        %v4583 = vpop.f32.mrb[0].mxu0
        %v4584 = vadd.f32 %v4244, %v4583
        %v4585 = vpop.f32.mrb[0].mxu0
        %4586 = vmatprep.mubr.bf16.mxu0 0
        %4587 = vmatmul.mubr.bf16.gmra.mrb[0].mxu0 %v4536
        %v4588 = vpop.f32.mrb[0].mxu0
        %v4589 = vadd.f32 %v4244, %v4588
        %v4590 = vpop.f32.mrb[0].mxu0
        %v4591 = vpop.f32.mrb[0].mxu0
        %v4592 = vadd.f32 %v4244, %v4591
        %v4593 = vpop.f32.mrb[0].mxu0
        %4594 = vmatprep.mubr.bf16.mxu0 0
        %4595 = vmatmul.mubr.bf16.gmra.mrb[0].mxu0 %v4537
        %v4596 = vpop.f32.mrb[0].mxu0
        %v4597 = vadd.f32 %v4244, %v4596
        %v4598 = vpop.f32.mrb[0].mxu0
        %v4599 = vpop.f32.mrb[0].mxu0
        %v4600 = vadd.f32 %v4244, %v4599
        %v4601 = vpop.f32.mrb[0].mxu0
        %4602 = vdwg.mxu0
        %s4603 = scalar_lea.vmem %s398, 128 [#allocation5]
        %v4604 = vld [vmem:[%s4603] sm:$0xff]
        %v4605 = vld [vmem:[%s4603 + $0x8] sm:$0xff]
        %v4606 = vld [vmem:[%s4603 + $0x10] sm:$0xff]
        %v4607 = vld [vmem:[%s4603 + $0x18] sm:$0xff]
        %v4608 = vld [vmem:[%s4603 + $0x20] sm:$0xff]
        %v4609 = vld [vmem:[%s4603 + $0x28] sm:$0xff]
        %v4610 = vld [vmem:[%s4603 + $0x30] sm:$0xff]
        %v4611 = vld [vmem:[%s4603 + $0x38] sm:$0xff]
        %v4612 = vadd.f32 %v4573, %v4604
        %v4613 = vadd.f32 %v4576, %v4605
        %v4614 = vadd.f32 %v4581, %v4606
        %v4615 = vadd.f32 %v4584, %v4607
        %v4616 = vadd.f32 %v4589, %v4608
        %v4617 = vadd.f32 %v4592, %v4609
        %v4618 = vadd.f32 %v4597, %v4610
        %v4619 = vadd.f32 %v4600, %v4611
        %s4620 = scalar_lea.vmem %s448, 128 [#allocation13]
        %4621 = vst [vmem:[%s4620] sm:$0xff] %v4612
        %4622 = vst [vmem:[%s4620 + $0x8] sm:$0xff] %v4613
        %4623 = vst [vmem:[%s4620 + $0x10] sm:$0xff] %v4614
        %4624 = vst [vmem:[%s4620 + $0x18] sm:$0xff] %v4615
        %4625 = vst [vmem:[%s4620 + $0x20] sm:$0xff] %v4616
        %4626 = vst [vmem:[%s4620 + $0x28] sm:$0xff] %v4617
        %4627 = vst [vmem:[%s4620 + $0x30] sm:$0xff] %v4618
        %4628 = vst [vmem:[%s4620 + $0x38] sm:$0xff] %v4619
        %v4629 = vld [vmem:[%s4157] sm:$0xff]
        %v4630 = vld [vmem:[%s4157 + $0x8] sm:$0xff]
        %v4631 = vld [vmem:[%s4157 + $0x10] sm:$0xff]
        %v4632 = vld [vmem:[%s4157 + $0x18] sm:$0xff]
        %v4633 = vunpack.c.l.bf16 %v4629
        %v4634 = vunpack.c.h.bf16 %v4629
        %v4635 = vunpack.c.l.bf16 %v4630
        %v4636 = vunpack.c.h.bf16 %v4630
        %v4637 = vunpack.c.l.bf16 %v4631
        %v4638 = vunpack.c.h.bf16 %v4631
        %v4639 = vunpack.c.l.bf16 %v4632
        %v4640 = vunpack.c.h.bf16 %v4632
        %v4641 = vmul.f32 %v4633, %v4212
        %v4642 = vmul.f32 %v4634, %v4212
        %v4643 = vmul.f32 %v4635, %v4212
        %v4644 = vmul.f32 %v4636, %v4212
        %v4645 = vmul.f32 %v4637, %v4212
        %v4646 = vmul.f32 %v4638, %v4212
        %v4647 = vmul.f32 %v4639, %v4212
        %v4648 = vmul.f32 %v4640, %v4212
        %v4649 = vadd.f32 %v4641, %v4226
        %v4650 = vadd.f32 %v4642, %v4226
        %v4651 = vadd.f32 %v4643, %v4226
        %v4652 = vadd.f32 %v4644, %v4226
        %v4653 = vadd.f32 %v4645, %v4226
        %v4654 = vadd.f32 %v4646, %v4226
        %v4655 = vadd.f32 %v4647, %v4226
        %v4656 = vadd.f32 %v4648, %v4226
        %v4657 = vpack.c.bf16 %v4650, %v4649
        %v4658 = vpack.c.bf16 %v4652, %v4651
        %v4659 = vpack.c.bf16 %v4654, %v4653
        %v4660 = vpack.c.bf16 %v4656, %v4655
        %4661 = vmatprep.subr.bf16.mxu0 0
        %4662 = vmatpush1.bf16.msra.mxu0 %v4278
        %4663 = vmatprep.subr.bf16.mxu0 0
        %4664 = vmatpush1.bf16.msra.mxu0 %v4279
        %4665 = vmatprep.subr.bf16.mxu0 0
        %4666 = vmatpush1.bf16.msra.mxu0 %v4280
        %4667 = vmatprep.subr.bf16.mxu0 0
        %4668 = vmatpush1.bf16.msra.mxu0 %v4281
        %4669 = vmatprep.subr.bf16.mxu0 0
        %4670 = vmatpush1.bf16.msra.mxu0 %v4282
        %4671 = vmatprep.subr.bf16.mxu0 0
        %4672 = vmatpush1.bf16.msra.mxu0 %v4283
        %4673 = vmatprep.subr.bf16.mxu0 0
        %4674 = vmatpush1.bf16.msra.mxu0 %v4284
        %4675 = vmatprep.subr.bf16.mxu0 0
        %4676 = vmatpush1.bf16.msra.mxu0 %v4285
        %4677 = vmatprep.subr.bf16.mxu0 0
        %4678 = vmatpush1.bf16.msra.mxu0 0
        %4679 = vmatprep.subr.bf16.mxu0 0
        %4680 = vmatpush1.bf16.msra.mxu0 0
        %4681 = vmatprep.subr.bf16.mxu0 0
        %4682 = vmatpush1.bf16.msra.mxu0 0
        %4683 = vmatprep.subr.bf16.mxu0 0
        %4684 = vmatpush1.bf16.msra.mxu0 0
        %4685 = vmatprep.subr.bf16.mxu0 0
        %4686 = vmatpush1.bf16.msra.mxu0 0
        %4687 = vmatprep.subr.bf16.mxu0 0
        %4688 = vmatpush1.bf16.msra.mxu0 0
        %4689 = vmatprep.subr.bf16.mxu0 0
        %4690 = vmatpush1.bf16.msra.mxu0 0
        %4691 = vmatprep.subr.bf16.mxu0 0
        %4692 = vmatpush1.bf16.msra.mxu0 0
        %4693 = vmatprep.mubr.bf16.mxu0 0
        %4694 = vmatmul.mubr.bf16.gmra.mrb[0].mxu0 %v4657
        %v4695 = vpop.f32.mrb[0].mxu0
        %v4696 = vadd.f32 %v4244, %v4695
        %v4697 = vpop.f32.mrb[0].mxu0
        %v4698 = vpop.f32.mrb[0].mxu0
        %v4699 = vadd.f32 %v4244, %v4698
        %v4700 = vpop.f32.mrb[0].mxu0
        %4701 = vmatprep.mubr.bf16.mxu0 0
        %4702 = vmatmul.mubr.bf16.gmra.mrb[0].mxu0 %v4658
        %v4703 = vpop.f32.mrb[0].mxu0
        %v4704 = vadd.f32 %v4244, %v4703
        %v4705 = vpop.f32.mrb[0].mxu0
        %v4706 = vpop.f32.mrb[0].mxu0
        %v4707 = vadd.f32 %v4244, %v4706
        %v4708 = vpop.f32.mrb[0].mxu0
        %4709 = vmatprep.mubr.bf16.mxu0 0
        %4710 = vmatmul.mubr.bf16.gmra.mrb[0].mxu0 %v4659
        %v4711 = vpop.f32.mrb[0].mxu0
        %v4712 = vadd.f32 %v4244, %v4711
        %v4713 = vpop.f32.mrb[0].mxu0
        %v4714 = vpop.f32.mrb[0].mxu0
        %v4715 = vadd.f32 %v4244, %v4714
        %v4716 = vpop.f32.mrb[0].mxu0
        %4717 = vmatprep.mubr.bf16.mxu0 0
        %4718 = vmatmul.mubr.bf16.gmra.mrb[0].mxu0 %v4660
        %v4719 = vpop.f32.mrb[0].mxu0
        %v4720 = vadd.f32 %v4244, %v4719
        %v4721 = vpop.f32.mrb[0].mxu0
        %v4722 = vpop.f32.mrb[0].mxu0
        %v4723 = vadd.f32 %v4244, %v4722
        %v4724 = vpop.f32.mrb[0].mxu0
        %4725 = vdwg.mxu0
        %s4726 = scalar_lea.vmem %s398, 192 [#allocation5]
        %v4727 = vld [vmem:[%s4726] sm:$0xff]
        %v4728 = vld [vmem:[%s4726 + $0x8] sm:$0xff]
        %v4729 = vld [vmem:[%s4726 + $0x10] sm:$0xff]
        %v4730 = vld [vmem:[%s4726 + $0x18] sm:$0xff]
        %v4731 = vld [vmem:[%s4726 + $0x20] sm:$0xff]
        %v4732 = vld [vmem:[%s4726 + $0x28] sm:$0xff]
        %v4733 = vld [vmem:[%s4726 + $0x30] sm:$0xff]
        %v4734 = vld [vmem:[%s4726 + $0x38] sm:$0xff]
        %v4735 = vadd.f32 %v4696, %v4727
        %v4736 = vadd.f32 %v4699, %v4728
        %v4737 = vadd.f32 %v4704, %v4729
        %v4738 = vadd.f32 %v4707, %v4730
        %v4739 = vadd.f32 %v4712, %v4731
        %v4740 = vadd.f32 %v4715, %v4732
        %v4741 = vadd.f32 %v4720, %v4733
        %v4742 = vadd.f32 %v4723, %v4734
        %s4743 = scalar_lea.vmem %s448, 192 [#allocation13]
        %4744 = vst [vmem:[%s4743] sm:$0xff] %v4735
        %4745 = vst [vmem:[%s4743 + $0x8] sm:$0xff] %v4736
        %4746 = vst [vmem:[%s4743 + $0x10] sm:$0xff] %v4737
        %4747 = vst [vmem:[%s4743 + $0x18] sm:$0xff] %v4738
        %4748 = vst [vmem:[%s4743 + $0x20] sm:$0xff] %v4739
        %4749 = vst [vmem:[%s4743 + $0x28] sm:$0xff] %v4740
        %4750 = vst [vmem:[%s4743 + $0x30] sm:$0xff] %v4741
        %4751 = vst [vmem:[%s4743 + $0x38] sm:$0xff] %v4742
        %s4752 = sand.u32 %s274, 1
        %s4753 = scalar_lea.sflag [#allocation7], %s4752
        %s4754 = sand.u32 %s274, 1
        %s4755 = smul.addr %s4754, 256
        %s4756 = scalar_lea.vmem [#allocation13], %s4755
        // Predicated region
        $region81: #{tpu_custom_call.1} parent=63 // pred_check
          %p4757 = pneg %p284
        $region82: #{tpu_custom_call.1} parent=63 // pred_check_branch
          %4759 = sbr.rel (%p4757) target = $region84
        $region83: #{tpu_custom_call.1} parent=63 // pred_region
          %s4761 = ssub.s32 4096, 4096
          %4762 = vsyncadd %s4753, %s4761
          %s4763 = smul.addr %s30, 32
          %s4764 = smul.addr %s4763, 128
          %s4765 = scalar_lea.hbm %s11, %s4764
          %s4766 = sshll.u32 %s4756, 4
          %s4767 = int_to_ptr.vmem [resolvable:$true] %s4766
          %4772 = dma.vmem_to_hbm [thread:$0]  %s4767, 4096, %s4765, %s4753, 128, 128, 8
        $region84: #{tpu_custom_call.1} parent=63 // pred_fallthru
          _
      $region64: #{tpu_custom_call.1} parent=5 // pred_fallthru
        _
      %p4773 = scmp.le.s32.totalorder 2, %s25
      // Predicated region
      $region85: #{tpu_custom_call.1} parent=5 // pred_check
        %p4774 = pneg %p4773
      $region86: #{tpu_custom_call.1} parent=5 // pred_check_branch
        %4776 = sbr.rel (%p4774) target = $region88
      $region87: #{tpu_custom_call.1} parent=5 // pred_region
        %s4777 = ssub.s32 %s25, 2
        // Predicated region
        $region89: #{tpu_custom_call.1} parent=87 // pred_check
          %p4778 = pneg %p290
        $region90: #{tpu_custom_call.1} parent=87 // pred_check_branch
          %4780 = sbr.rel (%p4778) target = $region92
        $region91: #{tpu_custom_call.1} parent=87 // pred_region
          %s4781 = sand.u32 %s275, 1
          %s4782 = scalar_lea.sflag [#allocation7], %s4781
          %s4783 = sand.u32 %s275, 1
          %s4784 = smul.addr %s4783, 256
          %s4785 = scalar_lea.vmem [#allocation13], %s4784
          %4786 = dma.done %s4782, 4096
        $region92: #{tpu_custom_call.1} parent=87 // pred_fallthru
          _
      $region88: #{tpu_custom_call.1} parent=5 // pred_fallthru
        _
    $region6: #{tpu_custom_call.1} parent=1 // loop_footer
      %s29 = sadd.s32 1, %s25
    $region7: #{tpu_custom_call.1} parent=1 // loop_footer_branch
      %24 = sbr.rel target = $region3
    $region8: #{tpu_custom_call.1} parent=1 // loop_exit
      _
    %4787 = vsyncpa [#allocation6], 1
    %s4788 = scalar_lea.sflag [#allocation6], 1
    %4789 = vsyncpa %s4788, 1
    %4790 = vsyncpa [#allocation9], 1
    %4791 = vsyncpa [#allocation12], 1
    %4792 = vsyncpa [#allocation7], 1
    %s4793 = scalar_lea.sflag [#allocation7], 1
    %4794 = vsyncpa %s4793, 1

</llo_original>
